<compile_context>
chip_gen: v5e
topology: v5e:2x2
jax: 0.10.0
libtpu: 0.0.40
codegen_flags: <defaults>
</compile_context>

<pallas_src>
import math

import jax
import jax.numpy as jnp
from jax.experimental import pallas as pl
from jax.experimental.pallas import tpu as pltpu

HIDDEN = (1024, 512, 512, 512)
LANE = 128      # lane width (last-dim tile)
SUBLANE = 8     # f32 sublane count


def _round_up(x, m):
    return ((x + m - 1) // m) * m


def _make_fused_mlp_kernel(out_dims):
    """Build the fused-MLP kernel for a fixed tuple of per-layer output dims."""
    n_layers = len(out_dims)
    offs = [0]
    for d in out_dims:
        offs.append(offs[-1] + d)

    def kernel(x_ref, b_ref, *rest):
        # rest = (w1_hbm..wL_hbm, o_ref, w1_vmem..wL_vmem, sem)
        w_hbm = rest[:n_layers]
        o_ref = rest[n_layers]
        w_vmem = rest[n_layers + 1: 2 * n_layers + 1]
        sem = rest[2 * n_layers + 1]

        # Kick off every weight DMA up front; each layer below waits only on
        # its own copy, so layer-i compute overlaps the remaining transfers.
        copies = []
        for i in range(n_layers):
            cp = pltpu.make_async_copy(w_hbm[i], w_vmem[i], sem.at[i])
            cp.start()
            copies.append(cp)

        h = x_ref[...]  # f32 activations (kept f32 for v5e portability).
        # TODO(synk): at large batch on v6e/v7x, cast h to bf16 between layers
        # to halve VPU/EUP work and run the MXU bf16 x bf16 at full rate.
        for i in range(n_layers):
            copies[i].wait()
            w = w_vmem[i][...].astype(jnp.float32)    # bf16 -> f32 operand
            y = jnp.dot(h, w, preferred_element_type=jnp.float32)
            b = b_ref[:, offs[i]:offs[i + 1]]         # (1, out_dim) static slice
            h = jnp.tanh(y + b)
        o_ref[...] = h.astype(o_ref.dtype)

    return kernel


def init_actor_param(key, state_dim, param_dim):
    """Deterministic init matching the PyTorch module's init scheme.

    Weights are stored as (in_dim, out_dim) (transposed vs. nn.Linear),
    biases as (1, out_dim), both f32 (quantized to bf16 at call time).
    """
    dims = [state_dim] + list(HIDDEN)
    params = []
    # Hidden layers: kaiming_normal_(nonlinearity='relu') -> std = sqrt(2/fan_in).
    for i in range(len(HIDDEN)):
        key, k = jax.random.split(key)
        fan_in, fan_out = dims[i], dims[i + 1]
        std = math.sqrt(2.0 / fan_in)
        w = std * jax.random.normal(k, (fan_in, fan_out), jnp.float32)
        b = jnp.zeros((1, fan_out), jnp.float32)
        params.append((w, b))
    # Output layer: xavier_normal_ with tanh gain (5/3).
    key, k = jax.random.split(key)
    fan_in, fan_out = dims[-1], param_dim
    gain = 5.0 / 3.0
    std = gain * math.sqrt(2.0 / (fan_in + fan_out))
    w = std * jax.random.normal(k, (fan_in, fan_out), jnp.float32)
    b = jnp.zeros((1, fan_out), jnp.float32)
    params.append((w, b))
    return params


def actor_param_forward(params, s):
    """Fused forward pass: one pallas_call for the entire 5-layer MLP."""
    assert len(params) == len(HIDDEN) + 1
    B, K = s.shape
    N = params[-1][0].shape[1]          # param_dim

    # Pad batch to a sublane multiple (8 rows, f32) — no further padding.
    Bp = max(SUBLANE, _round_up(B, SUBLANE))
    s_p = jnp.pad(s.astype(jnp.float32), ((0, Bp - B), (0, 0)))

    # Pad the final layer's output columns to a lane multiple (128) so the
    # output slab is lane-dense; extra columns are tanh(0)=0, sliced off below.
    Np = max(LANE, _round_up(N, LANE))

    w_list = []     # bf16 weights, passed as HBM refs (manual per-layer DMA)
    b_list = []     # f32 biases, concatenated into a single VMEM input
    out_dims = []
    for li, (w, b) in enumerate(params):
        if li == len(params) - 1:
            w = jnp.pad(w, ((0, 0), (0, Np - N)))
            b = jnp.pad(b, ((0, 0), (0, Np - N)))
        w_list.append(w.astype(jnp.bfloat16))
        b_list.append(b.astype(jnp.float32))
        out_dims.append(w.shape[1])
    b_cat = jnp.concatenate(b_list, axis=1)   # (1, 2688), 128-aligned segments

    kernel = _make_fused_mlp_kernel(tuple(out_dims))

    vmem_spec = pl.BlockSpec(memory_space=pltpu.MemorySpace.VMEM)
    hbm_spec = pl.BlockSpec(memory_space=pl.ANY)

    in_specs = [vmem_spec, vmem_spec] + [hbm_spec] * len(w_list)
    scratch_shapes = [pltpu.VMEM(w.shape, jnp.bfloat16) for w in w_list]
    scratch_shapes.append(pltpu.SemaphoreType.DMA((len(w_list),)))

    out_p = pl.pallas_call(
        kernel,
        out_shape=jax.ShapeDtypeStruct((Bp, Np), jnp.float32),
        in_specs=in_specs,
        out_specs=vmem_spec,
        scratch_shapes=scratch_shapes,
        compiler_params=pltpu.CompilerParams(
            vmem_limit_bytes=32 * 1024 * 1024),
    )(s_p, b_cat, *w_list)

    # TODO(synk): for large RL batches, add a batch grid axis ("parallel",
    # 256-512 row tiles sized against v7x's 64 MiB VMEM) with constant-index
    # weight BlockSpecs so weights stay VMEM-resident while activation tiles
    # stream; unnecessary at B=2.
    return out_p[:B, :N]


if __name__ == "__main__":
    key = jax.random.PRNGKey(0)
    state_dim = 32
    param_dim = 8
    batch = 2

    key, pkey, xkey = jax.random.split(key, 3)
    params = init_actor_param(pkey, state_dim, param_dim)
    s = jax.random.normal(xkey, (batch, state_dim), jnp.float32)

    out = actor_param_forward(params, s)
    jax.block_until_ready(out)

    # Pure-JAX reference using the same bf16-quantized weights.
    ref = s
    for (w, b) in params:
        w_q = w.astype(jnp.bfloat16).astype(jnp.float32)
        ref = jnp.tanh(ref @ w_q + b)

    assert out.shape == (batch, param_dim)
    max_err = float(jnp.max(jnp.abs(out - ref)))
    assert jnp.allclose(out, ref, atol=1e-2, rtol=1e-2), max_err

    print("KERNEL_OK")
</pallas_src>

<mosaic_0001>
module attributes {stable_mosaic.version = 11 : i64} {
  func.func @kernel(%arg0: memref<8x32xf32, #tpu.memory_space<vmem>>, %arg1: memref<1x2688xf32, #tpu.memory_space<vmem>>, %arg2: memref<32x1024xbf16, #tpu.memory_space<any>>, %arg3: memref<1024x512xbf16, #tpu.memory_space<any>>, %arg4: memref<512x512xbf16, #tpu.memory_space<any>>, %arg5: memref<512x512xbf16, #tpu.memory_space<any>>, %arg6: memref<512x128xbf16, #tpu.memory_space<any>>, %arg7: memref<8x128xf32, #tpu.memory_space<vmem>>, %arg8: memref<32x1024xbf16, #tpu.memory_space<vmem>>, %arg9: memref<1024x512xbf16, #tpu.memory_space<vmem>>, %arg10: memref<512x512xbf16, #tpu.memory_space<vmem>>, %arg11: memref<512x512xbf16, #tpu.memory_space<vmem>>, %arg12: memref<512x128xbf16, #tpu.memory_space<vmem>>, %arg13: memref<5x!tpu.dma_semaphore, #tpu.memory_space<semaphore_mem>>) attributes {dimension_semantics = [], scalar_prefetch = 0 : i64, scratch_operands = 6 : i64, tpu.core_type = #tpu.core_type<tc>} {
    %c0_i32 = arith.constant 0 : i32
    %0 = tpu.memref_slice %arg13[%c0_i32] : memref<5x!tpu.dma_semaphore, #tpu.memory_space<semaphore_mem>> -> memref<1x!tpu.dma_semaphore, #tpu.memory_space<semaphore_mem>>
    %1 = tpu.memref_squeeze %0 : memref<1x!tpu.dma_semaphore, #tpu.memory_space<semaphore_mem>> -> memref<!tpu.dma_semaphore, #tpu.memory_space<semaphore_mem>>
    tpu.enqueue_dma source(%arg2 : memref<32x1024xbf16, #tpu.memory_space<any>>) target(%arg8 : memref<32x1024xbf16, #tpu.memory_space<vmem>>) target_semaphore(%1 : memref<!tpu.dma_semaphore, #tpu.memory_space<semaphore_mem>>)
    %c1_i32 = arith.constant 1 : i32
    %2 = tpu.memref_slice %arg13[%c1_i32] : memref<5x!tpu.dma_semaphore, #tpu.memory_space<semaphore_mem>> -> memref<1x!tpu.dma_semaphore, #tpu.memory_space<semaphore_mem>>
    %3 = tpu.memref_squeeze %2 : memref<1x!tpu.dma_semaphore, #tpu.memory_space<semaphore_mem>> -> memref<!tpu.dma_semaphore, #tpu.memory_space<semaphore_mem>>
    tpu.enqueue_dma source(%arg3 : memref<1024x512xbf16, #tpu.memory_space<any>>) target(%arg9 : memref<1024x512xbf16, #tpu.memory_space<vmem>>) target_semaphore(%3 : memref<!tpu.dma_semaphore, #tpu.memory_space<semaphore_mem>>)
    %c2_i32 = arith.constant 2 : i32
    %4 = tpu.memref_slice %arg13[%c2_i32] : memref<5x!tpu.dma_semaphore, #tpu.memory_space<semaphore_mem>> -> memref<1x!tpu.dma_semaphore, #tpu.memory_space<semaphore_mem>>
    %5 = tpu.memref_squeeze %4 : memref<1x!tpu.dma_semaphore, #tpu.memory_space<semaphore_mem>> -> memref<!tpu.dma_semaphore, #tpu.memory_space<semaphore_mem>>
    tpu.enqueue_dma source(%arg4 : memref<512x512xbf16, #tpu.memory_space<any>>) target(%arg10 : memref<512x512xbf16, #tpu.memory_space<vmem>>) target_semaphore(%5 : memref<!tpu.dma_semaphore, #tpu.memory_space<semaphore_mem>>)
    %c3_i32 = arith.constant 3 : i32
    %6 = tpu.memref_slice %arg13[%c3_i32] : memref<5x!tpu.dma_semaphore, #tpu.memory_space<semaphore_mem>> -> memref<1x!tpu.dma_semaphore, #tpu.memory_space<semaphore_mem>>
    %7 = tpu.memref_squeeze %6 : memref<1x!tpu.dma_semaphore, #tpu.memory_space<semaphore_mem>> -> memref<!tpu.dma_semaphore, #tpu.memory_space<semaphore_mem>>
    tpu.enqueue_dma source(%arg5 : memref<512x512xbf16, #tpu.memory_space<any>>) target(%arg11 : memref<512x512xbf16, #tpu.memory_space<vmem>>) target_semaphore(%7 : memref<!tpu.dma_semaphore, #tpu.memory_space<semaphore_mem>>)
    %c4_i32 = arith.constant 4 : i32
    %8 = tpu.memref_slice %arg13[%c4_i32] : memref<5x!tpu.dma_semaphore, #tpu.memory_space<semaphore_mem>> -> memref<1x!tpu.dma_semaphore, #tpu.memory_space<semaphore_mem>>
    %9 = tpu.memref_squeeze %8 : memref<1x!tpu.dma_semaphore, #tpu.memory_space<semaphore_mem>> -> memref<!tpu.dma_semaphore, #tpu.memory_space<semaphore_mem>>
    tpu.enqueue_dma source(%arg6 : memref<512x128xbf16, #tpu.memory_space<any>>) target(%arg12 : memref<512x128xbf16, #tpu.memory_space<vmem>>) target_semaphore(%9 : memref<!tpu.dma_semaphore, #tpu.memory_space<semaphore_mem>>)
    %c0 = arith.constant 0 : index
    %c0_0 = arith.constant 0 : index
    %10 = vector.load %arg0[%c0, %c0_0] : memref<8x32xf32, #tpu.memory_space<vmem>>, vector<8x32xf32>
    %c0_i32_1 = arith.constant 0 : i32
    %11 = tpu.memref_slice %arg13[%c0_i32_1] : memref<5x!tpu.dma_semaphore, #tpu.memory_space<semaphore_mem>> -> memref<1x!tpu.dma_semaphore, #tpu.memory_space<semaphore_mem>>
    %12 = tpu.memref_squeeze %11 : memref<1x!tpu.dma_semaphore, #tpu.memory_space<semaphore_mem>> -> memref<!tpu.dma_semaphore, #tpu.memory_space<semaphore_mem>>
    tpu.wait_dma2 semaphore(%12 : memref<!tpu.dma_semaphore, #tpu.memory_space<semaphore_mem>>) src(%arg2 : memref<32x1024xbf16, #tpu.memory_space<any>>) dst(%arg8 : memref<32x1024xbf16, #tpu.memory_space<vmem>>)
    %c0_2 = arith.constant 0 : index
    %c0_3 = arith.constant 0 : index
    %13 = vector.load %arg8[%c0_2, %c0_3] : memref<32x1024xbf16, #tpu.memory_space<vmem>>, vector<32x1024xbf16>
    %14 = arith.extf %13 : vector<32x1024xbf16> to vector<32x1024xf32>
    %cst = arith.constant dense<0.000000e+00> : vector<8x1024xf32>
    %15 = tpu.matmul %10, %14, %cst {dimension_numbers = #tpu.dot_dimension_numbers<[1], [0], [0], [1], [0, 0, 1, 1], [], []>} : vector<8x32xf32>, vector<32x1024xf32>, vector<8x1024xf32> -> vector<8x1024xf32>
    %c0_4 = arith.constant 0 : index
    %c0_5 = arith.constant 0 : index
    %16 = vector.load %arg1[%c0_4, %c0_5] : memref<1x2688xf32, #tpu.memory_space<vmem>>, vector<1x1024xf32>
    %17 = vector.broadcast %16 : vector<1x1024xf32> to vector<8x1024xf32>
    %18 = arith.addf %15, %17 : vector<8x1024xf32>
    %19 = math.tanh %18 : vector<8x1024xf32>
    %c1_i32_6 = arith.constant 1 : i32
    %20 = tpu.memref_slice %arg13[%c1_i32_6] : memref<5x!tpu.dma_semaphore, #tpu.memory_space<semaphore_mem>> -> memref<1x!tpu.dma_semaphore, #tpu.memory_space<semaphore_mem>>
    %21 = tpu.memref_squeeze %20 : memref<1x!tpu.dma_semaphore, #tpu.memory_space<semaphore_mem>> -> memref<!tpu.dma_semaphore, #tpu.memory_space<semaphore_mem>>
    tpu.wait_dma2 semaphore(%21 : memref<!tpu.dma_semaphore, #tpu.memory_space<semaphore_mem>>) src(%arg3 : memref<1024x512xbf16, #tpu.memory_space<any>>) dst(%arg9 : memref<1024x512xbf16, #tpu.memory_space<vmem>>)
    %c0_7 = arith.constant 0 : index
    %c0_8 = arith.constant 0 : index
    %22 = vector.load %arg9[%c0_7, %c0_8] : memref<1024x512xbf16, #tpu.memory_space<vmem>>, vector<1024x512xbf16>
    %23 = arith.extf %22 : vector<1024x512xbf16> to vector<1024x512xf32>
    %cst_9 = arith.constant dense<0.000000e+00> : vector<8x512xf32>
    %24 = tpu.matmul %19, %23, %cst_9 {dimension_numbers = #tpu.dot_dimension_numbers<[1], [0], [0], [1], [0, 0, 1, 1], [], []>} : vector<8x1024xf32>, vector<1024x512xf32>, vector<8x512xf32> -> vector<8x512xf32>
    %c0_10 = arith.constant 0 : index
    %c1024 = arith.constant 1024 : index
    %25 = vector.load %arg1[%c0_10, %c1024] : memref<1x2688xf32, #tpu.memory_space<vmem>>, vector<1x512xf32>
    %26 = vector.broadcast %25 : vector<1x512xf32> to vector<8x512xf32>
    %27 = arith.addf %24, %26 : vector<8x512xf32>
    %28 = math.tanh %27 : vector<8x512xf32>
    %c2_i32_11 = arith.constant 2 : i32
    %29 = tpu.memref_slice %arg13[%c2_i32_11] : memref<5x!tpu.dma_semaphore, #tpu.memory_space<semaphore_mem>> -> memref<1x!tpu.dma_semaphore, #tpu.memory_space<semaphore_mem>>
    %30 = tpu.memref_squeeze %29 : memref<1x!tpu.dma_semaphore, #tpu.memory_space<semaphore_mem>> -> memref<!tpu.dma_semaphore, #tpu.memory_space<semaphore_mem>>
    tpu.wait_dma2 semaphore(%30 : memref<!tpu.dma_semaphore, #tpu.memory_space<semaphore_mem>>) src(%arg4 : memref<512x512xbf16, #tpu.memory_space<any>>) dst(%arg10 : memref<512x512xbf16, #tpu.memory_space<vmem>>)
    %c0_12 = arith.constant 0 : index
    %c0_13 = arith.constant 0 : index
    %31 = vector.load %arg10[%c0_12, %c0_13] : memref<512x512xbf16, #tpu.memory_space<vmem>>, vector<512x512xbf16>
    %32 = arith.extf %31 : vector<512x512xbf16> to vector<512x512xf32>
    %cst_14 = arith.constant dense<0.000000e+00> : vector<8x512xf32>
    %33 = tpu.matmul %28, %32, %cst_14 {dimension_numbers = #tpu.dot_dimension_numbers<[1], [0], [0], [1], [0, 0, 1, 1], [], []>} : vector<8x512xf32>, vector<512x512xf32>, vector<8x512xf32> -> vector<8x512xf32>
    %c0_15 = arith.constant 0 : index
    %c1536 = arith.constant 1536 : index
    %34 = vector.load %arg1[%c0_15, %c1536] : memref<1x2688xf32, #tpu.memory_space<vmem>>, vector<1x512xf32>
    %35 = vector.broadcast %34 : vector<1x512xf32> to vector<8x512xf32>
    %36 = arith.addf %33, %35 : vector<8x512xf32>
    %37 = math.tanh %36 : vector<8x512xf32>
    %c3_i32_16 = arith.constant 3 : i32
    %38 = tpu.memref_slice %arg13[%c3_i32_16] : memref<5x!tpu.dma_semaphore, #tpu.memory_space<semaphore_mem>> -> memref<1x!tpu.dma_semaphore, #tpu.memory_space<semaphore_mem>>
    %39 = tpu.memref_squeeze %38 : memref<1x!tpu.dma_semaphore, #tpu.memory_space<semaphore_mem>> -> memref<!tpu.dma_semaphore, #tpu.memory_space<semaphore_mem>>
    tpu.wait_dma2 semaphore(%39 : memref<!tpu.dma_semaphore, #tpu.memory_space<semaphore_mem>>) src(%arg5 : memref<512x512xbf16, #tpu.memory_space<any>>) dst(%arg11 : memref<512x512xbf16, #tpu.memory_space<vmem>>)
    %c0_17 = arith.constant 0 : index
    %c0_18 = arith.constant 0 : index
    %40 = vector.load %arg11[%c0_17, %c0_18] : memref<512x512xbf16, #tpu.memory_space<vmem>>, vector<512x512xbf16>
    %41 = arith.extf %40 : vector<512x512xbf16> to vector<512x512xf32>
    %cst_19 = arith.constant dense<0.000000e+00> : vector<8x512xf32>
    %42 = tpu.matmul %37, %41, %cst_19 {dimension_numbers = #tpu.dot_dimension_numbers<[1], [0], [0], [1], [0, 0, 1, 1], [], []>} : vector<8x512xf32>, vector<512x512xf32>, vector<8x512xf32> -> vector<8x512xf32>
    %c0_20 = arith.constant 0 : index
    %c2048 = arith.constant 2048 : index
    %43 = vector.load %arg1[%c0_20, %c2048] : memref<1x2688xf32, #tpu.memory_space<vmem>>, vector<1x512xf32>
    %44 = vector.broadcast %43 : vector<1x512xf32> to vector<8x512xf32>
    %45 = arith.addf %42, %44 : vector<8x512xf32>
    %46 = math.tanh %45 : vector<8x512xf32>
    %c4_i32_21 = arith.constant 4 : i32
    %47 = tpu.memref_slice %arg13[%c4_i32_21] : memref<5x!tpu.dma_semaphore, #tpu.memory_space<semaphore_mem>> -> memref<1x!tpu.dma_semaphore, #tpu.memory_space<semaphore_mem>>
    %48 = tpu.memref_squeeze %47 : memref<1x!tpu.dma_semaphore, #tpu.memory_space<semaphore_mem>> -> memref<!tpu.dma_semaphore, #tpu.memory_space<semaphore_mem>>
    tpu.wait_dma2 semaphore(%48 : memref<!tpu.dma_semaphore, #tpu.memory_space<semaphore_mem>>) src(%arg6 : memref<512x128xbf16, #tpu.memory_space<any>>) dst(%arg12 : memref<512x128xbf16, #tpu.memory_space<vmem>>)
    %c0_22 = arith.constant 0 : index
    %c0_23 = arith.constant 0 : index
    %49 = vector.load %arg12[%c0_22, %c0_23] : memref<512x128xbf16, #tpu.memory_space<vmem>>, vector<512x128xbf16>
    %50 = arith.extf %49 : vector<512x128xbf16> to vector<512x128xf32>
    %cst_24 = arith.constant dense<0.000000e+00> : vector<8x128xf32>
    %51 = tpu.matmul %46, %50, %cst_24 {dimension_numbers = #tpu.dot_dimension_numbers<[1], [0], [0], [1], [0, 0, 1, 1], [], []>} : vector<8x512xf32>, vector<512x128xf32>, vector<8x128xf32> -> vector<8x128xf32>
    %c0_25 = arith.constant 0 : index
    %c2560 = arith.constant 2560 : index
    %52 = vector.load %arg1[%c0_25, %c2560] : memref<1x2688xf32, #tpu.memory_space<vmem>>, vector<1x128xf32>
    %53 = vector.broadcast %52 : vector<1x128xf32> to vector<8x128xf32>
    %54 = arith.addf %51, %53 : vector<8x128xf32>
    %55 = math.tanh %54 : vector<8x128xf32>
    %c0_26 = arith.constant 0 : index
    %c0_27 = arith.constant 0 : index
    %56 = vector.load %arg7[%c0_26, %c0_27] : memref<8x128xf32, #tpu.memory_space<vmem>>, vector<8x128xf32>
    tpu.vector_store %arg7[%c0_26, %c0_27], %55 {strides = array<i32>} : memref<8x128xf32, #tpu.memory_space<vmem>>, vector<8x128xf32>,
    return
  }
}

</mosaic_0001>

<llo_original>
// kernel: tpu_custom_call.1
$region0: #{tpu_custom_call.1}
  #allocation0 [shape = 'u32[]', space=smem, size = 0x4, offset = 0x4, fixed_abs, tag = 'smem constant byte address 0x4 - core index']
  #allocation1 [shape = 'u32[72,128]{1,0:T(1,128)}', space=vmem, size = 0x9000, scoped, tag = 'internal scratch']
  #allocation2 [shape = 'bf16[32,1024]{1,0:T(8,128)(2,1)}', space=vmem, size = 0x10000, scoped, tag = 'scratch operand']
  #allocation3 [shape = 'bf16[1024,512]{1,0:T(8,128)(2,1)}', space=vmem, size = 0x100000, scoped, tag = 'scratch operand']
  #allocation4 [shape = 'bf16[512,512]{1,0:T(8,128)(2,1)}', space=vmem, size = 0x80000, scoped, tag = 'scratch operand']
  #allocation5 [shape = 'bf16[512,512]{1,0:T(8,128)(2,1)}', space=vmem, size = 0x80000, scoped, tag = 'scratch operand']
  #allocation6 [shape = 'bf16[512,128]{1,0:T(8,128)(2,1)}', space=vmem, size = 0x20000, scoped, tag = 'scratch operand']
  #allocation7 [shape = 's32[5]{0}', space=sflag, size = 0x14, scoped, tag = 'scratch operand']
  #allocation14 [shape = 's32[]', space=sflag, size = 0x4, offset = 0, fixed_abs, tag = 'sflag constant byte address 0x0 - dummy sync flag']
  #allocation15 [shape = 's32[]', space=sflag, size = 0x4, offset = 0, fixed_abs, tag = 'sflag constant byte address 0x0 - dummy sync flag']
  #allocation16 [shape = 'u32[]', space=smem, size = 0x4, offset = 0x44, fixed_abs, tag = 'smem constant byte address 0x44 - assertion arg 0']
  #allocation17 [shape = 'u32[]', space=smem, size = 0x4, offset = 0x48, fixed_abs, tag = 'smem constant byte address 0x48 - assertion arg 1']
  #allocation18 [shape = 's32[]', space=sflag, size = 0x4, offset = 0, fixed_abs, tag = 'sflag constant byte address 0x0 - dummy sync flag']
  #allocation19 [shape = 's32[]', space=sflag, size = 0x4, offset = 0, fixed_abs, tag = 'sflag constant byte address 0x0 - dummy sync flag']
  #allocation20 [shape = 's32[]', space=sflag, size = 0x4, offset = 0, fixed_abs, tag = 'sflag constant byte address 0x0 - dummy sync flag']
  #allocation21 [shape = 's32[]', space=sflag, size = 0x4, offset = 0, fixed_abs, tag = 'sflag constant byte address 0x0 - dummy sync flag']
  #allocation22 [shape = 's32[]', space=sflag, size = 0x4, offset = 0, fixed_abs, tag = 'sflag constant byte address 0x0 - dummy sync flag']
  #allocation23 [shape = 's32[]', space=sflag, size = 0x4, offset = 0, fixed_abs, tag = 'sflag constant byte address 0x0 - dummy sync flag']
  #allocation24 [shape = 's32[]', space=sflag, size = 0x4, offset = 0, fixed_abs, tag = 'sflag constant byte address 0x0 - dummy sync flag']
  #allocation25 [shape = 's32[]', space=sflag, size = 0x4, offset = 0, fixed_abs, tag = 'sflag constant byte address 0x0 - dummy sync flag']
  %s0 = inlined_call_operand.hbm [shape: f32[8,32], index: 0, kind: input, shape index: {}]
  %s1 = inlined_call_operand.hbm [shape: f32[1,2688], index: 1, kind: input, shape index: {}]
  %s2 = inlined_call_operand.hbm [shape: bf16[32,1024], index: 2, kind: input, shape index: {}]
  %s3 = inlined_call_operand.hbm [shape: bf16[1024,512], index: 3, kind: input, shape index: {}]
  %s4 = inlined_call_operand.hbm [shape: bf16[512,512], index: 4, kind: input, shape index: {}]
  %s5 = inlined_call_operand.hbm [shape: bf16[512,512], index: 5, kind: input, shape index: {}]
  %s6 = inlined_call_operand.hbm [shape: bf16[512,128], index: 6, kind: input, shape index: {}]
  %s7 = inlined_call_operand.hbm [shape: f32[8,128], index: 7, kind: output, shape index: {}]
  %s8 = sld [smem:[#allocation0]]
  $region46: #{tpu_custom_call.1} parent=0
    _
  %s10 = ssub.s32 1, %s8
  %s11 = scalar_select 0, %s10, %s8
  $region1: #{tpu_custom_call.1} parent=0
    #allocation8 [shape = 'u8[4096]{0}', space=vmem, size = 0x1000, scoped, tag = 'input window, operand 0, single buffered']
    #allocation9 [shape = 's32[1]{0}', space=sflag, size = 0x4, scoped, tag = 'scoped memory for tpu_custom_call.1']
    #allocation10 [shape = 's32[1]{0}', space=sflag, size = 0x4, scoped, tag = 'scoped memory for tpu_custom_call.1']
    #allocation11 [shape = 'u8[10752]{0}', space=vmem, size = 0x2c00, scoped, tag = 'input window, operand 1, single buffered']
    #allocation12 [shape = 's32[1]{0}', space=sflag, size = 0x4, scoped, tag = 'scoped memory for tpu_custom_call.1']
    #allocation13 [shape = 'u8[4096]{0}', space=vmem, size = 0x1000, scoped, tag = 'output window, operand 0, single buffered']
    %12 = vsyncpa [#allocation9], 0
    %13 = vsyncpa [#allocation12], 0
    %14 = vsyncpa [#allocation10], 0
    // Predicated region
    $region2: #{tpu_custom_call.1} parent=1 // pred_check
      _
    $region3: #{tpu_custom_call.1} parent=1 // pred_check_branch
      %16 = sbr.rel (0) target = $region5
    $region4: #{tpu_custom_call.1} parent=1 // pred_region
      %18 = vsyncadd [#allocation9], 0
      %s20 = sshll.u32 %s0, 4
      %s21 = int_to_ptr.hbm [resolvable:$true] %s20
      %s22 = sshll.u32 [#allocation8], 4
      %s23 = int_to_ptr.vmem [resolvable:$true] %s22
      %25 = dma.hbm_to_vmem [thread:$0]  %s21, 128, %s23, [#allocation9]
    $region5: #{tpu_custom_call.1} parent=1 // pred_fallthru
      _
    // Predicated region
    $region6: #{tpu_custom_call.1} parent=1 // pred_check
      _
    $region7: #{tpu_custom_call.1} parent=1 // pred_check_branch
      %27 = sbr.rel (0) target = $region9
    $region8: #{tpu_custom_call.1} parent=1 // pred_region
      %29 = vsyncadd [#allocation12], 0
      %s31 = sshll.u32 %s1, 4
      %s32 = int_to_ptr.hbm [resolvable:$true] %s31
      %s33 = sshll.u32 [#allocation11], 4
      %s34 = int_to_ptr.vmem [resolvable:$true] %s33
      %36 = dma.hbm_to_vmem [thread:$0]  %s32, 336, %s34, [#allocation12]
    $region9: #{tpu_custom_call.1} parent=1 // pred_fallthru
      _
    // Predicated region
    $region10: #{tpu_custom_call.1} parent=1 // pred_check
      _
    $region11: #{tpu_custom_call.1} parent=1 // pred_check_branch
      %38 = sbr.rel (0) target = $region13
    $region12: #{tpu_custom_call.1} parent=1 // pred_region
      %40 = dma.done [#allocation9], 128
    $region13: #{tpu_custom_call.1} parent=1 // pred_fallthru
      _
    // Predicated region
    $region14: #{tpu_custom_call.1} parent=1 // pred_check
      _
    $region15: #{tpu_custom_call.1} parent=1 // pred_check_branch
      %42 = sbr.rel (0) target = $region17
    $region16: #{tpu_custom_call.1} parent=1 // pred_region
      %44 = dma.done [#allocation12], 336
    $region17: #{tpu_custom_call.1} parent=1 // pred_fallthru
      _
    // Predicated region
    $region18: #{tpu_custom_call.1} parent=1 // pred_check
      _
    $region19: #{tpu_custom_call.1} parent=1 // pred_check_branch
      %46 = sbr.rel target = $region21
    $region20: #{tpu_custom_call.1} parent=1 // pred_region
      %47 = sst [smem:[#allocation16]] [#allocation15]
      %48 = sst [smem:[#allocation17]] [#allocation14]
    $region21: #{tpu_custom_call.1} parent=1 // pred_fallthru
      _
    %50 = shalt.err (0)
    %s52 = sshll.u32 %s2, 4
    %s53 = int_to_ptr.hbm [resolvable:$true] %s52
    %s54 = sshll.u32 [#allocation2], 4
    %s55 = int_to_ptr.vmem [resolvable:$true] %s54
    %57 = dma.hbm_to_vmem [thread:$0]  %s53, 2048, %s55, [#allocation7]
    %s58 = scalar_lea.sflag [#allocation7], 1
    // Predicated region
    $region22: #{tpu_custom_call.1} parent=1 // pred_check
      _
    $region23: #{tpu_custom_call.1} parent=1 // pred_check_branch
      %60 = sbr.rel target = $region25
    $region24: #{tpu_custom_call.1} parent=1 // pred_region
      %61 = sst [smem:[#allocation16]] [#allocation19]
      %62 = sst [smem:[#allocation17]] [#allocation18]
    $region25: #{tpu_custom_call.1} parent=1 // pred_fallthru
      _
    %64 = shalt.err (0)
    %s66 = sshll.u32 %s3, 4
    %s67 = int_to_ptr.hbm [resolvable:$true] %s66
    %s68 = sshll.u32 [#allocation3], 4
    %s69 = int_to_ptr.vmem [resolvable:$true] %s68
    %71 = dma.hbm_to_vmem [thread:$0]  %s67, 32768, %s69, %s58
    %s72 = scalar_lea.sflag [#allocation7], 2
    // Predicated region
    $region26: #{tpu_custom_call.1} parent=1 // pred_check
      _
    $region27: #{tpu_custom_call.1} parent=1 // pred_check_branch
      %74 = sbr.rel target = $region29
    $region28: #{tpu_custom_call.1} parent=1 // pred_region
      %75 = sst [smem:[#allocation16]] [#allocation21]
      %76 = sst [smem:[#allocation17]] [#allocation20]
    $region29: #{tpu_custom_call.1} parent=1 // pred_fallthru
      _
    %78 = shalt.err (0)
    %s80 = sshll.u32 %s4, 4
    %s81 = int_to_ptr.hbm [resolvable:$true] %s80
    %s82 = sshll.u32 [#allocation4], 4
    %s83 = int_to_ptr.vmem [resolvable:$true] %s82
    %85 = dma.hbm_to_vmem [thread:$0]  %s81, 16384, %s83, %s72
    %s86 = scalar_lea.sflag [#allocation7], 3
    // Predicated region
    $region30: #{tpu_custom_call.1} parent=1 // pred_check
      _
    $region31: #{tpu_custom_call.1} parent=1 // pred_check_branch
      %88 = sbr.rel target = $region33
    $region32: #{tpu_custom_call.1} parent=1 // pred_region
      %89 = sst [smem:[#allocation16]] [#allocation23]
      %90 = sst [smem:[#allocation17]] [#allocation22]
    $region33: #{tpu_custom_call.1} parent=1 // pred_fallthru
      _
    %92 = shalt.err (0)
    %s94 = sshll.u32 %s5, 4
    %s95 = int_to_ptr.hbm [resolvable:$true] %s94
    %s96 = sshll.u32 [#allocation5], 4
    %s97 = int_to_ptr.vmem [resolvable:$true] %s96
    %99 = dma.hbm_to_vmem [thread:$0]  %s95, 16384, %s97, %s86
    %s100 = scalar_lea.sflag [#allocation7], 4
    // Predicated region
    $region34: #{tpu_custom_call.1} parent=1 // pred_check
      _
    $region35: #{tpu_custom_call.1} parent=1 // pred_check_branch
      %102 = sbr.rel target = $region37
    $region36: #{tpu_custom_call.1} parent=1 // pred_region
      %103 = sst [smem:[#allocation16]] [#allocation25]
      %104 = sst [smem:[#allocation17]] [#allocation24]
    $region37: #{tpu_custom_call.1} parent=1 // pred_fallthru
      _
    %106 = shalt.err (0)
    %s108 = sshll.u32 %s6, 4
    %s109 = int_to_ptr.hbm [resolvable:$true] %s108
    %s110 = sshll.u32 [#allocation6], 4
    %s111 = int_to_ptr.vmem [resolvable:$true] %s110
    %113 = dma.hbm_to_vmem [thread:$0]  %s109, 4096, %s111, %s100
    %v114 = vld [vmem:[#allocation8] sm:$0xff]
    %s115 = smul.u32 4, 4
    %s116 = smul.u32 %s115, 8
    %s117 = sshll.u32 %s116, 4
    %118 = dma.done [#allocation7], %s117
    %v119 = vld [vmem:[#allocation2] sm:$0xff]
    %v120 = vld [vmem:[#allocation2 + $0x8] sm:$0xff]
    %v121 = vld [vmem:[#allocation2 + $0x10] sm:$0xff]
    %v122 = vld [vmem:[#allocation2 + $0x18] sm:$0xff]
    %v123 = vld [vmem:[#allocation2 + $0x20] sm:$0xff]
    %v124 = vld [vmem:[#allocation2 + $0x28] sm:$0xff]
    %v125 = vld [vmem:[#allocation2 + $0x30] sm:$0xff]
    %v126 = vld [vmem:[#allocation2 + $0x38] sm:$0xff]
    %v127 = vld [vmem:[#allocation2 + $0x40] sm:$0xff]
    %v128 = vld [vmem:[#allocation2 + $0x48] sm:$0xff]
    %v129 = vld [vmem:[#allocation2 + $0x50] sm:$0xff]
    %v130 = vld [vmem:[#allocation2 + $0x58] sm:$0xff]
    %v131 = vld [vmem:[#allocation2 + $0x60] sm:$0xff]
    %v132 = vld [vmem:[#allocation2 + $0x68] sm:$0xff]
    %v133 = vld [vmem:[#allocation2 + $0x70] sm:$0xff]
    %v134 = vld [vmem:[#allocation2 + $0x78] sm:$0xff]
    %v135 = vunpack.c.l.bf16 %v119
    %v136 = vunpack.c.h.bf16 %v119
    %v137 = vunpack.c.l.bf16 %v120
    %v138 = vunpack.c.h.bf16 %v120
    %v139 = vunpack.c.l.bf16 %v121
    %v140 = vunpack.c.h.bf16 %v121
    %v141 = vunpack.c.l.bf16 %v122
    %v142 = vunpack.c.h.bf16 %v122
    %v143 = vunpack.c.l.bf16 %v123
    %v144 = vunpack.c.h.bf16 %v123
    %v145 = vunpack.c.l.bf16 %v124
    %v146 = vunpack.c.h.bf16 %v124
    %v147 = vunpack.c.l.bf16 %v125
    %v148 = vunpack.c.h.bf16 %v125
    %v149 = vunpack.c.l.bf16 %v126
    %v150 = vunpack.c.h.bf16 %v126
    %v151 = vunpack.c.l.bf16 %v127
    %v152 = vunpack.c.h.bf16 %v127
    %v153 = vunpack.c.l.bf16 %v128
    %v154 = vunpack.c.h.bf16 %v128
    %v155 = vunpack.c.l.bf16 %v129
    %v156 = vunpack.c.h.bf16 %v129
    %v157 = vunpack.c.l.bf16 %v130
    %v158 = vunpack.c.h.bf16 %v130
    %v159 = vunpack.c.l.bf16 %v131
    %v160 = vunpack.c.h.bf16 %v131
    %v161 = vunpack.c.l.bf16 %v132
    %v162 = vunpack.c.h.bf16 %v132
    %v163 = vunpack.c.l.bf16 %v133
    %v164 = vunpack.c.h.bf16 %v133
    %v165 = vunpack.c.l.bf16 %v134
    %v166 = vunpack.c.h.bf16 %v134
    %v167 = vld [vmem:[#allocation11] sm:$0xff]
    %v169 = vperm.slane %v167, 0
    %v170 = vperm.slane %v167, 1
    %v171 = vperm.slane %v167, 2
    %v172 = vperm.slane %v167, 3
    %v173 = vperm.slane %v167, 4
    %v174 = vperm.slane %v167, 5
    %v175 = vperm.slane %v167, 6
    %v176 = vperm.slane %v167, 7
    %vm185 = vcmask 261120
    %v187 = vsel %vm185, %v114, 0
    %189 = vmatpush.msra.mxu0 0.0
    %190 = vmatpush.msra.mxu0 0.0
    %191 = vmatpush.msra.mxu0 0.0
    %192 = vmatpush.msra.mxu0 0.0
    %193 = vmatpush.msra.mxu0 0.0
    %194 = vmatpush.msra.mxu0 0.0
    %195 = vmatpush.msra.mxu0 0.0
    %196 = vmatpush.msra.mxu0 0.0
    %197 = vmatpush.msra.mxu0 0.0
    %198 = vmatpush.msra.mxu0 0.0
    %199 = vmatpush.msra.mxu0 0.0
    %200 = vmatpush.msra.mxu0 0.0
    %201 = vmatpush.msra.mxu0 %v159
    %202 = vmatpush.msra.mxu0 %v151
    %203 = vmatpush.msra.mxu0 %v143
    %204 = vmatpush.msra.mxu0 %v135
    %205 = vmatmul.f32.gmra.mxu0 %v187
    %v206 = vpop.f32.mrf.mxu0
    %v207 = vadd.f32 %v169, %v206
    %208 = vdwg.mxu0
    %209 = vmatpush.msra.mxu0 0.0
    %210 = vmatpush.msra.mxu0 0.0
    %211 = vmatpush.msra.mxu0 0.0
    %212 = vmatpush.msra.mxu0 0.0
    %213 = vmatpush.msra.mxu0 0.0
    %214 = vmatpush.msra.mxu0 0.0
    %215 = vmatpush.msra.mxu0 0.0
    %216 = vmatpush.msra.mxu0 0.0
    %217 = vmatpush.msra.mxu0 0.0
    %218 = vmatpush.msra.mxu0 0.0
    %219 = vmatpush.msra.mxu0 0.0
    %220 = vmatpush.msra.mxu0 0.0
    %221 = vmatpush.msra.mxu0 %v160
    %222 = vmatpush.msra.mxu0 %v152
    %223 = vmatpush.msra.mxu0 %v144
    %224 = vmatpush.msra.mxu0 %v136
    %225 = vmatmul.f32.gmra.mxu0 %v187
    %v226 = vpop.f32.mrf.mxu0
    %v227 = vadd.f32 %v170, %v226
    %228 = vdwg.mxu0
    %229 = vmatpush.msra.mxu0 0.0
    %230 = vmatpush.msra.mxu0 0.0
    %231 = vmatpush.msra.mxu0 0.0
    %232 = vmatpush.msra.mxu0 0.0
    %233 = vmatpush.msra.mxu0 0.0
    %234 = vmatpush.msra.mxu0 0.0
    %235 = vmatpush.msra.mxu0 0.0
    %236 = vmatpush.msra.mxu0 0.0
    %237 = vmatpush.msra.mxu0 0.0
    %238 = vmatpush.msra.mxu0 0.0
    %239 = vmatpush.msra.mxu0 0.0
    %240 = vmatpush.msra.mxu0 0.0
    %241 = vmatpush.msra.mxu0 %v161
    %242 = vmatpush.msra.mxu0 %v153
    %243 = vmatpush.msra.mxu0 %v145
    %244 = vmatpush.msra.mxu0 %v137
    %245 = vmatmul.f32.gmra.mxu0 %v187
    %v246 = vpop.f32.mrf.mxu0
    %v247 = vadd.f32 %v171, %v246
    %248 = vdwg.mxu0
    %249 = vmatpush.msra.mxu0 0.0
    %250 = vmatpush.msra.mxu0 0.0
    %251 = vmatpush.msra.mxu0 0.0
    %252 = vmatpush.msra.mxu0 0.0
    %253 = vmatpush.msra.mxu0 0.0
    %254 = vmatpush.msra.mxu0 0.0
    %255 = vmatpush.msra.mxu0 0.0
    %256 = vmatpush.msra.mxu0 0.0
    %257 = vmatpush.msra.mxu0 0.0
    %258 = vmatpush.msra.mxu0 0.0
    %259 = vmatpush.msra.mxu0 0.0
    %260 = vmatpush.msra.mxu0 0.0
    %261 = vmatpush.msra.mxu0 %v162
    %262 = vmatpush.msra.mxu0 %v154
    %263 = vmatpush.msra.mxu0 %v146
    %264 = vmatpush.msra.mxu0 %v138
    %265 = vmatmul.f32.gmra.mxu0 %v187
    %v266 = vpop.f32.mrf.mxu0
    %v267 = vadd.f32 %v172, %v266
    %268 = vdwg.mxu0
    %269 = vmatpush.msra.mxu0 0.0
    %270 = vmatpush.msra.mxu0 0.0
    %271 = vmatpush.msra.mxu0 0.0
    %272 = vmatpush.msra.mxu0 0.0
    %273 = vmatpush.msra.mxu0 0.0
    %274 = vmatpush.msra.mxu0 0.0
    %275 = vmatpush.msra.mxu0 0.0
    %276 = vmatpush.msra.mxu0 0.0
    %277 = vmatpush.msra.mxu0 0.0
    %278 = vmatpush.msra.mxu0 0.0
    %279 = vmatpush.msra.mxu0 0.0
    %280 = vmatpush.msra.mxu0 0.0
    %281 = vmatpush.msra.mxu0 %v163
    %282 = vmatpush.msra.mxu0 %v155
    %283 = vmatpush.msra.mxu0 %v147
    %284 = vmatpush.msra.mxu0 %v139
    %285 = vmatmul.f32.gmra.mxu0 %v187
    %v286 = vpop.f32.mrf.mxu0
    %v287 = vadd.f32 %v173, %v286
    %288 = vdwg.mxu0
    %289 = vmatpush.msra.mxu0 0.0
    %290 = vmatpush.msra.mxu0 0.0
    %291 = vmatpush.msra.mxu0 0.0
    %292 = vmatpush.msra.mxu0 0.0
    %293 = vmatpush.msra.mxu0 0.0
    %294 = vmatpush.msra.mxu0 0.0
    %295 = vmatpush.msra.mxu0 0.0
    %296 = vmatpush.msra.mxu0 0.0
    %297 = vmatpush.msra.mxu0 0.0
    %298 = vmatpush.msra.mxu0 0.0
    %299 = vmatpush.msra.mxu0 0.0
    %300 = vmatpush.msra.mxu0 0.0
    %301 = vmatpush.msra.mxu0 %v164
    %302 = vmatpush.msra.mxu0 %v156
    %303 = vmatpush.msra.mxu0 %v148
    %304 = vmatpush.msra.mxu0 %v140
    %305 = vmatmul.f32.gmra.mxu0 %v187
    %v306 = vpop.f32.mrf.mxu0
    %v307 = vadd.f32 %v174, %v306
    %308 = vdwg.mxu0
    %309 = vmatpush.msra.mxu0 0.0
    %310 = vmatpush.msra.mxu0 0.0
    %311 = vmatpush.msra.mxu0 0.0
    %312 = vmatpush.msra.mxu0 0.0
    %313 = vmatpush.msra.mxu0 0.0
    %314 = vmatpush.msra.mxu0 0.0
    %315 = vmatpush.msra.mxu0 0.0
    %316 = vmatpush.msra.mxu0 0.0
    %317 = vmatpush.msra.mxu0 0.0
    %318 = vmatpush.msra.mxu0 0.0
    %319 = vmatpush.msra.mxu0 0.0
    %320 = vmatpush.msra.mxu0 0.0
    %321 = vmatpush.msra.mxu0 %v165
    %322 = vmatpush.msra.mxu0 %v157
    %323 = vmatpush.msra.mxu0 %v149
    %324 = vmatpush.msra.mxu0 %v141
    %325 = vmatmul.f32.gmra.mxu0 %v187
    %v326 = vpop.f32.mrf.mxu0
    %v327 = vadd.f32 %v175, %v326
    %328 = vdwg.mxu0
    %329 = vmatpush.msra.mxu0 0.0
    %330 = vmatpush.msra.mxu0 0.0
    %331 = vmatpush.msra.mxu0 0.0
    %332 = vmatpush.msra.mxu0 0.0
    %333 = vmatpush.msra.mxu0 0.0
    %334 = vmatpush.msra.mxu0 0.0
    %335 = vmatpush.msra.mxu0 0.0
    %336 = vmatpush.msra.mxu0 0.0
    %337 = vmatpush.msra.mxu0 0.0
    %338 = vmatpush.msra.mxu0 0.0
    %339 = vmatpush.msra.mxu0 0.0
    %340 = vmatpush.msra.mxu0 0.0
    %341 = vmatpush.msra.mxu0 %v166
    %342 = vmatpush.msra.mxu0 %v158
    %343 = vmatpush.msra.mxu0 %v150
    %344 = vmatpush.msra.mxu0 %v142
    %345 = vmatmul.f32.gmra.mxu0 %v187
    %v346 = vpop.f32.mrf.mxu0
    %v347 = vadd.f32 %v176, %v346
    %348 = vdwg.mxu0
    %v349 = vtanh.pop %v207
    %v350 = vtanh.pop %v227
    %v351 = vtanh.pop %v247
    %v352 = vtanh.pop %v267
    %v353 = vtanh.pop %v287
    %v354 = vtanh.pop %v307
    %v355 = vtanh.pop %v327
    %v356 = vtanh.pop %v347
    %s357 = smul.u32 4, 128
    %s358 = smul.u32 %s357, 4
    %s359 = sshll.u32 %s358, 4
    %360 = dma.done %s58, %s359
    %v361 = vld [vmem:[#allocation3] sm:$0xff]
    %v362 = vld [vmem:[#allocation3 + $0x8] sm:$0xff]
    %v363 = vld [vmem:[#allocation3 + $0x10] sm:$0xff]
    %v364 = vld [vmem:[#allocation3 + $0x18] sm:$0xff]
    %v365 = vld [vmem:[#allocation3 + $0x20] sm:$0xff]
    %v366 = vld [vmem:[#allocation3 + $0x28] sm:$0xff]
    %v367 = vld [vmem:[#allocation3 + $0x30] sm:$0xff]
    %v368 = vld [vmem:[#allocation3 + $0x38] sm:$0xff]
    %v369 = vld [vmem:[#allocation3 + $0x40] sm:$0xff]
    %v370 = vld [vmem:[#allocation3 + $0x48] sm:$0xff]
    %v371 = vld [vmem:[#allocation3 + $0x50] sm:$0xff]
    %v372 = vld [vmem:[#allocation3 + $0x58] sm:$0xff]
    %v373 = vld [vmem:[#allocation3 + $0x60] sm:$0xff]
    %v374 = vld [vmem:[#allocation3 + $0x68] sm:$0xff]
    %v375 = vld [vmem:[#allocation3 + $0x70] sm:$0xff]
    %v376 = vld [vmem:[#allocation3 + $0x78] sm:$0xff]
    %v377 = vld [vmem:[#allocation3 + $0x80] sm:$0xff]
    %v378 = vld [vmem:[#allocation3 + $0x88] sm:$0xff]
    %v379 = vld [vmem:[#allocation3 + $0x90] sm:$0xff]
    %v380 = vld [vmem:[#allocation3 + $0x98] sm:$0xff]
    %v381 = vld [vmem:[#allocation3 + $0xa0] sm:$0xff]
    %v382 = vld [vmem:[#allocation3 + $0xa8] sm:$0xff]
    %v383 = vld [vmem:[#allocation3 + $0xb0] sm:$0xff]
    %v384 = vld [vmem:[#allocation3 + $0xb8] sm:$0xff]
    %v385 = vld [vmem:[#allocation3 + $0xc0] sm:$0xff]
    %v386 = vld [vmem:[#allocation3 + $0xc8] sm:$0xff]
    %v387 = vld [vmem:[#allocation3 + $0xd0] sm:$0xff]
    %v388 = vld [vmem:[#allocation3 + $0xd8] sm:$0xff]
    %v389 = vld [vmem:[#allocation3 + $0xe0] sm:$0xff]
    %v390 = vld [vmem:[#allocation3 + $0xe8] sm:$0xff]
    %v391 = vld [vmem:[#allocation3 + $0xf0] sm:$0xff]
    %v392 = vld [vmem:[#allocation3 + $0xf8] sm:$0xff]
    %v393 = vld [vmem:[#allocation3 + $0x100] sm:$0xff]
    %v394 = vld [vmem:[#allocation3 + $0x108] sm:$0xff]
    %v395 = vld [vmem:[#allocation3 + $0x110] sm:$0xff]
    %v396 = vld [vmem:[#allocation3 + $0x118] sm:$0xff]
    %v397 = vld [vmem:[#allocation3 + $0x120] sm:$0xff]
    %v398 = vld [vmem:[#allocation3 + $0x128] sm:$0xff]
    %v399 = vld [vmem:[#allocation3 + $0x130] sm:$0xff]
    %v400 = vld [vmem:[#allocation3 + $0x138] sm:$0xff]
    %v401 = vld [vmem:[#allocation3 + $0x140] sm:$0xff]
    %v402 = vld [vmem:[#allocation3 + $0x148] sm:$0xff]
    %v403 = vld [vmem:[#allocation3 + $0x150] sm:$0xff]
    %v404 = vld [vmem:[#allocation3 + $0x158] sm:$0xff]
    %v405 = vld [vmem:[#allocation3 + $0x160] sm:$0xff]
    %v406 = vld [vmem:[#allocation3 + $0x168] sm:$0xff]
    %v407 = vld [vmem:[#allocation3 + $0x170] sm:$0xff]
    %v408 = vld [vmem:[#allocation3 + $0x178] sm:$0xff]
    %v409 = vld [vmem:[#allocation3 + $0x180] sm:$0xff]
    %v410 = vld [vmem:[#allocation3 + $0x188] sm:$0xff]
    %v411 = vld [vmem:[#allocation3 + $0x190] sm:$0xff]
    %v412 = vld [vmem:[#allocation3 + $0x198] sm:$0xff]
    %v413 = vld [vmem:[#allocation3 + $0x1a0] sm:$0xff]
    %v414 = vld [vmem:[#allocation3 + $0x1a8] sm:$0xff]
    %v415 = vld [vmem:[#allocation3 + $0x1b0] sm:$0xff]
    %v416 = vld [vmem:[#allocation3 + $0x1b8] sm:$0xff]
    %v417 = vld [vmem:[#allocation3 + $0x1c0] sm:$0xff]
    %v418 = vld [vmem:[#allocation3 + $0x1c8] sm:$0xff]
    %v419 = vld [vmem:[#allocation3 + $0x1d0] sm:$0xff]
    %v420 = vld [vmem:[#allocation3 + $0x1d8] sm:$0xff]
    %v421 = vld [vmem:[#allocation3 + $0x1e0] sm:$0xff]
    %v422 = vld [vmem:[#allocation3 + $0x1e8] sm:$0xff]
    %v423 = vld [vmem:[#allocation3 + $0x1f0] sm:$0xff]
    %v424 = vld [vmem:[#allocation3 + $0x1f8] sm:$0xff]
    %v425 = vld [vmem:[#allocation3 + $0x200] sm:$0xff]
    %v426 = vld [vmem:[#allocation3 + $0x208] sm:$0xff]
    %v427 = vld [vmem:[#allocation3 + $0x210] sm:$0xff]
    %v428 = vld [vmem:[#allocation3 + $0x218] sm:$0xff]
    %v429 = vld [vmem:[#allocation3 + $0x220] sm:$0xff]
    %v430 = vld [vmem:[#allocation3 + $0x228] sm:$0xff]
    %v431 = vld [vmem:[#allocation3 + $0x230] sm:$0xff]
    %v432 = vld [vmem:[#allocation3 + $0x238] sm:$0xff]
    %v433 = vld [vmem:[#allocation3 + $0x240] sm:$0xff]
    %v434 = vld [vmem:[#allocation3 + $0x248] sm:$0xff]
    %v435 = vld [vmem:[#allocation3 + $0x250] sm:$0xff]
    %v436 = vld [vmem:[#allocation3 + $0x258] sm:$0xff]
    %v437 = vld [vmem:[#allocation3 + $0x260] sm:$0xff]
    %v438 = vld [vmem:[#allocation3 + $0x268] sm:$0xff]
    %v439 = vld [vmem:[#allocation3 + $0x270] sm:$0xff]
    %v440 = vld [vmem:[#allocation3 + $0x278] sm:$0xff]
    %v441 = vld [vmem:[#allocation3 + $0x280] sm:$0xff]
    %v442 = vld [vmem:[#allocation3 + $0x288] sm:$0xff]
    %v443 = vld [vmem:[#allocation3 + $0x290] sm:$0xff]
    %v444 = vld [vmem:[#allocation3 + $0x298] sm:$0xff]
    %v445 = vld [vmem:[#allocation3 + $0x2a0] sm:$0xff]
    %v446 = vld [vmem:[#allocation3 + $0x2a8] sm:$0xff]
    %v447 = vld [vmem:[#allocation3 + $0x2b0] sm:$0xff]
    %v448 = vld [vmem:[#allocation3 + $0x2b8] sm:$0xff]
    %v449 = vld [vmem:[#allocation3 + $0x2c0] sm:$0xff]
    %v450 = vld [vmem:[#allocation3 + $0x2c8] sm:$0xff]
    %v451 = vld [vmem:[#allocation3 + $0x2d0] sm:$0xff]
    %v452 = vld [vmem:[#allocation3 + $0x2d8] sm:$0xff]
    %v453 = vld [vmem:[#allocation3 + $0x2e0] sm:$0xff]
    %v454 = vld [vmem:[#allocation3 + $0x2e8] sm:$0xff]
    %v455 = vld [vmem:[#allocation3 + $0x2f0] sm:$0xff]
    %v456 = vld [vmem:[#allocation3 + $0x2f8] sm:$0xff]
    %v457 = vld [vmem:[#allocation3 + $0x300] sm:$0xff]
    %v458 = vld [vmem:[#allocation3 + $0x308] sm:$0xff]
    %v459 = vld [vmem:[#allocation3 + $0x310] sm:$0xff]
    %v460 = vld [vmem:[#allocation3 + $0x318] sm:$0xff]
    %v461 = vld [vmem:[#allocation3 + $0x320] sm:$0xff]
    %v462 = vld [vmem:[#allocation3 + $0x328] sm:$0xff]
    %v463 = vld [vmem:[#allocation3 + $0x330] sm:$0xff]
    %v464 = vld [vmem:[#allocation3 + $0x338] sm:$0xff]
    %v465 = vld [vmem:[#allocation3 + $0x340] sm:$0xff]
    %v466 = vld [vmem:[#allocation3 + $0x348] sm:$0xff]
    %v467 = vld [vmem:[#allocation3 + $0x350] sm:$0xff]
    %v468 = vld [vmem:[#allocation3 + $0x358] sm:$0xff]
    %v469 = vld [vmem:[#allocation3 + $0x360] sm:$0xff]
    %v470 = vld [vmem:[#allocation3 + $0x368] sm:$0xff]
    %v471 = vld [vmem:[#allocation3 + $0x370] sm:$0xff]
    %v472 = vld [vmem:[#allocation3 + $0x378] sm:$0xff]
    %v473 = vld [vmem:[#allocation3 + $0x380] sm:$0xff]
    %v474 = vld [vmem:[#allocation3 + $0x388] sm:$0xff]
    %v475 = vld [vmem:[#allocation3 + $0x390] sm:$0xff]
    %v476 = vld [vmem:[#allocation3 + $0x398] sm:$0xff]
    %v477 = vld [vmem:[#allocation3 + $0x3a0] sm:$0xff]
    %v478 = vld [vmem:[#allocation3 + $0x3a8] sm:$0xff]
    %v479 = vld [vmem:[#allocation3 + $0x3b0] sm:$0xff]
    %v480 = vld [vmem:[#allocation3 + $0x3b8] sm:$0xff]
    %v481 = vld [vmem:[#allocation3 + $0x3c0] sm:$0xff]
    %v482 = vld [vmem:[#allocation3 + $0x3c8] sm:$0xff]
    %v483 = vld [vmem:[#allocation3 + $0x3d0] sm:$0xff]
    %v484 = vld [vmem:[#allocation3 + $0x3d8] sm:$0xff]
    %v485 = vld [vmem:[#allocation3 + $0x3e0] sm:$0xff]
    %v486 = vld [vmem:[#allocation3 + $0x3e8] sm:$0xff]
    %v487 = vld [vmem:[#allocation3 + $0x3f0] sm:$0xff]
    %v488 = vld [vmem:[#allocation3 + $0x3f8] sm:$0xff]
    %v489 = vld [vmem:[#allocation3 + $0x400] sm:$0xff]
    %v490 = vld [vmem:[#allocation3 + $0x408] sm:$0xff]
    %v491 = vld [vmem:[#allocation3 + $0x410] sm:$0xff]
    %v492 = vld [vmem:[#allocation3 + $0x418] sm:$0xff]
    %v493 = vld [vmem:[#allocation3 + $0x420] sm:$0xff]
    %v494 = vld [vmem:[#allocation3 + $0x428] sm:$0xff]
    %v495 = vld [vmem:[#allocation3 + $0x430] sm:$0xff]
    %v496 = vld [vmem:[#allocation3 + $0x438] sm:$0xff]
    %v497 = vld [vmem:[#allocation3 + $0x440] sm:$0xff]
    %v498 = vld [vmem:[#allocation3 + $0x448] sm:$0xff]
    %v499 = vld [vmem:[#allocation3 + $0x450] sm:$0xff]
    %v500 = vld [vmem:[#allocation3 + $0x458] sm:$0xff]
    %v501 = vld [vmem:[#allocation3 + $0x460] sm:$0xff]
    %v502 = vld [vmem:[#allocation3 + $0x468] sm:$0xff]
    %v503 = vld [vmem:[#allocation3 + $0x470] sm:$0xff]
    %v504 = vld [vmem:[#allocation3 + $0x478] sm:$0xff]
    %v505 = vld [vmem:[#allocation3 + $0x480] sm:$0xff]
    %v506 = vld [vmem:[#allocation3 + $0x488] sm:$0xff]
    %v507 = vld [vmem:[#allocation3 + $0x490] sm:$0xff]
    %v508 = vld [vmem:[#allocation3 + $0x498] sm:$0xff]
    %v509 = vld [vmem:[#allocation3 + $0x4a0] sm:$0xff]
    %v510 = vld [vmem:[#allocation3 + $0x4a8] sm:$0xff]
    %v511 = vld [vmem:[#allocation3 + $0x4b0] sm:$0xff]
    %v512 = vld [vmem:[#allocation3 + $0x4b8] sm:$0xff]
    %v513 = vld [vmem:[#allocation3 + $0x4c0] sm:$0xff]
    %v514 = vld [vmem:[#allocation3 + $0x4c8] sm:$0xff]
    %v515 = vld [vmem:[#allocation3 + $0x4d0] sm:$0xff]
    %v516 = vld [vmem:[#allocation3 + $0x4d8] sm:$0xff]
    %v517 = vld [vmem:[#allocation3 + $0x4e0] sm:$0xff]
    %v518 = vld [vmem:[#allocation3 + $0x4e8] sm:$0xff]
    %v519 = vld [vmem:[#allocation3 + $0x4f0] sm:$0xff]
    %v520 = vld [vmem:[#allocation3 + $0x4f8] sm:$0xff]
    %v521 = vld [vmem:[#allocation3 + $0x500] sm:$0xff]
    %v522 = vld [vmem:[#allocation3 + $0x508] sm:$0xff]
    %v523 = vld [vmem:[#allocation3 + $0x510] sm:$0xff]
    %v524 = vld [vmem:[#allocation3 + $0x518] sm:$0xff]
    %v525 = vld [vmem:[#allocation3 + $0x520] sm:$0xff]
    %v526 = vld [vmem:[#allocation3 + $0x528] sm:$0xff]
    %v527 = vld [vmem:[#allocation3 + $0x530] sm:$0xff]
    %v528 = vld [vmem:[#allocation3 + $0x538] sm:$0xff]
    %v529 = vld [vmem:[#allocation3 + $0x540] sm:$0xff]
    %v530 = vld [vmem:[#allocation3 + $0x548] sm:$0xff]
    %v531 = vld [vmem:[#allocation3 + $0x550] sm:$0xff]
    %v532 = vld [vmem:[#allocation3 + $0x558] sm:$0xff]
    %v533 = vld [vmem:[#allocation3 + $0x560] sm:$0xff]
    %v534 = vld [vmem:[#allocation3 + $0x568] sm:$0xff]
    %v535 = vld [vmem:[#allocation3 + $0x570] sm:$0xff]
    %v536 = vld [vmem:[#allocation3 + $0x578] sm:$0xff]
    %v537 = vld [vmem:[#allocation3 + $0x580] sm:$0xff]
    %v538 = vld [vmem:[#allocation3 + $0x588] sm:$0xff]
    %v539 = vld [vmem:[#allocation3 + $0x590] sm:$0xff]
    %v540 = vld [vmem:[#allocation3 + $0x598] sm:$0xff]
    %v541 = vld [vmem:[#allocation3 + $0x5a0] sm:$0xff]
    %v542 = vld [vmem:[#allocation3 + $0x5a8] sm:$0xff]
    %v543 = vld [vmem:[#allocation3 + $0x5b0] sm:$0xff]
    %v544 = vld [vmem:[#allocation3 + $0x5b8] sm:$0xff]
    %v545 = vld [vmem:[#allocation3 + $0x5c0] sm:$0xff]
    %v546 = vld [vmem:[#allocation3 + $0x5c8] sm:$0xff]
    %v547 = vld [vmem:[#allocation3 + $0x5d0] sm:$0xff]
    %v548 = vld [vmem:[#allocation3 + $0x5d8] sm:$0xff]
    %v549 = vld [vmem:[#allocation3 + $0x5e0] sm:$0xff]
    %v550 = vld [vmem:[#allocation3 + $0x5e8] sm:$0xff]
    %v551 = vld [vmem:[#allocation3 + $0x5f0] sm:$0xff]
    %v552 = vld [vmem:[#allocation3 + $0x5f8] sm:$0xff]
    %v553 = vld [vmem:[#allocation3 + $0x600] sm:$0xff]
    %v554 = vld [vmem:[#allocation3 + $0x608] sm:$0xff]
    %v555 = vld [vmem:[#allocation3 + $0x610] sm:$0xff]
    %v556 = vld [vmem:[#allocation3 + $0x618] sm:$0xff]
    %v557 = vld [vmem:[#allocation3 + $0x620] sm:$0xff]
    %v558 = vld [vmem:[#allocation3 + $0x628] sm:$0xff]
    %v559 = vld [vmem:[#allocation3 + $0x630] sm:$0xff]
    %v560 = vld [vmem:[#allocation3 + $0x638] sm:$0xff]
    %v561 = vld [vmem:[#allocation3 + $0x640] sm:$0xff]
    %v562 = vld [vmem:[#allocation3 + $0x648] sm:$0xff]
    %v563 = vld [vmem:[#allocation3 + $0x650] sm:$0xff]
    %v564 = vld [vmem:[#allocation3 + $0x658] sm:$0xff]
    %v565 = vld [vmem:[#allocation3 + $0x660] sm:$0xff]
    %v566 = vld [vmem:[#allocation3 + $0x668] sm:$0xff]
    %v567 = vld [vmem:[#allocation3 + $0x670] sm:$0xff]
    %v568 = vld [vmem:[#allocation3 + $0x678] sm:$0xff]
    %v569 = vld [vmem:[#allocation3 + $0x680] sm:$0xff]
    %v570 = vld [vmem:[#allocation3 + $0x688] sm:$0xff]
    %v571 = vld [vmem:[#allocation3 + $0x690] sm:$0xff]
    %v572 = vld [vmem:[#allocation3 + $0x698] sm:$0xff]
    %v573 = vld [vmem:[#allocation3 + $0x6a0] sm:$0xff]
    %v574 = vld [vmem:[#allocation3 + $0x6a8] sm:$0xff]
    %v575 = vld [vmem:[#allocation3 + $0x6b0] sm:$0xff]
    %v576 = vld [vmem:[#allocation3 + $0x6b8] sm:$0xff]
    %v577 = vld [vmem:[#allocation3 + $0x6c0] sm:$0xff]
    %v578 = vld [vmem:[#allocation3 + $0x6c8] sm:$0xff]
    %v579 = vld [vmem:[#allocation3 + $0x6d0] sm:$0xff]
    %v580 = vld [vmem:[#allocation3 + $0x6d8] sm:$0xff]
    %v581 = vld [vmem:[#allocation3 + $0x6e0] sm:$0xff]
    %v582 = vld [vmem:[#allocation3 + $0x6e8] sm:$0xff]
    %v583 = vld [vmem:[#allocation3 + $0x6f0] sm:$0xff]
    %v584 = vld [vmem:[#allocation3 + $0x6f8] sm:$0xff]
    %v585 = vld [vmem:[#allocation3 + $0x700] sm:$0xff]
    %v586 = vld [vmem:[#allocation3 + $0x708] sm:$0xff]
    %v587 = vld [vmem:[#allocation3 + $0x710] sm:$0xff]
    %v588 = vld [vmem:[#allocation3 + $0x718] sm:$0xff]
    %v589 = vld [vmem:[#allocation3 + $0x720] sm:$0xff]
    %v590 = vld [vmem:[#allocation3 + $0x728] sm:$0xff]
    %v591 = vld [vmem:[#allocation3 + $0x730] sm:$0xff]
    %v592 = vld [vmem:[#allocation3 + $0x738] sm:$0xff]
    %v593 = vld [vmem:[#allocation3 + $0x740] sm:$0xff]
    %v594 = vld [vmem:[#allocation3 + $0x748] sm:$0xff]
    %v595 = vld [vmem:[#allocation3 + $0x750] sm:$0xff]
    %v596 = vld [vmem:[#allocation3 + $0x758] sm:$0xff]
    %v597 = vld [vmem:[#allocation3 + $0x760] sm:$0xff]
    %v598 = vld [vmem:[#allocation3 + $0x768] sm:$0xff]
    %v599 = vld [vmem:[#allocation3 + $0x770] sm:$0xff]
    %v600 = vld [vmem:[#allocation3 + $0x778] sm:$0xff]
    %v601 = vld [vmem:[#allocation3 + $0x780] sm:$0xff]
    %v602 = vld [vmem:[#allocation3 + $0x788] sm:$0xff]
    %v603 = vld [vmem:[#allocation3 + $0x790] sm:$0xff]
    %v604 = vld [vmem:[#allocation3 + $0x798] sm:$0xff]
    %v605 = vld [vmem:[#allocation3 + $0x7a0] sm:$0xff]
    %v606 = vld [vmem:[#allocation3 + $0x7a8] sm:$0xff]
    %v607 = vld [vmem:[#allocation3 + $0x7b0] sm:$0xff]
    %v608 = vld [vmem:[#allocation3 + $0x7b8] sm:$0xff]
    %v609 = vld [vmem:[#allocation3 + $0x7c0] sm:$0xff]
    %v610 = vld [vmem:[#allocation3 + $0x7c8] sm:$0xff]
    %v611 = vld [vmem:[#allocation3 + $0x7d0] sm:$0xff]
    %v612 = vld [vmem:[#allocation3 + $0x7d8] sm:$0xff]
    %v613 = vld [vmem:[#allocation3 + $0x7e0] sm:$0xff]
    %v614 = vld [vmem:[#allocation3 + $0x7e8] sm:$0xff]
    %v615 = vld [vmem:[#allocation3 + $0x7f0] sm:$0xff]
    %v616 = vld [vmem:[#allocation3 + $0x7f8] sm:$0xff]
    %v617 = vunpack.c.l.bf16 %v361
    %v618 = vunpack.c.h.bf16 %v361
    %v619 = vunpack.c.l.bf16 %v362
    %v620 = vunpack.c.h.bf16 %v362
    %v621 = vunpack.c.l.bf16 %v363
    %v622 = vunpack.c.h.bf16 %v363
    %v623 = vunpack.c.l.bf16 %v364
    %v624 = vunpack.c.h.bf16 %v364
    %v625 = vunpack.c.l.bf16 %v365
    %v626 = vunpack.c.h.bf16 %v365
    %v627 = vunpack.c.l.bf16 %v366
    %v628 = vunpack.c.h.bf16 %v366
    %v629 = vunpack.c.l.bf16 %v367
    %v630 = vunpack.c.h.bf16 %v367
    %v631 = vunpack.c.l.bf16 %v368
    %v632 = vunpack.c.h.bf16 %v368
    %v633 = vunpack.c.l.bf16 %v369
    %v634 = vunpack.c.h.bf16 %v369
    %v635 = vunpack.c.l.bf16 %v370
    %v636 = vunpack.c.h.bf16 %v370
    %v637 = vunpack.c.l.bf16 %v371
    %v638 = vunpack.c.h.bf16 %v371
    %v639 = vunpack.c.l.bf16 %v372
    %v640 = vunpack.c.h.bf16 %v372
    %v641 = vunpack.c.l.bf16 %v373
    %v642 = vunpack.c.h.bf16 %v373
    %v643 = vunpack.c.l.bf16 %v374
    %v644 = vunpack.c.h.bf16 %v374
    %v645 = vunpack.c.l.bf16 %v375
    %v646 = vunpack.c.h.bf16 %v375
    %v647 = vunpack.c.l.bf16 %v376
    %v648 = vunpack.c.h.bf16 %v376
    %v649 = vunpack.c.l.bf16 %v377
    %v650 = vunpack.c.h.bf16 %v377
    %v651 = vunpack.c.l.bf16 %v378
    %v652 = vunpack.c.h.bf16 %v378
    %v653 = vunpack.c.l.bf16 %v379
    %v654 = vunpack.c.h.bf16 %v379
    %v655 = vunpack.c.l.bf16 %v380
    %v656 = vunpack.c.h.bf16 %v380
    %v657 = vunpack.c.l.bf16 %v381
    %v658 = vunpack.c.h.bf16 %v381
    %v659 = vunpack.c.l.bf16 %v382
    %v660 = vunpack.c.h.bf16 %v382
    %v661 = vunpack.c.l.bf16 %v383
    %v662 = vunpack.c.h.bf16 %v383
    %v663 = vunpack.c.l.bf16 %v384
    %v664 = vunpack.c.h.bf16 %v384
    %v665 = vunpack.c.l.bf16 %v385
    %v666 = vunpack.c.h.bf16 %v385
    %v667 = vunpack.c.l.bf16 %v386
    %v668 = vunpack.c.h.bf16 %v386
    %v669 = vunpack.c.l.bf16 %v387
    %v670 = vunpack.c.h.bf16 %v387
    %v671 = vunpack.c.l.bf16 %v388
    %v672 = vunpack.c.h.bf16 %v388
    %v673 = vunpack.c.l.bf16 %v389
    %v674 = vunpack.c.h.bf16 %v389
    %v675 = vunpack.c.l.bf16 %v390
    %v676 = vunpack.c.h.bf16 %v390
    %v677 = vunpack.c.l.bf16 %v391
    %v678 = vunpack.c.h.bf16 %v391
    %v679 = vunpack.c.l.bf16 %v392
    %v680 = vunpack.c.h.bf16 %v392
    %v681 = vunpack.c.l.bf16 %v393
    %v682 = vunpack.c.h.bf16 %v393
    %v683 = vunpack.c.l.bf16 %v394
    %v684 = vunpack.c.h.bf16 %v394
    %v685 = vunpack.c.l.bf16 %v395
    %v686 = vunpack.c.h.bf16 %v395
    %v687 = vunpack.c.l.bf16 %v396
    %v688 = vunpack.c.h.bf16 %v396
    %v689 = vunpack.c.l.bf16 %v397
    %v690 = vunpack.c.h.bf16 %v397
    %v691 = vunpack.c.l.bf16 %v398
    %v692 = vunpack.c.h.bf16 %v398
    %v693 = vunpack.c.l.bf16 %v399
    %v694 = vunpack.c.h.bf16 %v399
    %v695 = vunpack.c.l.bf16 %v400
    %v696 = vunpack.c.h.bf16 %v400
    %v697 = vunpack.c.l.bf16 %v401
    %v698 = vunpack.c.h.bf16 %v401
    %v699 = vunpack.c.l.bf16 %v402
    %v700 = vunpack.c.h.bf16 %v402
    %v701 = vunpack.c.l.bf16 %v403
    %v702 = vunpack.c.h.bf16 %v403
    %v703 = vunpack.c.l.bf16 %v404
    %v704 = vunpack.c.h.bf16 %v404
    %v705 = vunpack.c.l.bf16 %v405
    %v706 = vunpack.c.h.bf16 %v405
    %v707 = vunpack.c.l.bf16 %v406
    %v708 = vunpack.c.h.bf16 %v406
    %v709 = vunpack.c.l.bf16 %v407
    %v710 = vunpack.c.h.bf16 %v407
    %v711 = vunpack.c.l.bf16 %v408
    %v712 = vunpack.c.h.bf16 %v408
    %v713 = vunpack.c.l.bf16 %v409
    %v714 = vunpack.c.h.bf16 %v409
    %v715 = vunpack.c.l.bf16 %v410
    %v716 = vunpack.c.h.bf16 %v410
    %v717 = vunpack.c.l.bf16 %v411
    %v718 = vunpack.c.h.bf16 %v411
    %v719 = vunpack.c.l.bf16 %v412
    %v720 = vunpack.c.h.bf16 %v412
    %v721 = vunpack.c.l.bf16 %v413
    %v722 = vunpack.c.h.bf16 %v413
    %v723 = vunpack.c.l.bf16 %v414
    %v724 = vunpack.c.h.bf16 %v414
    %v725 = vunpack.c.l.bf16 %v415
    %v726 = vunpack.c.h.bf16 %v415
    %v727 = vunpack.c.l.bf16 %v416
    %v728 = vunpack.c.h.bf16 %v416
    %v729 = vunpack.c.l.bf16 %v417
    %v730 = vunpack.c.h.bf16 %v417
    %v731 = vunpack.c.l.bf16 %v418
    %v732 = vunpack.c.h.bf16 %v418
    %v733 = vunpack.c.l.bf16 %v419
    %v734 = vunpack.c.h.bf16 %v419
    %v735 = vunpack.c.l.bf16 %v420
    %v736 = vunpack.c.h.bf16 %v420
    %v737 = vunpack.c.l.bf16 %v421
    %v738 = vunpack.c.h.bf16 %v421
    %v739 = vunpack.c.l.bf16 %v422
    %v740 = vunpack.c.h.bf16 %v422
    %v741 = vunpack.c.l.bf16 %v423
    %v742 = vunpack.c.h.bf16 %v423
    %v743 = vunpack.c.l.bf16 %v424
    %v744 = vunpack.c.h.bf16 %v424
    %v745 = vunpack.c.l.bf16 %v425
    %v746 = vunpack.c.h.bf16 %v425
    %v747 = vunpack.c.l.bf16 %v426
    %v748 = vunpack.c.h.bf16 %v426
    %v749 = vunpack.c.l.bf16 %v427
    %v750 = vunpack.c.h.bf16 %v427
    %v751 = vunpack.c.l.bf16 %v428
    %v752 = vunpack.c.h.bf16 %v428
    %v753 = vunpack.c.l.bf16 %v429
    %v754 = vunpack.c.h.bf16 %v429
    %v755 = vunpack.c.l.bf16 %v430
    %v756 = vunpack.c.h.bf16 %v430
    %v757 = vunpack.c.l.bf16 %v431
    %v758 = vunpack.c.h.bf16 %v431
    %v759 = vunpack.c.l.bf16 %v432
    %v760 = vunpack.c.h.bf16 %v432
    %v761 = vunpack.c.l.bf16 %v433
    %v762 = vunpack.c.h.bf16 %v433
    %v763 = vunpack.c.l.bf16 %v434
    %v764 = vunpack.c.h.bf16 %v434
    %v765 = vunpack.c.l.bf16 %v435
    %v766 = vunpack.c.h.bf16 %v435
    %v767 = vunpack.c.l.bf16 %v436
    %v768 = vunpack.c.h.bf16 %v436
    %v769 = vunpack.c.l.bf16 %v437
    %v770 = vunpack.c.h.bf16 %v437
    %v771 = vunpack.c.l.bf16 %v438
    %v772 = vunpack.c.h.bf16 %v438
    %v773 = vunpack.c.l.bf16 %v439
    %v774 = vunpack.c.h.bf16 %v439
    %v775 = vunpack.c.l.bf16 %v440
    %v776 = vunpack.c.h.bf16 %v440
    %v777 = vunpack.c.l.bf16 %v441
    %v778 = vunpack.c.h.bf16 %v441
    %v779 = vunpack.c.l.bf16 %v442
    %v780 = vunpack.c.h.bf16 %v442
    %v781 = vunpack.c.l.bf16 %v443
    %v782 = vunpack.c.h.bf16 %v443
    %v783 = vunpack.c.l.bf16 %v444
    %v784 = vunpack.c.h.bf16 %v444
    %v785 = vunpack.c.l.bf16 %v445
    %v786 = vunpack.c.h.bf16 %v445
    %v787 = vunpack.c.l.bf16 %v446
    %v788 = vunpack.c.h.bf16 %v446
    %v789 = vunpack.c.l.bf16 %v447
    %v790 = vunpack.c.h.bf16 %v447
    %v791 = vunpack.c.l.bf16 %v448
    %v792 = vunpack.c.h.bf16 %v448
    %v793 = vunpack.c.l.bf16 %v449
    %v794 = vunpack.c.h.bf16 %v449
    %v795 = vunpack.c.l.bf16 %v450
    %v796 = vunpack.c.h.bf16 %v450
    %v797 = vunpack.c.l.bf16 %v451
    %v798 = vunpack.c.h.bf16 %v451
    %v799 = vunpack.c.l.bf16 %v452
    %v800 = vunpack.c.h.bf16 %v452
    %v801 = vunpack.c.l.bf16 %v453
    %v802 = vunpack.c.h.bf16 %v453
    %v803 = vunpack.c.l.bf16 %v454
    %v804 = vunpack.c.h.bf16 %v454
    %v805 = vunpack.c.l.bf16 %v455
    %v806 = vunpack.c.h.bf16 %v455
    %v807 = vunpack.c.l.bf16 %v456
    %v808 = vunpack.c.h.bf16 %v456
    %v809 = vunpack.c.l.bf16 %v457
    %v810 = vunpack.c.h.bf16 %v457
    %v811 = vunpack.c.l.bf16 %v458
    %v812 = vunpack.c.h.bf16 %v458
    %v813 = vunpack.c.l.bf16 %v459
    %v814 = vunpack.c.h.bf16 %v459
    %v815 = vunpack.c.l.bf16 %v460
    %v816 = vunpack.c.h.bf16 %v460
    %v817 = vunpack.c.l.bf16 %v461
    %v818 = vunpack.c.h.bf16 %v461
    %v819 = vunpack.c.l.bf16 %v462
    %v820 = vunpack.c.h.bf16 %v462
    %v821 = vunpack.c.l.bf16 %v463
    %v822 = vunpack.c.h.bf16 %v463
    %v823 = vunpack.c.l.bf16 %v464
    %v824 = vunpack.c.h.bf16 %v464
    %v825 = vunpack.c.l.bf16 %v465
    %v826 = vunpack.c.h.bf16 %v465
    %v827 = vunpack.c.l.bf16 %v466
    %v828 = vunpack.c.h.bf16 %v466
    %v829 = vunpack.c.l.bf16 %v467
    %v830 = vunpack.c.h.bf16 %v467
    %v831 = vunpack.c.l.bf16 %v468
    %v832 = vunpack.c.h.bf16 %v468
    %v833 = vunpack.c.l.bf16 %v469
    %v834 = vunpack.c.h.bf16 %v469
    %v835 = vunpack.c.l.bf16 %v470
    %v836 = vunpack.c.h.bf16 %v470
    %v837 = vunpack.c.l.bf16 %v471
    %v838 = vunpack.c.h.bf16 %v471
    %v839 = vunpack.c.l.bf16 %v472
    %v840 = vunpack.c.h.bf16 %v472
    %v841 = vunpack.c.l.bf16 %v473
    %v842 = vunpack.c.h.bf16 %v473
    %v843 = vunpack.c.l.bf16 %v474
    %v844 = vunpack.c.h.bf16 %v474
    %v845 = vunpack.c.l.bf16 %v475
    %v846 = vunpack.c.h.bf16 %v475
    %v847 = vunpack.c.l.bf16 %v476
    %v848 = vunpack.c.h.bf16 %v476
    %v849 = vunpack.c.l.bf16 %v477
    %v850 = vunpack.c.h.bf16 %v477
    %v851 = vunpack.c.l.bf16 %v478
    %v852 = vunpack.c.h.bf16 %v478
    %v853 = vunpack.c.l.bf16 %v479
    %v854 = vunpack.c.h.bf16 %v479
    %v855 = vunpack.c.l.bf16 %v480
    %v856 = vunpack.c.h.bf16 %v480
    %v857 = vunpack.c.l.bf16 %v481
    %v858 = vunpack.c.h.bf16 %v481
    %v859 = vunpack.c.l.bf16 %v482
    %v860 = vunpack.c.h.bf16 %v482
    %v861 = vunpack.c.l.bf16 %v483
    %v862 = vunpack.c.h.bf16 %v483
    %v863 = vunpack.c.l.bf16 %v484
    %v864 = vunpack.c.h.bf16 %v484
    %v865 = vunpack.c.l.bf16 %v485
    %v866 = vunpack.c.h.bf16 %v485
    %v867 = vunpack.c.l.bf16 %v486
    %v868 = vunpack.c.h.bf16 %v486
    %v869 = vunpack.c.l.bf16 %v487
    %v870 = vunpack.c.h.bf16 %v487
    %v871 = vunpack.c.l.bf16 %v488
    %v872 = vunpack.c.h.bf16 %v488
    %v873 = vunpack.c.l.bf16 %v489
    %v874 = vunpack.c.h.bf16 %v489
    %v875 = vunpack.c.l.bf16 %v490
    %v876 = vunpack.c.h.bf16 %v490
    %v877 = vunpack.c.l.bf16 %v491
    %v878 = vunpack.c.h.bf16 %v491
    %v879 = vunpack.c.l.bf16 %v492
    %v880 = vunpack.c.h.bf16 %v492
    %v881 = vunpack.c.l.bf16 %v493
    %v882 = vunpack.c.h.bf16 %v493
    %v883 = vunpack.c.l.bf16 %v494
    %v884 = vunpack.c.h.bf16 %v494
    %v885 = vunpack.c.l.bf16 %v495
    %v886 = vunpack.c.h.bf16 %v495
    %v887 = vunpack.c.l.bf16 %v496
    %v888 = vunpack.c.h.bf16 %v496
    %v889 = vunpack.c.l.bf16 %v497
    %v890 = vunpack.c.h.bf16 %v497
    %v891 = vunpack.c.l.bf16 %v498
    %v892 = vunpack.c.h.bf16 %v498
    %v893 = vunpack.c.l.bf16 %v499
    %v894 = vunpack.c.h.bf16 %v499
    %v895 = vunpack.c.l.bf16 %v500
    %v896 = vunpack.c.h.bf16 %v500
    %v897 = vunpack.c.l.bf16 %v501
    %v898 = vunpack.c.h.bf16 %v501
    %v899 = vunpack.c.l.bf16 %v502
    %v900 = vunpack.c.h.bf16 %v502
    %v901 = vunpack.c.l.bf16 %v503
    %v902 = vunpack.c.h.bf16 %v503
    %v903 = vunpack.c.l.bf16 %v504
    %v904 = vunpack.c.h.bf16 %v504
    %v905 = vunpack.c.l.bf16 %v505
    %v906 = vunpack.c.h.bf16 %v505
    %v907 = vunpack.c.l.bf16 %v506
    %v908 = vunpack.c.h.bf16 %v506
    %v909 = vunpack.c.l.bf16 %v507
    %v910 = vunpack.c.h.bf16 %v507
    %v911 = vunpack.c.l.bf16 %v508
    %v912 = vunpack.c.h.bf16 %v508
    %v913 = vunpack.c.l.bf16 %v509
    %v914 = vunpack.c.h.bf16 %v509
    %v915 = vunpack.c.l.bf16 %v510
    %v916 = vunpack.c.h.bf16 %v510
    %v917 = vunpack.c.l.bf16 %v511
    %v918 = vunpack.c.h.bf16 %v511
    %v919 = vunpack.c.l.bf16 %v512
    %v920 = vunpack.c.h.bf16 %v512
    %v921 = vunpack.c.l.bf16 %v513
    %v922 = vunpack.c.h.bf16 %v513
    %v923 = vunpack.c.l.bf16 %v514
    %v924 = vunpack.c.h.bf16 %v514
    %v925 = vunpack.c.l.bf16 %v515
    %v926 = vunpack.c.h.bf16 %v515
    %v927 = vunpack.c.l.bf16 %v516
    %v928 = vunpack.c.h.bf16 %v516
    %v929 = vunpack.c.l.bf16 %v517
    %v930 = vunpack.c.h.bf16 %v517
    %v931 = vunpack.c.l.bf16 %v518
    %v932 = vunpack.c.h.bf16 %v518
    %v933 = vunpack.c.l.bf16 %v519
    %v934 = vunpack.c.h.bf16 %v519
    %v935 = vunpack.c.l.bf16 %v520
    %v936 = vunpack.c.h.bf16 %v520
    %v937 = vunpack.c.l.bf16 %v521
    %v938 = vunpack.c.h.bf16 %v521
    %v939 = vunpack.c.l.bf16 %v522
    %v940 = vunpack.c.h.bf16 %v522
    %v941 = vunpack.c.l.bf16 %v523
    %v942 = vunpack.c.h.bf16 %v523
    %v943 = vunpack.c.l.bf16 %v524
    %v944 = vunpack.c.h.bf16 %v524
    %v945 = vunpack.c.l.bf16 %v525
    %v946 = vunpack.c.h.bf16 %v525
    %v947 = vunpack.c.l.bf16 %v526
    %v948 = vunpack.c.h.bf16 %v526
    %v949 = vunpack.c.l.bf16 %v527
    %v950 = vunpack.c.h.bf16 %v527
    %v951 = vunpack.c.l.bf16 %v528
    %v952 = vunpack.c.h.bf16 %v528
    %v953 = vunpack.c.l.bf16 %v529
    %v954 = vunpack.c.h.bf16 %v529
    %v955 = vunpack.c.l.bf16 %v530
    %v956 = vunpack.c.h.bf16 %v530
    %v957 = vunpack.c.l.bf16 %v531
    %v958 = vunpack.c.h.bf16 %v531
    %v959 = vunpack.c.l.bf16 %v532
    %v960 = vunpack.c.h.bf16 %v532
    %v961 = vunpack.c.l.bf16 %v533
    %v962 = vunpack.c.h.bf16 %v533
    %v963 = vunpack.c.l.bf16 %v534
    %v964 = vunpack.c.h.bf16 %v534
    %v965 = vunpack.c.l.bf16 %v535
    %v966 = vunpack.c.h.bf16 %v535
    %v967 = vunpack.c.l.bf16 %v536
    %v968 = vunpack.c.h.bf16 %v536
    %v969 = vunpack.c.l.bf16 %v537
    %v970 = vunpack.c.h.bf16 %v537
    %v971 = vunpack.c.l.bf16 %v538
    %v972 = vunpack.c.h.bf16 %v538
    %v973 = vunpack.c.l.bf16 %v539
    %v974 = vunpack.c.h.bf16 %v539
    %v975 = vunpack.c.l.bf16 %v540
    %v976 = vunpack.c.h.bf16 %v540
    %v977 = vunpack.c.l.bf16 %v541
    %v978 = vunpack.c.h.bf16 %v541
    %v979 = vunpack.c.l.bf16 %v542
    %v980 = vunpack.c.h.bf16 %v542
    %v981 = vunpack.c.l.bf16 %v543
    %v982 = vunpack.c.h.bf16 %v543
    %v983 = vunpack.c.l.bf16 %v544
    %v984 = vunpack.c.h.bf16 %v544
    %v985 = vunpack.c.l.bf16 %v545
    %v986 = vunpack.c.h.bf16 %v545
    %v987 = vunpack.c.l.bf16 %v546
    %v988 = vunpack.c.h.bf16 %v546
    %v989 = vunpack.c.l.bf16 %v547
    %v990 = vunpack.c.h.bf16 %v547
    %v991 = vunpack.c.l.bf16 %v548
    %v992 = vunpack.c.h.bf16 %v548
    %v993 = vunpack.c.l.bf16 %v549
    %v994 = vunpack.c.h.bf16 %v549
    %v995 = vunpack.c.l.bf16 %v550
    %v996 = vunpack.c.h.bf16 %v550
    %v997 = vunpack.c.l.bf16 %v551
    %v998 = vunpack.c.h.bf16 %v551
    %v999 = vunpack.c.l.bf16 %v552
    %v1000 = vunpack.c.h.bf16 %v552
    %v1001 = vunpack.c.l.bf16 %v553
    %v1002 = vunpack.c.h.bf16 %v553
    %v1003 = vunpack.c.l.bf16 %v554
    %v1004 = vunpack.c.h.bf16 %v554
    %v1005 = vunpack.c.l.bf16 %v555
    %v1006 = vunpack.c.h.bf16 %v555
    %v1007 = vunpack.c.l.bf16 %v556
    %v1008 = vunpack.c.h.bf16 %v556
    %v1009 = vunpack.c.l.bf16 %v557
    %v1010 = vunpack.c.h.bf16 %v557
    %v1011 = vunpack.c.l.bf16 %v558
    %v1012 = vunpack.c.h.bf16 %v558
    %v1013 = vunpack.c.l.bf16 %v559
    %v1014 = vunpack.c.h.bf16 %v559
    %v1015 = vunpack.c.l.bf16 %v560
    %v1016 = vunpack.c.h.bf16 %v560
    %v1017 = vunpack.c.l.bf16 %v561
    %v1018 = vunpack.c.h.bf16 %v561
    %v1019 = vunpack.c.l.bf16 %v562
    %v1020 = vunpack.c.h.bf16 %v562
    %v1021 = vunpack.c.l.bf16 %v563
    %v1022 = vunpack.c.h.bf16 %v563
    %v1023 = vunpack.c.l.bf16 %v564
    %v1024 = vunpack.c.h.bf16 %v564
    %v1025 = vunpack.c.l.bf16 %v565
    %v1026 = vunpack.c.h.bf16 %v565
    %v1027 = vunpack.c.l.bf16 %v566
    %v1028 = vunpack.c.h.bf16 %v566
    %v1029 = vunpack.c.l.bf16 %v567
    %v1030 = vunpack.c.h.bf16 %v567
    %v1031 = vunpack.c.l.bf16 %v568
    %v1032 = vunpack.c.h.bf16 %v568
    %v1033 = vunpack.c.l.bf16 %v569
    %v1034 = vunpack.c.h.bf16 %v569
    %v1035 = vunpack.c.l.bf16 %v570
    %v1036 = vunpack.c.h.bf16 %v570
    %v1037 = vunpack.c.l.bf16 %v571
    %v1038 = vunpack.c.h.bf16 %v571
    %v1039 = vunpack.c.l.bf16 %v572
    %v1040 = vunpack.c.h.bf16 %v572
    %v1041 = vunpack.c.l.bf16 %v573
    %v1042 = vunpack.c.h.bf16 %v573
    %v1043 = vunpack.c.l.bf16 %v574
    %v1044 = vunpack.c.h.bf16 %v574
    %v1045 = vunpack.c.l.bf16 %v575
    %v1046 = vunpack.c.h.bf16 %v575
    %v1047 = vunpack.c.l.bf16 %v576
    %v1048 = vunpack.c.h.bf16 %v576
    %v1049 = vunpack.c.l.bf16 %v577
    %v1050 = vunpack.c.h.bf16 %v577
    %v1051 = vunpack.c.l.bf16 %v578
    %v1052 = vunpack.c.h.bf16 %v578
    %v1053 = vunpack.c.l.bf16 %v579
    %v1054 = vunpack.c.h.bf16 %v579
    %v1055 = vunpack.c.l.bf16 %v580
    %v1056 = vunpack.c.h.bf16 %v580
    %v1057 = vunpack.c.l.bf16 %v581
    %v1058 = vunpack.c.h.bf16 %v581
    %v1059 = vunpack.c.l.bf16 %v582
    %v1060 = vunpack.c.h.bf16 %v582
    %v1061 = vunpack.c.l.bf16 %v583
    %v1062 = vunpack.c.h.bf16 %v583
    %v1063 = vunpack.c.l.bf16 %v584
    %v1064 = vunpack.c.h.bf16 %v584
    %v1065 = vunpack.c.l.bf16 %v585
    %v1066 = vunpack.c.h.bf16 %v585
    %v1067 = vunpack.c.l.bf16 %v586
    %v1068 = vunpack.c.h.bf16 %v586
    %v1069 = vunpack.c.l.bf16 %v587
    %v1070 = vunpack.c.h.bf16 %v587
    %v1071 = vunpack.c.l.bf16 %v588
    %v1072 = vunpack.c.h.bf16 %v588
    %v1073 = vunpack.c.l.bf16 %v589
    %v1074 = vunpack.c.h.bf16 %v589
    %v1075 = vunpack.c.l.bf16 %v590
    %v1076 = vunpack.c.h.bf16 %v590
    %v1077 = vunpack.c.l.bf16 %v591
    %v1078 = vunpack.c.h.bf16 %v591
    %v1079 = vunpack.c.l.bf16 %v592
    %v1080 = vunpack.c.h.bf16 %v592
    %v1081 = vunpack.c.l.bf16 %v593
    %v1082 = vunpack.c.h.bf16 %v593
    %v1083 = vunpack.c.l.bf16 %v594
    %v1084 = vunpack.c.h.bf16 %v594
    %v1085 = vunpack.c.l.bf16 %v595
    %v1086 = vunpack.c.h.bf16 %v595
    %v1087 = vunpack.c.l.bf16 %v596
    %v1088 = vunpack.c.h.bf16 %v596
    %v1089 = vunpack.c.l.bf16 %v597
    %v1090 = vunpack.c.h.bf16 %v597
    %v1091 = vunpack.c.l.bf16 %v598
    %v1092 = vunpack.c.h.bf16 %v598
    %v1093 = vunpack.c.l.bf16 %v599
    %v1094 = vunpack.c.h.bf16 %v599
    %v1095 = vunpack.c.l.bf16 %v600
    %v1096 = vunpack.c.h.bf16 %v600
    %v1097 = vunpack.c.l.bf16 %v601
    %v1098 = vunpack.c.h.bf16 %v601
    %v1099 = vunpack.c.l.bf16 %v602
    %v1100 = vunpack.c.h.bf16 %v602
    %v1101 = vunpack.c.l.bf16 %v603
    %v1102 = vunpack.c.h.bf16 %v603
    %v1103 = vunpack.c.l.bf16 %v604
    %v1104 = vunpack.c.h.bf16 %v604
    %v1105 = vunpack.c.l.bf16 %v605
    %v1106 = vunpack.c.h.bf16 %v605
    %v1107 = vunpack.c.l.bf16 %v606
    %v1108 = vunpack.c.h.bf16 %v606
    %v1109 = vunpack.c.l.bf16 %v607
    %v1110 = vunpack.c.h.bf16 %v607
    %v1111 = vunpack.c.l.bf16 %v608
    %v1112 = vunpack.c.h.bf16 %v608
    %v1113 = vunpack.c.l.bf16 %v609
    %v1114 = vunpack.c.h.bf16 %v609
    %v1115 = vunpack.c.l.bf16 %v610
    %v1116 = vunpack.c.h.bf16 %v610
    %v1117 = vunpack.c.l.bf16 %v611
    %v1118 = vunpack.c.h.bf16 %v611
    %v1119 = vunpack.c.l.bf16 %v612
    %v1120 = vunpack.c.h.bf16 %v612
    %v1121 = vunpack.c.l.bf16 %v613
    %v1122 = vunpack.c.h.bf16 %v613
    %v1123 = vunpack.c.l.bf16 %v614
    %v1124 = vunpack.c.h.bf16 %v614
    %v1125 = vunpack.c.l.bf16 %v615
    %v1126 = vunpack.c.h.bf16 %v615
    %v1127 = vunpack.c.l.bf16 %v616
    %v1128 = vunpack.c.h.bf16 %v616
    %v1129 = vld [vmem:[#allocation11 + $0x8] sm:$0xf]
    %v1131 = vperm.slane %v1129, 0
    %v1132 = vperm.slane %v1129, 1
    %v1133 = vperm.slane %v1129, 2
    %v1134 = vperm.slane %v1129, 3
    %1139 = vmatpush.msra.mxu0 %v677
    %1140 = vmatpush.msra.mxu0 %v673
    %1141 = vmatpush.msra.mxu0 %v669
    %1142 = vmatpush.msra.mxu0 %v665
    %1143 = vmatpush.msra.mxu0 %v661
    %1144 = vmatpush.msra.mxu0 %v657
    %1145 = vmatpush.msra.mxu0 %v653
    %1146 = vmatpush.msra.mxu0 %v649
    %1147 = vmatpush.msra.mxu0 %v645
    %1148 = vmatpush.msra.mxu0 %v641
    %1149 = vmatpush.msra.mxu0 %v637
    %1150 = vmatpush.msra.mxu0 %v633
    %1151 = vmatpush.msra.mxu0 %v629
    %1152 = vmatpush.msra.mxu0 %v625
    %1153 = vmatpush.msra.mxu0 %v621
    %1154 = vmatpush.msra.mxu0 %v617
    %1155 = vmatmul.f32.gmra.mxu0 %v349
    %v1156 = vpop.f32.mrf.mxu0
    %v1157 = vadd.f32 %v1131, %v1156
    %1158 = vdwg.mxu0
    %1159 = vmatpush.msra.mxu0 %v741
    %1160 = vmatpush.msra.mxu0 %v737
    %1161 = vmatpush.msra.mxu0 %v733
    %1162 = vmatpush.msra.mxu0 %v729
    %1163 = vmatpush.msra.mxu0 %v725
    %1164 = vmatpush.msra.mxu0 %v721
    %1165 = vmatpush.msra.mxu0 %v717
    %1166 = vmatpush.msra.mxu0 %v713
    %1167 = vmatpush.msra.mxu0 %v709
    %1168 = vmatpush.msra.mxu0 %v705
    %1169 = vmatpush.msra.mxu0 %v701
    %1170 = vmatpush.msra.mxu0 %v697
    %1171 = vmatpush.msra.mxu0 %v693
    %1172 = vmatpush.msra.mxu0 %v689
    %1173 = vmatpush.msra.mxu0 %v685
    %1174 = vmatpush.msra.mxu0 %v681
    %1175 = vmatmul.f32.gmra.mxu0 %v350
    %v1176 = vpop.f32.mrf.mxu0
    %v1177 = vadd.f32 %v1157, %v1176
    %1178 = vdwg.mxu0
    %1179 = vmatpush.msra.mxu0 %v805
    %1180 = vmatpush.msra.mxu0 %v801
    %1181 = vmatpush.msra.mxu0 %v797
    %1182 = vmatpush.msra.mxu0 %v793
    %1183 = vmatpush.msra.mxu0 %v789
    %1184 = vmatpush.msra.mxu0 %v785
    %1185 = vmatpush.msra.mxu0 %v781
    %1186 = vmatpush.msra.mxu0 %v777
    %1187 = vmatpush.msra.mxu0 %v773
    %1188 = vmatpush.msra.mxu0 %v769
    %1189 = vmatpush.msra.mxu0 %v765
    %1190 = vmatpush.msra.mxu0 %v761
    %1191 = vmatpush.msra.mxu0 %v757
    %1192 = vmatpush.msra.mxu0 %v753
    %1193 = vmatpush.msra.mxu0 %v749
    %1194 = vmatpush.msra.mxu0 %v745
    %1195 = vmatmul.f32.gmra.mxu0 %v351
    %v1196 = vpop.f32.mrf.mxu0
    %v1197 = vadd.f32 %v1177, %v1196
    %1198 = vdwg.mxu0
    %1199 = vmatpush.msra.mxu0 %v869
    %1200 = vmatpush.msra.mxu0 %v865
    %1201 = vmatpush.msra.mxu0 %v861
    %1202 = vmatpush.msra.mxu0 %v857
    %1203 = vmatpush.msra.mxu0 %v853
    %1204 = vmatpush.msra.mxu0 %v849
    %1205 = vmatpush.msra.mxu0 %v845
    %1206 = vmatpush.msra.mxu0 %v841
    %1207 = vmatpush.msra.mxu0 %v837
    %1208 = vmatpush.msra.mxu0 %v833
    %1209 = vmatpush.msra.mxu0 %v829
    %1210 = vmatpush.msra.mxu0 %v825
    %1211 = vmatpush.msra.mxu0 %v821
    %1212 = vmatpush.msra.mxu0 %v817
    %1213 = vmatpush.msra.mxu0 %v813
    %1214 = vmatpush.msra.mxu0 %v809
    %1215 = vmatmul.f32.gmra.mxu0 %v352
    %v1216 = vpop.f32.mrf.mxu0
    %v1217 = vadd.f32 %v1197, %v1216
    %1218 = vdwg.mxu0
    %1219 = vmatpush.msra.mxu0 %v933
    %1220 = vmatpush.msra.mxu0 %v929
    %1221 = vmatpush.msra.mxu0 %v925
    %1222 = vmatpush.msra.mxu0 %v921
    %1223 = vmatpush.msra.mxu0 %v917
    %1224 = vmatpush.msra.mxu0 %v913
    %1225 = vmatpush.msra.mxu0 %v909
    %1226 = vmatpush.msra.mxu0 %v905
    %1227 = vmatpush.msra.mxu0 %v901
    %1228 = vmatpush.msra.mxu0 %v897
    %1229 = vmatpush.msra.mxu0 %v893
    %1230 = vmatpush.msra.mxu0 %v889
    %1231 = vmatpush.msra.mxu0 %v885
    %1232 = vmatpush.msra.mxu0 %v881
    %1233 = vmatpush.msra.mxu0 %v877
    %1234 = vmatpush.msra.mxu0 %v873
    %1235 = vmatmul.f32.gmra.mxu0 %v353
    %v1236 = vpop.f32.mrf.mxu0
    %v1237 = vadd.f32 %v1217, %v1236
    %1238 = vdwg.mxu0
    %1239 = vmatpush.msra.mxu0 %v997
    %1240 = vmatpush.msra.mxu0 %v993
    %1241 = vmatpush.msra.mxu0 %v989
    %1242 = vmatpush.msra.mxu0 %v985
    %1243 = vmatpush.msra.mxu0 %v981
    %1244 = vmatpush.msra.mxu0 %v977
    %1245 = vmatpush.msra.mxu0 %v973
    %1246 = vmatpush.msra.mxu0 %v969
    %1247 = vmatpush.msra.mxu0 %v965
    %1248 = vmatpush.msra.mxu0 %v961
    %1249 = vmatpush.msra.mxu0 %v957
    %1250 = vmatpush.msra.mxu0 %v953
    %1251 = vmatpush.msra.mxu0 %v949
    %1252 = vmatpush.msra.mxu0 %v945
    %1253 = vmatpush.msra.mxu0 %v941
    %1254 = vmatpush.msra.mxu0 %v937
    %1255 = vmatmul.f32.gmra.mxu0 %v354
    %v1256 = vpop.f32.mrf.mxu0
    %v1257 = vadd.f32 %v1237, %v1256
    %1258 = vdwg.mxu0
    %1259 = vmatpush.msra.mxu0 %v1061
    %1260 = vmatpush.msra.mxu0 %v1057
    %1261 = vmatpush.msra.mxu0 %v1053
    %1262 = vmatpush.msra.mxu0 %v1049
    %1263 = vmatpush.msra.mxu0 %v1045
    %1264 = vmatpush.msra.mxu0 %v1041
    %1265 = vmatpush.msra.mxu0 %v1037
    %1266 = vmatpush.msra.mxu0 %v1033
    %1267 = vmatpush.msra.mxu0 %v1029
    %1268 = vmatpush.msra.mxu0 %v1025
    %1269 = vmatpush.msra.mxu0 %v1021
    %1270 = vmatpush.msra.mxu0 %v1017
    %1271 = vmatpush.msra.mxu0 %v1013
    %1272 = vmatpush.msra.mxu0 %v1009
    %1273 = vmatpush.msra.mxu0 %v1005
    %1274 = vmatpush.msra.mxu0 %v1001
    %1275 = vmatmul.f32.gmra.mxu0 %v355
    %v1276 = vpop.f32.mrf.mxu0
    %v1277 = vadd.f32 %v1257, %v1276
    %1278 = vdwg.mxu0
    %1279 = vmatpush.msra.mxu0 %v1125
    %1280 = vmatpush.msra.mxu0 %v1121
    %1281 = vmatpush.msra.mxu0 %v1117
    %1282 = vmatpush.msra.mxu0 %v1113
    %1283 = vmatpush.msra.mxu0 %v1109
    %1284 = vmatpush.msra.mxu0 %v1105
    %1285 = vmatpush.msra.mxu0 %v1101
    %1286 = vmatpush.msra.mxu0 %v1097
    %1287 = vmatpush.msra.mxu0 %v1093
    %1288 = vmatpush.msra.mxu0 %v1089
    %1289 = vmatpush.msra.mxu0 %v1085
    %1290 = vmatpush.msra.mxu0 %v1081
    %1291 = vmatpush.msra.mxu0 %v1077
    %1292 = vmatpush.msra.mxu0 %v1073
    %1293 = vmatpush.msra.mxu0 %v1069
    %1294 = vmatpush.msra.mxu0 %v1065
    %1295 = vmatmul.f32.gmra.mxu0 %v356
    %v1296 = vpop.f32.mrf.mxu0
    %v1297 = vadd.f32 %v1277, %v1296
    %1298 = vdwg.mxu0
    %1299 = vmatpush.msra.mxu0 %v678
    %1300 = vmatpush.msra.mxu0 %v674
    %1301 = vmatpush.msra.mxu0 %v670
    %1302 = vmatpush.msra.mxu0 %v666
    %1303 = vmatpush.msra.mxu0 %v662
    %1304 = vmatpush.msra.mxu0 %v658
    %1305 = vmatpush.msra.mxu0 %v654
    %1306 = vmatpush.msra.mxu0 %v650
    %1307 = vmatpush.msra.mxu0 %v646
    %1308 = vmatpush.msra.mxu0 %v642
    %1309 = vmatpush.msra.mxu0 %v638
    %1310 = vmatpush.msra.mxu0 %v634
    %1311 = vmatpush.msra.mxu0 %v630
    %1312 = vmatpush.msra.mxu0 %v626
    %1313 = vmatpush.msra.mxu0 %v622
    %1314 = vmatpush.msra.mxu0 %v618
    %1315 = vmatmul.f32.gmra.mxu0 %v349
    %v1316 = vpop.f32.mrf.mxu0
    %v1317 = vadd.f32 %v1132, %v1316
    %1318 = vdwg.mxu0
    %1319 = vmatpush.msra.mxu0 %v742
    %1320 = vmatpush.msra.mxu0 %v738
    %1321 = vmatpush.msra.mxu0 %v734
    %1322 = vmatpush.msra.mxu0 %v730
    %1323 = vmatpush.msra.mxu0 %v726
    %1324 = vmatpush.msra.mxu0 %v722
    %1325 = vmatpush.msra.mxu0 %v718
    %1326 = vmatpush.msra.mxu0 %v714
    %1327 = vmatpush.msra.mxu0 %v710
    %1328 = vmatpush.msra.mxu0 %v706
    %1329 = vmatpush.msra.mxu0 %v702
    %1330 = vmatpush.msra.mxu0 %v698
    %1331 = vmatpush.msra.mxu0 %v694
    %1332 = vmatpush.msra.mxu0 %v690
    %1333 = vmatpush.msra.mxu0 %v686
    %1334 = vmatpush.msra.mxu0 %v682
    %1335 = vmatmul.f32.gmra.mxu0 %v350
    %v1336 = vpop.f32.mrf.mxu0
    %v1337 = vadd.f32 %v1317, %v1336
    %1338 = vdwg.mxu0
    %1339 = vmatpush.msra.mxu0 %v806
    %1340 = vmatpush.msra.mxu0 %v802
    %1341 = vmatpush.msra.mxu0 %v798
    %1342 = vmatpush.msra.mxu0 %v794
    %1343 = vmatpush.msra.mxu0 %v790
    %1344 = vmatpush.msra.mxu0 %v786
    %1345 = vmatpush.msra.mxu0 %v782
    %1346 = vmatpush.msra.mxu0 %v778
    %1347 = vmatpush.msra.mxu0 %v774
    %1348 = vmatpush.msra.mxu0 %v770
    %1349 = vmatpush.msra.mxu0 %v766
    %1350 = vmatpush.msra.mxu0 %v762
    %1351 = vmatpush.msra.mxu0 %v758
    %1352 = vmatpush.msra.mxu0 %v754
    %1353 = vmatpush.msra.mxu0 %v750
    %1354 = vmatpush.msra.mxu0 %v746
    %1355 = vmatmul.f32.gmra.mxu0 %v351
    %v1356 = vpop.f32.mrf.mxu0
    %v1357 = vadd.f32 %v1337, %v1356
    %1358 = vdwg.mxu0
    %1359 = vmatpush.msra.mxu0 %v870
    %1360 = vmatpush.msra.mxu0 %v866
    %1361 = vmatpush.msra.mxu0 %v862
    %1362 = vmatpush.msra.mxu0 %v858
    %1363 = vmatpush.msra.mxu0 %v854
    %1364 = vmatpush.msra.mxu0 %v850
    %1365 = vmatpush.msra.mxu0 %v846
    %1366 = vmatpush.msra.mxu0 %v842
    %1367 = vmatpush.msra.mxu0 %v838
    %1368 = vmatpush.msra.mxu0 %v834
    %1369 = vmatpush.msra.mxu0 %v830
    %1370 = vmatpush.msra.mxu0 %v826
    %1371 = vmatpush.msra.mxu0 %v822
    %1372 = vmatpush.msra.mxu0 %v818
    %1373 = vmatpush.msra.mxu0 %v814
    %1374 = vmatpush.msra.mxu0 %v810
    %1375 = vmatmul.f32.gmra.mxu0 %v352
    %v1376 = vpop.f32.mrf.mxu0
    %v1377 = vadd.f32 %v1357, %v1376
    %1378 = vdwg.mxu0
    %1379 = vmatpush.msra.mxu0 %v934
    %1380 = vmatpush.msra.mxu0 %v930
    %1381 = vmatpush.msra.mxu0 %v926
    %1382 = vmatpush.msra.mxu0 %v922
    %1383 = vmatpush.msra.mxu0 %v918
    %1384 = vmatpush.msra.mxu0 %v914
    %1385 = vmatpush.msra.mxu0 %v910
    %1386 = vmatpush.msra.mxu0 %v906
    %1387 = vmatpush.msra.mxu0 %v902
    %1388 = vmatpush.msra.mxu0 %v898
    %1389 = vmatpush.msra.mxu0 %v894
    %1390 = vmatpush.msra.mxu0 %v890
    %1391 = vmatpush.msra.mxu0 %v886
    %1392 = vmatpush.msra.mxu0 %v882
    %1393 = vmatpush.msra.mxu0 %v878
    %1394 = vmatpush.msra.mxu0 %v874
    %1395 = vmatmul.f32.gmra.mxu0 %v353
    %v1396 = vpop.f32.mrf.mxu0
    %v1397 = vadd.f32 %v1377, %v1396
    %1398 = vdwg.mxu0
    %1399 = vmatpush.msra.mxu0 %v998
    %1400 = vmatpush.msra.mxu0 %v994
    %1401 = vmatpush.msra.mxu0 %v990
    %1402 = vmatpush.msra.mxu0 %v986
    %1403 = vmatpush.msra.mxu0 %v982
    %1404 = vmatpush.msra.mxu0 %v978
    %1405 = vmatpush.msra.mxu0 %v974
    %1406 = vmatpush.msra.mxu0 %v970
    %1407 = vmatpush.msra.mxu0 %v966
    %1408 = vmatpush.msra.mxu0 %v962
    %1409 = vmatpush.msra.mxu0 %v958
    %1410 = vmatpush.msra.mxu0 %v954
    %1411 = vmatpush.msra.mxu0 %v950
    %1412 = vmatpush.msra.mxu0 %v946
    %1413 = vmatpush.msra.mxu0 %v942
    %1414 = vmatpush.msra.mxu0 %v938
    %1415 = vmatmul.f32.gmra.mxu0 %v354
    %v1416 = vpop.f32.mrf.mxu0
    %v1417 = vadd.f32 %v1397, %v1416
    %1418 = vdwg.mxu0
    %1419 = vmatpush.msra.mxu0 %v1062
    %1420 = vmatpush.msra.mxu0 %v1058
    %1421 = vmatpush.msra.mxu0 %v1054
    %1422 = vmatpush.msra.mxu0 %v1050
    %1423 = vmatpush.msra.mxu0 %v1046
    %1424 = vmatpush.msra.mxu0 %v1042
    %1425 = vmatpush.msra.mxu0 %v1038
    %1426 = vmatpush.msra.mxu0 %v1034
    %1427 = vmatpush.msra.mxu0 %v1030
    %1428 = vmatpush.msra.mxu0 %v1026
    %1429 = vmatpush.msra.mxu0 %v1022
    %1430 = vmatpush.msra.mxu0 %v1018
    %1431 = vmatpush.msra.mxu0 %v1014
    %1432 = vmatpush.msra.mxu0 %v1010
    %1433 = vmatpush.msra.mxu0 %v1006
    %1434 = vmatpush.msra.mxu0 %v1002
    %1435 = vmatmul.f32.gmra.mxu0 %v355
    %v1436 = vpop.f32.mrf.mxu0
    %v1437 = vadd.f32 %v1417, %v1436
    %1438 = vdwg.mxu0
    %1439 = vmatpush.msra.mxu0 %v1126
    %1440 = vmatpush.msra.mxu0 %v1122
    %1441 = vmatpush.msra.mxu0 %v1118
    %1442 = vmatpush.msra.mxu0 %v1114
    %1443 = vmatpush.msra.mxu0 %v1110
    %1444 = vmatpush.msra.mxu0 %v1106
    %1445 = vmatpush.msra.mxu0 %v1102
    %1446 = vmatpush.msra.mxu0 %v1098
    %1447 = vmatpush.msra.mxu0 %v1094
    %1448 = vmatpush.msra.mxu0 %v1090
    %1449 = vmatpush.msra.mxu0 %v1086
    %1450 = vmatpush.msra.mxu0 %v1082
    %1451 = vmatpush.msra.mxu0 %v1078
    %1452 = vmatpush.msra.mxu0 %v1074
    %1453 = vmatpush.msra.mxu0 %v1070
    %1454 = vmatpush.msra.mxu0 %v1066
    %1455 = vmatmul.f32.gmra.mxu0 %v356
    %v1456 = vpop.f32.mrf.mxu0
    %v1457 = vadd.f32 %v1437, %v1456
    %1458 = vdwg.mxu0
    %1459 = vmatpush.msra.mxu0 %v679
    %1460 = vmatpush.msra.mxu0 %v675
    %1461 = vmatpush.msra.mxu0 %v671
    %1462 = vmatpush.msra.mxu0 %v667
    %1463 = vmatpush.msra.mxu0 %v663
    %1464 = vmatpush.msra.mxu0 %v659
    %1465 = vmatpush.msra.mxu0 %v655
    %1466 = vmatpush.msra.mxu0 %v651
    %1467 = vmatpush.msra.mxu0 %v647
    %1468 = vmatpush.msra.mxu0 %v643
    %1469 = vmatpush.msra.mxu0 %v639
    %1470 = vmatpush.msra.mxu0 %v635
    %1471 = vmatpush.msra.mxu0 %v631
    %1472 = vmatpush.msra.mxu0 %v627
    %1473 = vmatpush.msra.mxu0 %v623
    %1474 = vmatpush.msra.mxu0 %v619
    %1475 = vmatmul.f32.gmra.mxu0 %v349
    %v1476 = vpop.f32.mrf.mxu0
    %v1477 = vadd.f32 %v1133, %v1476
    %1478 = vdwg.mxu0
    %1479 = vmatpush.msra.mxu0 %v743
    %1480 = vmatpush.msra.mxu0 %v739
    %1481 = vmatpush.msra.mxu0 %v735
    %1482 = vmatpush.msra.mxu0 %v731
    %1483 = vmatpush.msra.mxu0 %v727
    %1484 = vmatpush.msra.mxu0 %v723
    %1485 = vmatpush.msra.mxu0 %v719
    %1486 = vmatpush.msra.mxu0 %v715
    %1487 = vmatpush.msra.mxu0 %v711
    %1488 = vmatpush.msra.mxu0 %v707
    %1489 = vmatpush.msra.mxu0 %v703
    %1490 = vmatpush.msra.mxu0 %v699
    %1491 = vmatpush.msra.mxu0 %v695
    %1492 = vmatpush.msra.mxu0 %v691
    %1493 = vmatpush.msra.mxu0 %v687
    %1494 = vmatpush.msra.mxu0 %v683
    %1495 = vmatmul.f32.gmra.mxu0 %v350
    %v1496 = vpop.f32.mrf.mxu0
    %v1497 = vadd.f32 %v1477, %v1496
    %1498 = vdwg.mxu0
    %1499 = vmatpush.msra.mxu0 %v807
    %1500 = vmatpush.msra.mxu0 %v803
    %1501 = vmatpush.msra.mxu0 %v799
    %1502 = vmatpush.msra.mxu0 %v795
    %1503 = vmatpush.msra.mxu0 %v791
    %1504 = vmatpush.msra.mxu0 %v787
    %1505 = vmatpush.msra.mxu0 %v783
    %1506 = vmatpush.msra.mxu0 %v779
    %1507 = vmatpush.msra.mxu0 %v775
    %1508 = vmatpush.msra.mxu0 %v771
    %1509 = vmatpush.msra.mxu0 %v767
    %1510 = vmatpush.msra.mxu0 %v763
    %1511 = vmatpush.msra.mxu0 %v759
    %1512 = vmatpush.msra.mxu0 %v755
    %1513 = vmatpush.msra.mxu0 %v751
    %1514 = vmatpush.msra.mxu0 %v747
    %1515 = vmatmul.f32.gmra.mxu0 %v351
    %v1516 = vpop.f32.mrf.mxu0
    %v1517 = vadd.f32 %v1497, %v1516
    %1518 = vdwg.mxu0
    %1519 = vmatpush.msra.mxu0 %v871
    %1520 = vmatpush.msra.mxu0 %v867
    %1521 = vmatpush.msra.mxu0 %v863
    %1522 = vmatpush.msra.mxu0 %v859
    %1523 = vmatpush.msra.mxu0 %v855
    %1524 = vmatpush.msra.mxu0 %v851
    %1525 = vmatpush.msra.mxu0 %v847
    %1526 = vmatpush.msra.mxu0 %v843
    %1527 = vmatpush.msra.mxu0 %v839
    %1528 = vmatpush.msra.mxu0 %v835
    %1529 = vmatpush.msra.mxu0 %v831
    %1530 = vmatpush.msra.mxu0 %v827
    %1531 = vmatpush.msra.mxu0 %v823
    %1532 = vmatpush.msra.mxu0 %v819
    %1533 = vmatpush.msra.mxu0 %v815
    %1534 = vmatpush.msra.mxu0 %v811
    %1535 = vmatmul.f32.gmra.mxu0 %v352
    %v1536 = vpop.f32.mrf.mxu0
    %v1537 = vadd.f32 %v1517, %v1536
    %1538 = vdwg.mxu0
    %1539 = vmatpush.msra.mxu0 %v935
    %1540 = vmatpush.msra.mxu0 %v931
    %1541 = vmatpush.msra.mxu0 %v927
    %1542 = vmatpush.msra.mxu0 %v923
    %1543 = vmatpush.msra.mxu0 %v919
    %1544 = vmatpush.msra.mxu0 %v915
    %1545 = vmatpush.msra.mxu0 %v911
    %1546 = vmatpush.msra.mxu0 %v907
    %1547 = vmatpush.msra.mxu0 %v903
    %1548 = vmatpush.msra.mxu0 %v899
    %1549 = vmatpush.msra.mxu0 %v895
    %1550 = vmatpush.msra.mxu0 %v891
    %1551 = vmatpush.msra.mxu0 %v887
    %1552 = vmatpush.msra.mxu0 %v883
    %1553 = vmatpush.msra.mxu0 %v879
    %1554 = vmatpush.msra.mxu0 %v875
    %1555 = vmatmul.f32.gmra.mxu0 %v353
    %v1556 = vpop.f32.mrf.mxu0
    %v1557 = vadd.f32 %v1537, %v1556
    %1558 = vdwg.mxu0
    %1559 = vmatpush.msra.mxu0 %v999
    %1560 = vmatpush.msra.mxu0 %v995
    %1561 = vmatpush.msra.mxu0 %v991
    %1562 = vmatpush.msra.mxu0 %v987
    %1563 = vmatpush.msra.mxu0 %v983
    %1564 = vmatpush.msra.mxu0 %v979
    %1565 = vmatpush.msra.mxu0 %v975
    %1566 = vmatpush.msra.mxu0 %v971
    %1567 = vmatpush.msra.mxu0 %v967
    %1568 = vmatpush.msra.mxu0 %v963
    %1569 = vmatpush.msra.mxu0 %v959
    %1570 = vmatpush.msra.mxu0 %v955
    %1571 = vmatpush.msra.mxu0 %v951
    %1572 = vmatpush.msra.mxu0 %v947
    %1573 = vmatpush.msra.mxu0 %v943
    %1574 = vmatpush.msra.mxu0 %v939
    %1575 = vmatmul.f32.gmra.mxu0 %v354
    %v1576 = vpop.f32.mrf.mxu0
    %v1577 = vadd.f32 %v1557, %v1576
    %1578 = vdwg.mxu0
    %1579 = vmatpush.msra.mxu0 %v1063
    %1580 = vmatpush.msra.mxu0 %v1059
    %1581 = vmatpush.msra.mxu0 %v1055
    %1582 = vmatpush.msra.mxu0 %v1051
    %1583 = vmatpush.msra.mxu0 %v1047
    %1584 = vmatpush.msra.mxu0 %v1043
    %1585 = vmatpush.msra.mxu0 %v1039
    %1586 = vmatpush.msra.mxu0 %v1035
    %1587 = vmatpush.msra.mxu0 %v1031
    %1588 = vmatpush.msra.mxu0 %v1027
    %1589 = vmatpush.msra.mxu0 %v1023
    %1590 = vmatpush.msra.mxu0 %v1019
    %1591 = vmatpush.msra.mxu0 %v1015
    %1592 = vmatpush.msra.mxu0 %v1011
    %1593 = vmatpush.msra.mxu0 %v1007
    %1594 = vmatpush.msra.mxu0 %v1003
    %1595 = vmatmul.f32.gmra.mxu0 %v355
    %v1596 = vpop.f32.mrf.mxu0
    %v1597 = vadd.f32 %v1577, %v1596
    %1598 = vdwg.mxu0
    %1599 = vmatpush.msra.mxu0 %v1127
    %1600 = vmatpush.msra.mxu0 %v1123
    %1601 = vmatpush.msra.mxu0 %v1119
    %1602 = vmatpush.msra.mxu0 %v1115
    %1603 = vmatpush.msra.mxu0 %v1111
    %1604 = vmatpush.msra.mxu0 %v1107
    %1605 = vmatpush.msra.mxu0 %v1103
    %1606 = vmatpush.msra.mxu0 %v1099
    %1607 = vmatpush.msra.mxu0 %v1095
    %1608 = vmatpush.msra.mxu0 %v1091
    %1609 = vmatpush.msra.mxu0 %v1087
    %1610 = vmatpush.msra.mxu0 %v1083
    %1611 = vmatpush.msra.mxu0 %v1079
    %1612 = vmatpush.msra.mxu0 %v1075
    %1613 = vmatpush.msra.mxu0 %v1071
    %1614 = vmatpush.msra.mxu0 %v1067
    %1615 = vmatmul.f32.gmra.mxu0 %v356
    %v1616 = vpop.f32.mrf.mxu0
    %v1617 = vadd.f32 %v1597, %v1616
    %1618 = vdwg.mxu0
    %1619 = vmatpush.msra.mxu0 %v680
    %1620 = vmatpush.msra.mxu0 %v676
    %1621 = vmatpush.msra.mxu0 %v672
    %1622 = vmatpush.msra.mxu0 %v668
    %1623 = vmatpush.msra.mxu0 %v664
    %1624 = vmatpush.msra.mxu0 %v660
    %1625 = vmatpush.msra.mxu0 %v656
    %1626 = vmatpush.msra.mxu0 %v652
    %1627 = vmatpush.msra.mxu0 %v648
    %1628 = vmatpush.msra.mxu0 %v644
    %1629 = vmatpush.msra.mxu0 %v640
    %1630 = vmatpush.msra.mxu0 %v636
    %1631 = vmatpush.msra.mxu0 %v632
    %1632 = vmatpush.msra.mxu0 %v628
    %1633 = vmatpush.msra.mxu0 %v624
    %1634 = vmatpush.msra.mxu0 %v620
    %1635 = vmatmul.f32.gmra.mxu0 %v349
    %v1636 = vpop.f32.mrf.mxu0
    %v1637 = vadd.f32 %v1134, %v1636
    %1638 = vdwg.mxu0
    %1639 = vmatpush.msra.mxu0 %v744
    %1640 = vmatpush.msra.mxu0 %v740
    %1641 = vmatpush.msra.mxu0 %v736
    %1642 = vmatpush.msra.mxu0 %v732
    %1643 = vmatpush.msra.mxu0 %v728
    %1644 = vmatpush.msra.mxu0 %v724
    %1645 = vmatpush.msra.mxu0 %v720
    %1646 = vmatpush.msra.mxu0 %v716
    %1647 = vmatpush.msra.mxu0 %v712
    %1648 = vmatpush.msra.mxu0 %v708
    %1649 = vmatpush.msra.mxu0 %v704
    %1650 = vmatpush.msra.mxu0 %v700
    %1651 = vmatpush.msra.mxu0 %v696
    %1652 = vmatpush.msra.mxu0 %v692
    %1653 = vmatpush.msra.mxu0 %v688
    %1654 = vmatpush.msra.mxu0 %v684
    %1655 = vmatmul.f32.gmra.mxu0 %v350
    %v1656 = vpop.f32.mrf.mxu0
    %v1657 = vadd.f32 %v1637, %v1656
    %1658 = vdwg.mxu0
    %1659 = vmatpush.msra.mxu0 %v808
    %1660 = vmatpush.msra.mxu0 %v804
    %1661 = vmatpush.msra.mxu0 %v800
    %1662 = vmatpush.msra.mxu0 %v796
    %1663 = vmatpush.msra.mxu0 %v792
    %1664 = vmatpush.msra.mxu0 %v788
    %1665 = vmatpush.msra.mxu0 %v784
    %1666 = vmatpush.msra.mxu0 %v780
    %1667 = vmatpush.msra.mxu0 %v776
    %1668 = vmatpush.msra.mxu0 %v772
    %1669 = vmatpush.msra.mxu0 %v768
    %1670 = vmatpush.msra.mxu0 %v764
    %1671 = vmatpush.msra.mxu0 %v760
    %1672 = vmatpush.msra.mxu0 %v756
    %1673 = vmatpush.msra.mxu0 %v752
    %1674 = vmatpush.msra.mxu0 %v748
    %1675 = vmatmul.f32.gmra.mxu0 %v351
    %v1676 = vpop.f32.mrf.mxu0
    %v1677 = vadd.f32 %v1657, %v1676
    %1678 = vdwg.mxu0
    %1679 = vmatpush.msra.mxu0 %v872
    %1680 = vmatpush.msra.mxu0 %v868
    %1681 = vmatpush.msra.mxu0 %v864
    %1682 = vmatpush.msra.mxu0 %v860
    %1683 = vmatpush.msra.mxu0 %v856
    %1684 = vmatpush.msra.mxu0 %v852
    %1685 = vmatpush.msra.mxu0 %v848
    %1686 = vmatpush.msra.mxu0 %v844
    %1687 = vmatpush.msra.mxu0 %v840
    %1688 = vmatpush.msra.mxu0 %v836
    %1689 = vmatpush.msra.mxu0 %v832
    %1690 = vmatpush.msra.mxu0 %v828
    %1691 = vmatpush.msra.mxu0 %v824
    %1692 = vmatpush.msra.mxu0 %v820
    %1693 = vmatpush.msra.mxu0 %v816
    %1694 = vmatpush.msra.mxu0 %v812
    %1695 = vmatmul.f32.gmra.mxu0 %v352
    %v1696 = vpop.f32.mrf.mxu0
    %v1697 = vadd.f32 %v1677, %v1696
    %1698 = vdwg.mxu0
    %1699 = vmatpush.msra.mxu0 %v936
    %1700 = vmatpush.msra.mxu0 %v932
    %1701 = vmatpush.msra.mxu0 %v928
    %1702 = vmatpush.msra.mxu0 %v924
    %1703 = vmatpush.msra.mxu0 %v920
    %1704 = vmatpush.msra.mxu0 %v916
    %1705 = vmatpush.msra.mxu0 %v912
    %1706 = vmatpush.msra.mxu0 %v908
    %1707 = vmatpush.msra.mxu0 %v904
    %1708 = vmatpush.msra.mxu0 %v900
    %1709 = vmatpush.msra.mxu0 %v896
    %1710 = vmatpush.msra.mxu0 %v892
    %1711 = vmatpush.msra.mxu0 %v888
    %1712 = vmatpush.msra.mxu0 %v884
    %1713 = vmatpush.msra.mxu0 %v880
    %1714 = vmatpush.msra.mxu0 %v876
    %1715 = vmatmul.f32.gmra.mxu0 %v353
    %v1716 = vpop.f32.mrf.mxu0
    %v1717 = vadd.f32 %v1697, %v1716
    %1718 = vdwg.mxu0
    %1719 = vmatpush.msra.mxu0 %v1000
    %1720 = vmatpush.msra.mxu0 %v996
    %1721 = vmatpush.msra.mxu0 %v992
    %1722 = vmatpush.msra.mxu0 %v988
    %1723 = vmatpush.msra.mxu0 %v984
    %1724 = vmatpush.msra.mxu0 %v980
    %1725 = vmatpush.msra.mxu0 %v976
    %1726 = vmatpush.msra.mxu0 %v972
    %1727 = vmatpush.msra.mxu0 %v968
    %1728 = vmatpush.msra.mxu0 %v964
    %1729 = vmatpush.msra.mxu0 %v960
    %1730 = vmatpush.msra.mxu0 %v956
    %1731 = vmatpush.msra.mxu0 %v952
    %1732 = vmatpush.msra.mxu0 %v948
    %1733 = vmatpush.msra.mxu0 %v944
    %1734 = vmatpush.msra.mxu0 %v940
    %1735 = vmatmul.f32.gmra.mxu0 %v354
    %v1736 = vpop.f32.mrf.mxu0
    %v1737 = vadd.f32 %v1717, %v1736
    %1738 = vdwg.mxu0
    %1739 = vmatpush.msra.mxu0 %v1064
    %1740 = vmatpush.msra.mxu0 %v1060
    %1741 = vmatpush.msra.mxu0 %v1056
    %1742 = vmatpush.msra.mxu0 %v1052
    %1743 = vmatpush.msra.mxu0 %v1048
    %1744 = vmatpush.msra.mxu0 %v1044
    %1745 = vmatpush.msra.mxu0 %v1040
    %1746 = vmatpush.msra.mxu0 %v1036
    %1747 = vmatpush.msra.mxu0 %v1032
    %1748 = vmatpush.msra.mxu0 %v1028
    %1749 = vmatpush.msra.mxu0 %v1024
    %1750 = vmatpush.msra.mxu0 %v1020
    %1751 = vmatpush.msra.mxu0 %v1016
    %1752 = vmatpush.msra.mxu0 %v1012
    %1753 = vmatpush.msra.mxu0 %v1008
    %1754 = vmatpush.msra.mxu0 %v1004
    %1755 = vmatmul.f32.gmra.mxu0 %v355
    %v1756 = vpop.f32.mrf.mxu0
    %v1757 = vadd.f32 %v1737, %v1756
    %1758 = vdwg.mxu0
    %1759 = vmatpush.msra.mxu0 %v1128
    %1760 = vmatpush.msra.mxu0 %v1124
    %1761 = vmatpush.msra.mxu0 %v1120
    %1762 = vmatpush.msra.mxu0 %v1116
    %1763 = vmatpush.msra.mxu0 %v1112
    %1764 = vmatpush.msra.mxu0 %v1108
    %1765 = vmatpush.msra.mxu0 %v1104
    %1766 = vmatpush.msra.mxu0 %v1100
    %1767 = vmatpush.msra.mxu0 %v1096
    %1768 = vmatpush.msra.mxu0 %v1092
    %1769 = vmatpush.msra.mxu0 %v1088
    %1770 = vmatpush.msra.mxu0 %v1084
    %1771 = vmatpush.msra.mxu0 %v1080
    %1772 = vmatpush.msra.mxu0 %v1076
    %1773 = vmatpush.msra.mxu0 %v1072
    %1774 = vmatpush.msra.mxu0 %v1068
    %1775 = vmatmul.f32.gmra.mxu0 %v356
    %v1776 = vpop.f32.mrf.mxu0
    %v1777 = vadd.f32 %v1757, %v1776
    %1778 = vdwg.mxu0
    %v1779 = vtanh.pop %v1297
    %v1780 = vtanh.pop %v1457
    %v1781 = vtanh.pop %v1617
    %v1782 = vtanh.pop %v1777
    %s1783 = smul.u32 4, 64
    %s1784 = smul.u32 %s1783, 4
    %s1785 = sshll.u32 %s1784, 4
    %1786 = dma.done %s72, %s1785
    %v1787 = vld [vmem:[#allocation4] sm:$0xff]
    %v1788 = vld [vmem:[#allocation4 + $0x8] sm:$0xff]
    %v1789 = vld [vmem:[#allocation4 + $0x10] sm:$0xff]
    %v1790 = vld [vmem:[#allocation4 + $0x18] sm:$0xff]
    %v1791 = vld [vmem:[#allocation4 + $0x20] sm:$0xff]
    %v1792 = vld [vmem:[#allocation4 + $0x28] sm:$0xff]
    %v1793 = vld [vmem:[#allocation4 + $0x30] sm:$0xff]
    %v1794 = vld [vmem:[#allocation4 + $0x38] sm:$0xff]
    %v1795 = vld [vmem:[#allocation4 + $0x40] sm:$0xff]
    %v1796 = vld [vmem:[#allocation4 + $0x48] sm:$0xff]
    %v1797 = vld [vmem:[#allocation4 + $0x50] sm:$0xff]
    %v1798 = vld [vmem:[#allocation4 + $0x58] sm:$0xff]
    %v1799 = vld [vmem:[#allocation4 + $0x60] sm:$0xff]
    %v1800 = vld [vmem:[#allocation4 + $0x68] sm:$0xff]
    %v1801 = vld [vmem:[#allocation4 + $0x70] sm:$0xff]
    %v1802 = vld [vmem:[#allocation4 + $0x78] sm:$0xff]
    %v1803 = vld [vmem:[#allocation4 + $0x80] sm:$0xff]
    %v1804 = vld [vmem:[#allocation4 + $0x88] sm:$0xff]
    %v1805 = vld [vmem:[#allocation4 + $0x90] sm:$0xff]
    %v1806 = vld [vmem:[#allocation4 + $0x98] sm:$0xff]
    %v1807 = vld [vmem:[#allocation4 + $0xa0] sm:$0xff]
    %v1808 = vld [vmem:[#allocation4 + $0xa8] sm:$0xff]
    %v1809 = vld [vmem:[#allocation4 + $0xb0] sm:$0xff]
    %v1810 = vld [vmem:[#allocation4 + $0xb8] sm:$0xff]
    %v1811 = vld [vmem:[#allocation4 + $0xc0] sm:$0xff]
    %v1812 = vld [vmem:[#allocation4 + $0xc8] sm:$0xff]
    %v1813 = vld [vmem:[#allocation4 + $0xd0] sm:$0xff]
    %v1814 = vld [vmem:[#allocation4 + $0xd8] sm:$0xff]
    %v1815 = vld [vmem:[#allocation4 + $0xe0] sm:$0xff]
    %v1816 = vld [vmem:[#allocation4 + $0xe8] sm:$0xff]
    %v1817 = vld [vmem:[#allocation4 + $0xf0] sm:$0xff]
    %v1818 = vld [vmem:[#allocation4 + $0xf8] sm:$0xff]
    %v1819 = vld [vmem:[#allocation4 + $0x100] sm:$0xff]
    %v1820 = vld [vmem:[#allocation4 + $0x108] sm:$0xff]
    %v1821 = vld [vmem:[#allocation4 + $0x110] sm:$0xff]
    %v1822 = vld [vmem:[#allocation4 + $0x118] sm:$0xff]
    %v1823 = vld [vmem:[#allocation4 + $0x120] sm:$0xff]
    %v1824 = vld [vmem:[#allocation4 + $0x128] sm:$0xff]
    %v1825 = vld [vmem:[#allocation4 + $0x130] sm:$0xff]
    %v1826 = vld [vmem:[#allocation4 + $0x138] sm:$0xff]
    %v1827 = vld [vmem:[#allocation4 + $0x140] sm:$0xff]
    %v1828 = vld [vmem:[#allocation4 + $0x148] sm:$0xff]
    %v1829 = vld [vmem:[#allocation4 + $0x150] sm:$0xff]
    %v1830 = vld [vmem:[#allocation4 + $0x158] sm:$0xff]
    %v1831 = vld [vmem:[#allocation4 + $0x160] sm:$0xff]
    %v1832 = vld [vmem:[#allocation4 + $0x168] sm:$0xff]
    %v1833 = vld [vmem:[#allocation4 + $0x170] sm:$0xff]
    %v1834 = vld [vmem:[#allocation4 + $0x178] sm:$0xff]
    %v1835 = vld [vmem:[#allocation4 + $0x180] sm:$0xff]
    %v1836 = vld [vmem:[#allocation4 + $0x188] sm:$0xff]
    %v1837 = vld [vmem:[#allocation4 + $0x190] sm:$0xff]
    %v1838 = vld [vmem:[#allocation4 + $0x198] sm:$0xff]
    %v1839 = vld [vmem:[#allocation4 + $0x1a0] sm:$0xff]
    %v1840 = vld [vmem:[#allocation4 + $0x1a8] sm:$0xff]
    %v1841 = vld [vmem:[#allocation4 + $0x1b0] sm:$0xff]
    %v1842 = vld [vmem:[#allocation4 + $0x1b8] sm:$0xff]
    %v1843 = vld [vmem:[#allocation4 + $0x1c0] sm:$0xff]
    %v1844 = vld [vmem:[#allocation4 + $0x1c8] sm:$0xff]
    %v1845 = vld [vmem:[#allocation4 + $0x1d0] sm:$0xff]
    %v1846 = vld [vmem:[#allocation4 + $0x1d8] sm:$0xff]
    %v1847 = vld [vmem:[#allocation4 + $0x1e0] sm:$0xff]
    %v1848 = vld [vmem:[#allocation4 + $0x1e8] sm:$0xff]
    %v1849 = vld [vmem:[#allocation4 + $0x1f0] sm:$0xff]
    %v1850 = vld [vmem:[#allocation4 + $0x1f8] sm:$0xff]
    %v1851 = vld [vmem:[#allocation4 + $0x200] sm:$0xff]
    %v1852 = vld [vmem:[#allocation4 + $0x208] sm:$0xff]
    %v1853 = vld [vmem:[#allocation4 + $0x210] sm:$0xff]
    %v1854 = vld [vmem:[#allocation4 + $0x218] sm:$0xff]
    %v1855 = vld [vmem:[#allocation4 + $0x220] sm:$0xff]
    %v1856 = vld [vmem:[#allocation4 + $0x228] sm:$0xff]
    %v1857 = vld [vmem:[#allocation4 + $0x230] sm:$0xff]
    %v1858 = vld [vmem:[#allocation4 + $0x238] sm:$0xff]
    %v1859 = vld [vmem:[#allocation4 + $0x240] sm:$0xff]
    %v1860 = vld [vmem:[#allocation4 + $0x248] sm:$0xff]
    %v1861 = vld [vmem:[#allocation4 + $0x250] sm:$0xff]
    %v1862 = vld [vmem:[#allocation4 + $0x258] sm:$0xff]
    %v1863 = vld [vmem:[#allocation4 + $0x260] sm:$0xff]
    %v1864 = vld [vmem:[#allocation4 + $0x268] sm:$0xff]
    %v1865 = vld [vmem:[#allocation4 + $0x270] sm:$0xff]
    %v1866 = vld [vmem:[#allocation4 + $0x278] sm:$0xff]
    %v1867 = vld [vmem:[#allocation4 + $0x280] sm:$0xff]
    %v1868 = vld [vmem:[#allocation4 + $0x288] sm:$0xff]
    %v1869 = vld [vmem:[#allocation4 + $0x290] sm:$0xff]
    %v1870 = vld [vmem:[#allocation4 + $0x298] sm:$0xff]
    %v1871 = vld [vmem:[#allocation4 + $0x2a0] sm:$0xff]
    %v1872 = vld [vmem:[#allocation4 + $0x2a8] sm:$0xff]
    %v1873 = vld [vmem:[#allocation4 + $0x2b0] sm:$0xff]
    %v1874 = vld [vmem:[#allocation4 + $0x2b8] sm:$0xff]
    %v1875 = vld [vmem:[#allocation4 + $0x2c0] sm:$0xff]
    %v1876 = vld [vmem:[#allocation4 + $0x2c8] sm:$0xff]
    %v1877 = vld [vmem:[#allocation4 + $0x2d0] sm:$0xff]
    %v1878 = vld [vmem:[#allocation4 + $0x2d8] sm:$0xff]
    %v1879 = vld [vmem:[#allocation4 + $0x2e0] sm:$0xff]
    %v1880 = vld [vmem:[#allocation4 + $0x2e8] sm:$0xff]
    %v1881 = vld [vmem:[#allocation4 + $0x2f0] sm:$0xff]
    %v1882 = vld [vmem:[#allocation4 + $0x2f8] sm:$0xff]
    %v1883 = vld [vmem:[#allocation4 + $0x300] sm:$0xff]
    %v1884 = vld [vmem:[#allocation4 + $0x308] sm:$0xff]
    %v1885 = vld [vmem:[#allocation4 + $0x310] sm:$0xff]
    %v1886 = vld [vmem:[#allocation4 + $0x318] sm:$0xff]
    %v1887 = vld [vmem:[#allocation4 + $0x320] sm:$0xff]
    %v1888 = vld [vmem:[#allocation4 + $0x328] sm:$0xff]
    %v1889 = vld [vmem:[#allocation4 + $0x330] sm:$0xff]
    %v1890 = vld [vmem:[#allocation4 + $0x338] sm:$0xff]
    %v1891 = vld [vmem:[#allocation4 + $0x340] sm:$0xff]
    %v1892 = vld [vmem:[#allocation4 + $0x348] sm:$0xff]
    %v1893 = vld [vmem:[#allocation4 + $0x350] sm:$0xff]
    %v1894 = vld [vmem:[#allocation4 + $0x358] sm:$0xff]
    %v1895 = vld [vmem:[#allocation4 + $0x360] sm:$0xff]
    %v1896 = vld [vmem:[#allocation4 + $0x368] sm:$0xff]
    %v1897 = vld [vmem:[#allocation4 + $0x370] sm:$0xff]
    %v1898 = vld [vmem:[#allocation4 + $0x378] sm:$0xff]
    %v1899 = vld [vmem:[#allocation4 + $0x380] sm:$0xff]
    %v1900 = vld [vmem:[#allocation4 + $0x388] sm:$0xff]
    %v1901 = vld [vmem:[#allocation4 + $0x390] sm:$0xff]
    %v1902 = vld [vmem:[#allocation4 + $0x398] sm:$0xff]
    %v1903 = vld [vmem:[#allocation4 + $0x3a0] sm:$0xff]
    %v1904 = vld [vmem:[#allocation4 + $0x3a8] sm:$0xff]
    %v1905 = vld [vmem:[#allocation4 + $0x3b0] sm:$0xff]
    %v1906 = vld [vmem:[#allocation4 + $0x3b8] sm:$0xff]
    %v1907 = vld [vmem:[#allocation4 + $0x3c0] sm:$0xff]
    %v1908 = vld [vmem:[#allocation4 + $0x3c8] sm:$0xff]
    %v1909 = vld [vmem:[#allocation4 + $0x3d0] sm:$0xff]
    %v1910 = vld [vmem:[#allocation4 + $0x3d8] sm:$0xff]
    %v1911 = vld [vmem:[#allocation4 + $0x3e0] sm:$0xff]
    %v1912 = vld [vmem:[#allocation4 + $0x3e8] sm:$0xff]
    %v1913 = vld [vmem:[#allocation4 + $0x3f0] sm:$0xff]
    %v1914 = vld [vmem:[#allocation4 + $0x3f8] sm:$0xff]
    %v1915 = vunpack.c.l.bf16 %v1787
    %v1916 = vunpack.c.h.bf16 %v1787
    %v1917 = vunpack.c.l.bf16 %v1788
    %v1918 = vunpack.c.h.bf16 %v1788
    %v1919 = vunpack.c.l.bf16 %v1789
    %v1920 = vunpack.c.h.bf16 %v1789
    %v1921 = vunpack.c.l.bf16 %v1790
    %v1922 = vunpack.c.h.bf16 %v1790
    %v1923 = vunpack.c.l.bf16 %v1791
    %v1924 = vunpack.c.h.bf16 %v1791
    %v1925 = vunpack.c.l.bf16 %v1792
    %v1926 = vunpack.c.h.bf16 %v1792
    %v1927 = vunpack.c.l.bf16 %v1793
    %v1928 = vunpack.c.h.bf16 %v1793
    %v1929 = vunpack.c.l.bf16 %v1794
    %v1930 = vunpack.c.h.bf16 %v1794
    %v1931 = vunpack.c.l.bf16 %v1795
    %v1932 = vunpack.c.h.bf16 %v1795
    %v1933 = vunpack.c.l.bf16 %v1796
    %v1934 = vunpack.c.h.bf16 %v1796
    %v1935 = vunpack.c.l.bf16 %v1797
    %v1936 = vunpack.c.h.bf16 %v1797
    %v1937 = vunpack.c.l.bf16 %v1798
    %v1938 = vunpack.c.h.bf16 %v1798
    %v1939 = vunpack.c.l.bf16 %v1799
    %v1940 = vunpack.c.h.bf16 %v1799
    %v1941 = vunpack.c.l.bf16 %v1800
    %v1942 = vunpack.c.h.bf16 %v1800
    %v1943 = vunpack.c.l.bf16 %v1801
    %v1944 = vunpack.c.h.bf16 %v1801
    %v1945 = vunpack.c.l.bf16 %v1802
    %v1946 = vunpack.c.h.bf16 %v1802
    %v1947 = vunpack.c.l.bf16 %v1803
    %v1948 = vunpack.c.h.bf16 %v1803
    %v1949 = vunpack.c.l.bf16 %v1804
    %v1950 = vunpack.c.h.bf16 %v1804
    %v1951 = vunpack.c.l.bf16 %v1805
    %v1952 = vunpack.c.h.bf16 %v1805
    %v1953 = vunpack.c.l.bf16 %v1806
    %v1954 = vunpack.c.h.bf16 %v1806
    %v1955 = vunpack.c.l.bf16 %v1807
    %v1956 = vunpack.c.h.bf16 %v1807
    %v1957 = vunpack.c.l.bf16 %v1808
    %v1958 = vunpack.c.h.bf16 %v1808
    %v1959 = vunpack.c.l.bf16 %v1809
    %v1960 = vunpack.c.h.bf16 %v1809
    %v1961 = vunpack.c.l.bf16 %v1810
    %v1962 = vunpack.c.h.bf16 %v1810
    %v1963 = vunpack.c.l.bf16 %v1811
    %v1964 = vunpack.c.h.bf16 %v1811
    %v1965 = vunpack.c.l.bf16 %v1812
    %v1966 = vunpack.c.h.bf16 %v1812
    %v1967 = vunpack.c.l.bf16 %v1813
    %v1968 = vunpack.c.h.bf16 %v1813
    %v1969 = vunpack.c.l.bf16 %v1814
    %v1970 = vunpack.c.h.bf16 %v1814
    %v1971 = vunpack.c.l.bf16 %v1815
    %v1972 = vunpack.c.h.bf16 %v1815
    %v1973 = vunpack.c.l.bf16 %v1816
    %v1974 = vunpack.c.h.bf16 %v1816
    %v1975 = vunpack.c.l.bf16 %v1817
    %v1976 = vunpack.c.h.bf16 %v1817
    %v1977 = vunpack.c.l.bf16 %v1818
    %v1978 = vunpack.c.h.bf16 %v1818
    %v1979 = vunpack.c.l.bf16 %v1819
    %v1980 = vunpack.c.h.bf16 %v1819
    %v1981 = vunpack.c.l.bf16 %v1820
    %v1982 = vunpack.c.h.bf16 %v1820
    %v1983 = vunpack.c.l.bf16 %v1821
    %v1984 = vunpack.c.h.bf16 %v1821
    %v1985 = vunpack.c.l.bf16 %v1822
    %v1986 = vunpack.c.h.bf16 %v1822
    %v1987 = vunpack.c.l.bf16 %v1823
    %v1988 = vunpack.c.h.bf16 %v1823
    %v1989 = vunpack.c.l.bf16 %v1824
    %v1990 = vunpack.c.h.bf16 %v1824
    %v1991 = vunpack.c.l.bf16 %v1825
    %v1992 = vunpack.c.h.bf16 %v1825
    %v1993 = vunpack.c.l.bf16 %v1826
    %v1994 = vunpack.c.h.bf16 %v1826
    %v1995 = vunpack.c.l.bf16 %v1827
    %v1996 = vunpack.c.h.bf16 %v1827
    %v1997 = vunpack.c.l.bf16 %v1828
    %v1998 = vunpack.c.h.bf16 %v1828
    %v1999 = vunpack.c.l.bf16 %v1829
    %v2000 = vunpack.c.h.bf16 %v1829
    %v2001 = vunpack.c.l.bf16 %v1830
    %v2002 = vunpack.c.h.bf16 %v1830
    %v2003 = vunpack.c.l.bf16 %v1831
    %v2004 = vunpack.c.h.bf16 %v1831
    %v2005 = vunpack.c.l.bf16 %v1832
    %v2006 = vunpack.c.h.bf16 %v1832
    %v2007 = vunpack.c.l.bf16 %v1833
    %v2008 = vunpack.c.h.bf16 %v1833
    %v2009 = vunpack.c.l.bf16 %v1834
    %v2010 = vunpack.c.h.bf16 %v1834
    %v2011 = vunpack.c.l.bf16 %v1835
    %v2012 = vunpack.c.h.bf16 %v1835
    %v2013 = vunpack.c.l.bf16 %v1836
    %v2014 = vunpack.c.h.bf16 %v1836
    %v2015 = vunpack.c.l.bf16 %v1837
    %v2016 = vunpack.c.h.bf16 %v1837
    %v2017 = vunpack.c.l.bf16 %v1838
    %v2018 = vunpack.c.h.bf16 %v1838
    %v2019 = vunpack.c.l.bf16 %v1839
    %v2020 = vunpack.c.h.bf16 %v1839
    %v2021 = vunpack.c.l.bf16 %v1840
    %v2022 = vunpack.c.h.bf16 %v1840
    %v2023 = vunpack.c.l.bf16 %v1841
    %v2024 = vunpack.c.h.bf16 %v1841
    %v2025 = vunpack.c.l.bf16 %v1842
    %v2026 = vunpack.c.h.bf16 %v1842
    %v2027 = vunpack.c.l.bf16 %v1843
    %v2028 = vunpack.c.h.bf16 %v1843
    %v2029 = vunpack.c.l.bf16 %v1844
    %v2030 = vunpack.c.h.bf16 %v1844
    %v2031 = vunpack.c.l.bf16 %v1845
    %v2032 = vunpack.c.h.bf16 %v1845
    %v2033 = vunpack.c.l.bf16 %v1846
    %v2034 = vunpack.c.h.bf16 %v1846
    %v2035 = vunpack.c.l.bf16 %v1847
    %v2036 = vunpack.c.h.bf16 %v1847
    %v2037 = vunpack.c.l.bf16 %v1848
    %v2038 = vunpack.c.h.bf16 %v1848
    %v2039 = vunpack.c.l.bf16 %v1849
    %v2040 = vunpack.c.h.bf16 %v1849
    %v2041 = vunpack.c.l.bf16 %v1850
    %v2042 = vunpack.c.h.bf16 %v1850
    %v2043 = vunpack.c.l.bf16 %v1851
    %v2044 = vunpack.c.h.bf16 %v1851
    %v2045 = vunpack.c.l.bf16 %v1852
    %v2046 = vunpack.c.h.bf16 %v1852
    %v2047 = vunpack.c.l.bf16 %v1853
    %v2048 = vunpack.c.h.bf16 %v1853
    %v2049 = vunpack.c.l.bf16 %v1854
    %v2050 = vunpack.c.h.bf16 %v1854
    %v2051 = vunpack.c.l.bf16 %v1855
    %v2052 = vunpack.c.h.bf16 %v1855
    %v2053 = vunpack.c.l.bf16 %v1856
    %v2054 = vunpack.c.h.bf16 %v1856
    %v2055 = vunpack.c.l.bf16 %v1857
    %v2056 = vunpack.c.h.bf16 %v1857
    %v2057 = vunpack.c.l.bf16 %v1858
    %v2058 = vunpack.c.h.bf16 %v1858
    %v2059 = vunpack.c.l.bf16 %v1859
    %v2060 = vunpack.c.h.bf16 %v1859
    %v2061 = vunpack.c.l.bf16 %v1860
    %v2062 = vunpack.c.h.bf16 %v1860
    %v2063 = vunpack.c.l.bf16 %v1861
    %v2064 = vunpack.c.h.bf16 %v1861
    %v2065 = vunpack.c.l.bf16 %v1862
    %v2066 = vunpack.c.h.bf16 %v1862
    %v2067 = vunpack.c.l.bf16 %v1863
    %v2068 = vunpack.c.h.bf16 %v1863
    %v2069 = vunpack.c.l.bf16 %v1864
    %v2070 = vunpack.c.h.bf16 %v1864
    %v2071 = vunpack.c.l.bf16 %v1865
    %v2072 = vunpack.c.h.bf16 %v1865
    %v2073 = vunpack.c.l.bf16 %v1866
    %v2074 = vunpack.c.h.bf16 %v1866
    %v2075 = vunpack.c.l.bf16 %v1867
    %v2076 = vunpack.c.h.bf16 %v1867
    %v2077 = vunpack.c.l.bf16 %v1868
    %v2078 = vunpack.c.h.bf16 %v1868
    %v2079 = vunpack.c.l.bf16 %v1869
    %v2080 = vunpack.c.h.bf16 %v1869
    %v2081 = vunpack.c.l.bf16 %v1870
    %v2082 = vunpack.c.h.bf16 %v1870
    %v2083 = vunpack.c.l.bf16 %v1871
    %v2084 = vunpack.c.h.bf16 %v1871
    %v2085 = vunpack.c.l.bf16 %v1872
    %v2086 = vunpack.c.h.bf16 %v1872
    %v2087 = vunpack.c.l.bf16 %v1873
    %v2088 = vunpack.c.h.bf16 %v1873
    %v2089 = vunpack.c.l.bf16 %v1874
    %v2090 = vunpack.c.h.bf16 %v1874
    %v2091 = vunpack.c.l.bf16 %v1875
    %v2092 = vunpack.c.h.bf16 %v1875
    %v2093 = vunpack.c.l.bf16 %v1876
    %v2094 = vunpack.c.h.bf16 %v1876
    %v2095 = vunpack.c.l.bf16 %v1877
    %v2096 = vunpack.c.h.bf16 %v1877
    %v2097 = vunpack.c.l.bf16 %v1878
    %v2098 = vunpack.c.h.bf16 %v1878
    %v2099 = vunpack.c.l.bf16 %v1879
    %v2100 = vunpack.c.h.bf16 %v1879
    %v2101 = vunpack.c.l.bf16 %v1880
    %v2102 = vunpack.c.h.bf16 %v1880
    %v2103 = vunpack.c.l.bf16 %v1881
    %v2104 = vunpack.c.h.bf16 %v1881
    %v2105 = vunpack.c.l.bf16 %v1882
    %v2106 = vunpack.c.h.bf16 %v1882
    %v2107 = vunpack.c.l.bf16 %v1883
    %v2108 = vunpack.c.h.bf16 %v1883
    %v2109 = vunpack.c.l.bf16 %v1884
    %v2110 = vunpack.c.h.bf16 %v1884
    %v2111 = vunpack.c.l.bf16 %v1885
    %v2112 = vunpack.c.h.bf16 %v1885
    %v2113 = vunpack.c.l.bf16 %v1886
    %v2114 = vunpack.c.h.bf16 %v1886
    %v2115 = vunpack.c.l.bf16 %v1887
    %v2116 = vunpack.c.h.bf16 %v1887
    %v2117 = vunpack.c.l.bf16 %v1888
    %v2118 = vunpack.c.h.bf16 %v1888
    %v2119 = vunpack.c.l.bf16 %v1889
    %v2120 = vunpack.c.h.bf16 %v1889
    %v2121 = vunpack.c.l.bf16 %v1890
    %v2122 = vunpack.c.h.bf16 %v1890
    %v2123 = vunpack.c.l.bf16 %v1891
    %v2124 = vunpack.c.h.bf16 %v1891
    %v2125 = vunpack.c.l.bf16 %v1892
    %v2126 = vunpack.c.h.bf16 %v1892
    %v2127 = vunpack.c.l.bf16 %v1893
    %v2128 = vunpack.c.h.bf16 %v1893
    %v2129 = vunpack.c.l.bf16 %v1894
    %v2130 = vunpack.c.h.bf16 %v1894
    %v2131 = vunpack.c.l.bf16 %v1895
    %v2132 = vunpack.c.h.bf16 %v1895
    %v2133 = vunpack.c.l.bf16 %v1896
    %v2134 = vunpack.c.h.bf16 %v1896
    %v2135 = vunpack.c.l.bf16 %v1897
    %v2136 = vunpack.c.h.bf16 %v1897
    %v2137 = vunpack.c.l.bf16 %v1898
    %v2138 = vunpack.c.h.bf16 %v1898
    %v2139 = vunpack.c.l.bf16 %v1899
    %v2140 = vunpack.c.h.bf16 %v1899
    %v2141 = vunpack.c.l.bf16 %v1900
    %v2142 = vunpack.c.h.bf16 %v1900
    %v2143 = vunpack.c.l.bf16 %v1901
    %v2144 = vunpack.c.h.bf16 %v1901
    %v2145 = vunpack.c.l.bf16 %v1902
    %v2146 = vunpack.c.h.bf16 %v1902
    %v2147 = vunpack.c.l.bf16 %v1903
    %v2148 = vunpack.c.h.bf16 %v1903
    %v2149 = vunpack.c.l.bf16 %v1904
    %v2150 = vunpack.c.h.bf16 %v1904
    %v2151 = vunpack.c.l.bf16 %v1905
    %v2152 = vunpack.c.h.bf16 %v1905
    %v2153 = vunpack.c.l.bf16 %v1906
    %v2154 = vunpack.c.h.bf16 %v1906
    %v2155 = vunpack.c.l.bf16 %v1907
    %v2156 = vunpack.c.h.bf16 %v1907
    %v2157 = vunpack.c.l.bf16 %v1908
    %v2158 = vunpack.c.h.bf16 %v1908
    %v2159 = vunpack.c.l.bf16 %v1909
    %v2160 = vunpack.c.h.bf16 %v1909
    %v2161 = vunpack.c.l.bf16 %v1910
    %v2162 = vunpack.c.h.bf16 %v1910
    %v2163 = vunpack.c.l.bf16 %v1911
    %v2164 = vunpack.c.h.bf16 %v1911
    %v2165 = vunpack.c.l.bf16 %v1912
    %v2166 = vunpack.c.h.bf16 %v1912
    %v2167 = vunpack.c.l.bf16 %v1913
    %v2168 = vunpack.c.h.bf16 %v1913
    %v2169 = vunpack.c.l.bf16 %v1914
    %v2170 = vunpack.c.h.bf16 %v1914
    %v2171 = vld [vmem:[#allocation11 + $0xc] sm:$0xf]
    %v2173 = vperm.slane %v2171, 0
    %v2174 = vperm.slane %v2171, 1
    %v2175 = vperm.slane %v2171, 2
    %v2176 = vperm.slane %v2171, 3
    %2181 = vmatpush.msra.mxu0 %v1975
    %2182 = vmatpush.msra.mxu0 %v1971
    %2183 = vmatpush.msra.mxu0 %v1967
    %2184 = vmatpush.msra.mxu0 %v1963
    %2185 = vmatpush.msra.mxu0 %v1959
    %2186 = vmatpush.msra.mxu0 %v1955
    %2187 = vmatpush.msra.mxu0 %v1951
    %2188 = vmatpush.msra.mxu0 %v1947
    %2189 = vmatpush.msra.mxu0 %v1943
    %2190 = vmatpush.msra.mxu0 %v1939
    %2191 = vmatpush.msra.mxu0 %v1935
    %2192 = vmatpush.msra.mxu0 %v1931
    %2193 = vmatpush.msra.mxu0 %v1927
    %2194 = vmatpush.msra.mxu0 %v1923
    %2195 = vmatpush.msra.mxu0 %v1919
    %2196 = vmatpush.msra.mxu0 %v1915
    %2197 = vmatmul.f32.gmra.mxu0 %v1779
    %v2198 = vpop.f32.mrf.mxu0
    %v2199 = vadd.f32 %v2173, %v2198
    %2200 = vdwg.mxu0
    %2201 = vmatpush.msra.mxu0 %v2039
    %2202 = vmatpush.msra.mxu0 %v2035
    %2203 = vmatpush.msra.mxu0 %v2031
    %2204 = vmatpush.msra.mxu0 %v2027
    %2205 = vmatpush.msra.mxu0 %v2023
    %2206 = vmatpush.msra.mxu0 %v2019
    %2207 = vmatpush.msra.mxu0 %v2015
    %2208 = vmatpush.msra.mxu0 %v2011
    %2209 = vmatpush.msra.mxu0 %v2007
    %2210 = vmatpush.msra.mxu0 %v2003
    %2211 = vmatpush.msra.mxu0 %v1999
    %2212 = vmatpush.msra.mxu0 %v1995
    %2213 = vmatpush.msra.mxu0 %v1991
    %2214 = vmatpush.msra.mxu0 %v1987
    %2215 = vmatpush.msra.mxu0 %v1983
    %2216 = vmatpush.msra.mxu0 %v1979
    %2217 = vmatmul.f32.gmra.mxu0 %v1780
    %v2218 = vpop.f32.mrf.mxu0
    %v2219 = vadd.f32 %v2199, %v2218
    %2220 = vdwg.mxu0
    %2221 = vmatpush.msra.mxu0 %v2103
    %2222 = vmatpush.msra.mxu0 %v2099
    %2223 = vmatpush.msra.mxu0 %v2095
    %2224 = vmatpush.msra.mxu0 %v2091
    %2225 = vmatpush.msra.mxu0 %v2087
    %2226 = vmatpush.msra.mxu0 %v2083
    %2227 = vmatpush.msra.mxu0 %v2079
    %2228 = vmatpush.msra.mxu0 %v2075
    %2229 = vmatpush.msra.mxu0 %v2071
    %2230 = vmatpush.msra.mxu0 %v2067
    %2231 = vmatpush.msra.mxu0 %v2063
    %2232 = vmatpush.msra.mxu0 %v2059
    %2233 = vmatpush.msra.mxu0 %v2055
    %2234 = vmatpush.msra.mxu0 %v2051
    %2235 = vmatpush.msra.mxu0 %v2047
    %2236 = vmatpush.msra.mxu0 %v2043
    %2237 = vmatmul.f32.gmra.mxu0 %v1781
    %v2238 = vpop.f32.mrf.mxu0
    %v2239 = vadd.f32 %v2219, %v2238
    %2240 = vdwg.mxu0
    %2241 = vmatpush.msra.mxu0 %v2167
    %2242 = vmatpush.msra.mxu0 %v2163
    %2243 = vmatpush.msra.mxu0 %v2159
    %2244 = vmatpush.msra.mxu0 %v2155
    %2245 = vmatpush.msra.mxu0 %v2151
    %2246 = vmatpush.msra.mxu0 %v2147
    %2247 = vmatpush.msra.mxu0 %v2143
    %2248 = vmatpush.msra.mxu0 %v2139
    %2249 = vmatpush.msra.mxu0 %v2135
    %2250 = vmatpush.msra.mxu0 %v2131
    %2251 = vmatpush.msra.mxu0 %v2127
    %2252 = vmatpush.msra.mxu0 %v2123
    %2253 = vmatpush.msra.mxu0 %v2119
    %2254 = vmatpush.msra.mxu0 %v2115
    %2255 = vmatpush.msra.mxu0 %v2111
    %2256 = vmatpush.msra.mxu0 %v2107
    %2257 = vmatmul.f32.gmra.mxu0 %v1782
    %v2258 = vpop.f32.mrf.mxu0
    %v2259 = vadd.f32 %v2239, %v2258
    %2260 = vdwg.mxu0
    %2261 = vmatpush.msra.mxu0 %v1976
    %2262 = vmatpush.msra.mxu0 %v1972
    %2263 = vmatpush.msra.mxu0 %v1968
    %2264 = vmatpush.msra.mxu0 %v1964
    %2265 = vmatpush.msra.mxu0 %v1960
    %2266 = vmatpush.msra.mxu0 %v1956
    %2267 = vmatpush.msra.mxu0 %v1952
    %2268 = vmatpush.msra.mxu0 %v1948
    %2269 = vmatpush.msra.mxu0 %v1944
    %2270 = vmatpush.msra.mxu0 %v1940
    %2271 = vmatpush.msra.mxu0 %v1936
    %2272 = vmatpush.msra.mxu0 %v1932
    %2273 = vmatpush.msra.mxu0 %v1928
    %2274 = vmatpush.msra.mxu0 %v1924
    %2275 = vmatpush.msra.mxu0 %v1920
    %2276 = vmatpush.msra.mxu0 %v1916
    %2277 = vmatmul.f32.gmra.mxu0 %v1779
    %v2278 = vpop.f32.mrf.mxu0
    %v2279 = vadd.f32 %v2174, %v2278
    %2280 = vdwg.mxu0
    %2281 = vmatpush.msra.mxu0 %v2040
    %2282 = vmatpush.msra.mxu0 %v2036
    %2283 = vmatpush.msra.mxu0 %v2032
    %2284 = vmatpush.msra.mxu0 %v2028
    %2285 = vmatpush.msra.mxu0 %v2024
    %2286 = vmatpush.msra.mxu0 %v2020
    %2287 = vmatpush.msra.mxu0 %v2016
    %2288 = vmatpush.msra.mxu0 %v2012
    %2289 = vmatpush.msra.mxu0 %v2008
    %2290 = vmatpush.msra.mxu0 %v2004
    %2291 = vmatpush.msra.mxu0 %v2000
    %2292 = vmatpush.msra.mxu0 %v1996
    %2293 = vmatpush.msra.mxu0 %v1992
    %2294 = vmatpush.msra.mxu0 %v1988
    %2295 = vmatpush.msra.mxu0 %v1984
    %2296 = vmatpush.msra.mxu0 %v1980
    %2297 = vmatmul.f32.gmra.mxu0 %v1780
    %v2298 = vpop.f32.mrf.mxu0
    %v2299 = vadd.f32 %v2279, %v2298
    %2300 = vdwg.mxu0
    %2301 = vmatpush.msra.mxu0 %v2104
    %2302 = vmatpush.msra.mxu0 %v2100
    %2303 = vmatpush.msra.mxu0 %v2096
    %2304 = vmatpush.msra.mxu0 %v2092
    %2305 = vmatpush.msra.mxu0 %v2088
    %2306 = vmatpush.msra.mxu0 %v2084
    %2307 = vmatpush.msra.mxu0 %v2080
    %2308 = vmatpush.msra.mxu0 %v2076
    %2309 = vmatpush.msra.mxu0 %v2072
    %2310 = vmatpush.msra.mxu0 %v2068
    %2311 = vmatpush.msra.mxu0 %v2064
    %2312 = vmatpush.msra.mxu0 %v2060
    %2313 = vmatpush.msra.mxu0 %v2056
    %2314 = vmatpush.msra.mxu0 %v2052
    %2315 = vmatpush.msra.mxu0 %v2048
    %2316 = vmatpush.msra.mxu0 %v2044
    %2317 = vmatmul.f32.gmra.mxu0 %v1781
    %v2318 = vpop.f32.mrf.mxu0
    %v2319 = vadd.f32 %v2299, %v2318
    %2320 = vdwg.mxu0
    %2321 = vmatpush.msra.mxu0 %v2168
    %2322 = vmatpush.msra.mxu0 %v2164
    %2323 = vmatpush.msra.mxu0 %v2160
    %2324 = vmatpush.msra.mxu0 %v2156
    %2325 = vmatpush.msra.mxu0 %v2152
    %2326 = vmatpush.msra.mxu0 %v2148
    %2327 = vmatpush.msra.mxu0 %v2144
    %2328 = vmatpush.msra.mxu0 %v2140
    %2329 = vmatpush.msra.mxu0 %v2136
    %2330 = vmatpush.msra.mxu0 %v2132
    %2331 = vmatpush.msra.mxu0 %v2128
    %2332 = vmatpush.msra.mxu0 %v2124
    %2333 = vmatpush.msra.mxu0 %v2120
    %2334 = vmatpush.msra.mxu0 %v2116
    %2335 = vmatpush.msra.mxu0 %v2112
    %2336 = vmatpush.msra.mxu0 %v2108
    %2337 = vmatmul.f32.gmra.mxu0 %v1782
    %v2338 = vpop.f32.mrf.mxu0
    %v2339 = vadd.f32 %v2319, %v2338
    %2340 = vdwg.mxu0
    %2341 = vmatpush.msra.mxu0 %v1977
    %2342 = vmatpush.msra.mxu0 %v1973
    %2343 = vmatpush.msra.mxu0 %v1969
    %2344 = vmatpush.msra.mxu0 %v1965
    %2345 = vmatpush.msra.mxu0 %v1961
    %2346 = vmatpush.msra.mxu0 %v1957
    %2347 = vmatpush.msra.mxu0 %v1953
    %2348 = vmatpush.msra.mxu0 %v1949
    %2349 = vmatpush.msra.mxu0 %v1945
    %2350 = vmatpush.msra.mxu0 %v1941
    %2351 = vmatpush.msra.mxu0 %v1937
    %2352 = vmatpush.msra.mxu0 %v1933
    %2353 = vmatpush.msra.mxu0 %v1929
    %2354 = vmatpush.msra.mxu0 %v1925
    %2355 = vmatpush.msra.mxu0 %v1921
    %2356 = vmatpush.msra.mxu0 %v1917
    %2357 = vmatmul.f32.gmra.mxu0 %v1779
    %v2358 = vpop.f32.mrf.mxu0
    %v2359 = vadd.f32 %v2175, %v2358
    %2360 = vdwg.mxu0
    %2361 = vmatpush.msra.mxu0 %v2041
    %2362 = vmatpush.msra.mxu0 %v2037
    %2363 = vmatpush.msra.mxu0 %v2033
    %2364 = vmatpush.msra.mxu0 %v2029
    %2365 = vmatpush.msra.mxu0 %v2025
    %2366 = vmatpush.msra.mxu0 %v2021
    %2367 = vmatpush.msra.mxu0 %v2017
    %2368 = vmatpush.msra.mxu0 %v2013
    %2369 = vmatpush.msra.mxu0 %v2009
    %2370 = vmatpush.msra.mxu0 %v2005
    %2371 = vmatpush.msra.mxu0 %v2001
    %2372 = vmatpush.msra.mxu0 %v1997
    %2373 = vmatpush.msra.mxu0 %v1993
    %2374 = vmatpush.msra.mxu0 %v1989
    %2375 = vmatpush.msra.mxu0 %v1985
    %2376 = vmatpush.msra.mxu0 %v1981
    %2377 = vmatmul.f32.gmra.mxu0 %v1780
    %v2378 = vpop.f32.mrf.mxu0
    %v2379 = vadd.f32 %v2359, %v2378
    %2380 = vdwg.mxu0
    %2381 = vmatpush.msra.mxu0 %v2105
    %2382 = vmatpush.msra.mxu0 %v2101
    %2383 = vmatpush.msra.mxu0 %v2097
    %2384 = vmatpush.msra.mxu0 %v2093
    %2385 = vmatpush.msra.mxu0 %v2089
    %2386 = vmatpush.msra.mxu0 %v2085
    %2387 = vmatpush.msra.mxu0 %v2081
    %2388 = vmatpush.msra.mxu0 %v2077
    %2389 = vmatpush.msra.mxu0 %v2073
    %2390 = vmatpush.msra.mxu0 %v2069
    %2391 = vmatpush.msra.mxu0 %v2065
    %2392 = vmatpush.msra.mxu0 %v2061
    %2393 = vmatpush.msra.mxu0 %v2057
    %2394 = vmatpush.msra.mxu0 %v2053
    %2395 = vmatpush.msra.mxu0 %v2049
    %2396 = vmatpush.msra.mxu0 %v2045
    %2397 = vmatmul.f32.gmra.mxu0 %v1781
    %v2398 = vpop.f32.mrf.mxu0
    %v2399 = vadd.f32 %v2379, %v2398
    %2400 = vdwg.mxu0
    %2401 = vmatpush.msra.mxu0 %v2169
    %2402 = vmatpush.msra.mxu0 %v2165
    %2403 = vmatpush.msra.mxu0 %v2161
    %2404 = vmatpush.msra.mxu0 %v2157
    %2405 = vmatpush.msra.mxu0 %v2153
    %2406 = vmatpush.msra.mxu0 %v2149
    %2407 = vmatpush.msra.mxu0 %v2145
    %2408 = vmatpush.msra.mxu0 %v2141
    %2409 = vmatpush.msra.mxu0 %v2137
    %2410 = vmatpush.msra.mxu0 %v2133
    %2411 = vmatpush.msra.mxu0 %v2129
    %2412 = vmatpush.msra.mxu0 %v2125
    %2413 = vmatpush.msra.mxu0 %v2121
    %2414 = vmatpush.msra.mxu0 %v2117
    %2415 = vmatpush.msra.mxu0 %v2113
    %2416 = vmatpush.msra.mxu0 %v2109
    %2417 = vmatmul.f32.gmra.mxu0 %v1782
    %v2418 = vpop.f32.mrf.mxu0
    %v2419 = vadd.f32 %v2399, %v2418
    %2420 = vdwg.mxu0
    %2421 = vmatpush.msra.mxu0 %v1978
    %2422 = vmatpush.msra.mxu0 %v1974
    %2423 = vmatpush.msra.mxu0 %v1970
    %2424 = vmatpush.msra.mxu0 %v1966
    %2425 = vmatpush.msra.mxu0 %v1962
    %2426 = vmatpush.msra.mxu0 %v1958
    %2427 = vmatpush.msra.mxu0 %v1954
    %2428 = vmatpush.msra.mxu0 %v1950
    %2429 = vmatpush.msra.mxu0 %v1946
    %2430 = vmatpush.msra.mxu0 %v1942
    %2431 = vmatpush.msra.mxu0 %v1938
    %2432 = vmatpush.msra.mxu0 %v1934
    %2433 = vmatpush.msra.mxu0 %v1930
    %2434 = vmatpush.msra.mxu0 %v1926
    %2435 = vmatpush.msra.mxu0 %v1922
    %2436 = vmatpush.msra.mxu0 %v1918
    %2437 = vmatmul.f32.gmra.mxu0 %v1779
    %v2438 = vpop.f32.mrf.mxu0
    %v2439 = vadd.f32 %v2176, %v2438
    %2440 = vdwg.mxu0
    %2441 = vmatpush.msra.mxu0 %v2042
    %2442 = vmatpush.msra.mxu0 %v2038
    %2443 = vmatpush.msra.mxu0 %v2034
    %2444 = vmatpush.msra.mxu0 %v2030
    %2445 = vmatpush.msra.mxu0 %v2026
    %2446 = vmatpush.msra.mxu0 %v2022
    %2447 = vmatpush.msra.mxu0 %v2018
    %2448 = vmatpush.msra.mxu0 %v2014
    %2449 = vmatpush.msra.mxu0 %v2010
    %2450 = vmatpush.msra.mxu0 %v2006
    %2451 = vmatpush.msra.mxu0 %v2002
    %2452 = vmatpush.msra.mxu0 %v1998
    %2453 = vmatpush.msra.mxu0 %v1994
    %2454 = vmatpush.msra.mxu0 %v1990
    %2455 = vmatpush.msra.mxu0 %v1986
    %2456 = vmatpush.msra.mxu0 %v1982
    %2457 = vmatmul.f32.gmra.mxu0 %v1780
    %v2458 = vpop.f32.mrf.mxu0
    %v2459 = vadd.f32 %v2439, %v2458
    %2460 = vdwg.mxu0
    %2461 = vmatpush.msra.mxu0 %v2106
    %2462 = vmatpush.msra.mxu0 %v2102
    %2463 = vmatpush.msra.mxu0 %v2098
    %2464 = vmatpush.msra.mxu0 %v2094
    %2465 = vmatpush.msra.mxu0 %v2090
    %2466 = vmatpush.msra.mxu0 %v2086
    %2467 = vmatpush.msra.mxu0 %v2082
    %2468 = vmatpush.msra.mxu0 %v2078
    %2469 = vmatpush.msra.mxu0 %v2074
    %2470 = vmatpush.msra.mxu0 %v2070
    %2471 = vmatpush.msra.mxu0 %v2066
    %2472 = vmatpush.msra.mxu0 %v2062
    %2473 = vmatpush.msra.mxu0 %v2058
    %2474 = vmatpush.msra.mxu0 %v2054
    %2475 = vmatpush.msra.mxu0 %v2050
    %2476 = vmatpush.msra.mxu0 %v2046
    %2477 = vmatmul.f32.gmra.mxu0 %v1781
    %v2478 = vpop.f32.mrf.mxu0
    %v2479 = vadd.f32 %v2459, %v2478
    %2480 = vdwg.mxu0
    %2481 = vmatpush.msra.mxu0 %v2170
    %2482 = vmatpush.msra.mxu0 %v2166
    %2483 = vmatpush.msra.mxu0 %v2162
    %2484 = vmatpush.msra.mxu0 %v2158
    %2485 = vmatpush.msra.mxu0 %v2154
    %2486 = vmatpush.msra.mxu0 %v2150
    %2487 = vmatpush.msra.mxu0 %v2146
    %2488 = vmatpush.msra.mxu0 %v2142
    %2489 = vmatpush.msra.mxu0 %v2138
    %2490 = vmatpush.msra.mxu0 %v2134
    %2491 = vmatpush.msra.mxu0 %v2130
    %2492 = vmatpush.msra.mxu0 %v2126
    %2493 = vmatpush.msra.mxu0 %v2122
    %2494 = vmatpush.msra.mxu0 %v2118
    %2495 = vmatpush.msra.mxu0 %v2114
    %2496 = vmatpush.msra.mxu0 %v2110
    %2497 = vmatmul.f32.gmra.mxu0 %v1782
    %v2498 = vpop.f32.mrf.mxu0
    %v2499 = vadd.f32 %v2479, %v2498
    %2500 = vdwg.mxu0
    %v2501 = vtanh.pop %v2259
    %v2502 = vtanh.pop %v2339
    %v2503 = vtanh.pop %v2419
    %v2504 = vtanh.pop %v2499
    %s2505 = sshll.u32 %s1784, 4
    %2506 = dma.done %s86, %s2505
    %v2507 = vld [vmem:[#allocation5] sm:$0xff]
    %v2508 = vld [vmem:[#allocation5 + $0x8] sm:$0xff]
    %v2509 = vld [vmem:[#allocation5 + $0x10] sm:$0xff]
    %v2510 = vld [vmem:[#allocation5 + $0x18] sm:$0xff]
    %v2511 = vld [vmem:[#allocation5 + $0x20] sm:$0xff]
    %v2512 = vld [vmem:[#allocation5 + $0x28] sm:$0xff]
    %v2513 = vld [vmem:[#allocation5 + $0x30] sm:$0xff]
    %v2514 = vld [vmem:[#allocation5 + $0x38] sm:$0xff]
    %v2515 = vld [vmem:[#allocation5 + $0x40] sm:$0xff]
    %v2516 = vld [vmem:[#allocation5 + $0x48] sm:$0xff]
    %v2517 = vld [vmem:[#allocation5 + $0x50] sm:$0xff]
    %v2518 = vld [vmem:[#allocation5 + $0x58] sm:$0xff]
    %v2519 = vld [vmem:[#allocation5 + $0x60] sm:$0xff]
    %v2520 = vld [vmem:[#allocation5 + $0x68] sm:$0xff]
    %v2521 = vld [vmem:[#allocation5 + $0x70] sm:$0xff]
    %v2522 = vld [vmem:[#allocation5 + $0x78] sm:$0xff]
    %v2523 = vld [vmem:[#allocation5 + $0x80] sm:$0xff]
    %v2524 = vld [vmem:[#allocation5 + $0x88] sm:$0xff]
    %v2525 = vld [vmem:[#allocation5 + $0x90] sm:$0xff]
    %v2526 = vld [vmem:[#allocation5 + $0x98] sm:$0xff]
    %v2527 = vld [vmem:[#allocation5 + $0xa0] sm:$0xff]
    %v2528 = vld [vmem:[#allocation5 + $0xa8] sm:$0xff]
    %v2529 = vld [vmem:[#allocation5 + $0xb0] sm:$0xff]
    %v2530 = vld [vmem:[#allocation5 + $0xb8] sm:$0xff]
    %v2531 = vld [vmem:[#allocation5 + $0xc0] sm:$0xff]
    %v2532 = vld [vmem:[#allocation5 + $0xc8] sm:$0xff]
    %v2533 = vld [vmem:[#allocation5 + $0xd0] sm:$0xff]
    %v2534 = vld [vmem:[#allocation5 + $0xd8] sm:$0xff]
    %v2535 = vld [vmem:[#allocation5 + $0xe0] sm:$0xff]
    %v2536 = vld [vmem:[#allocation5 + $0xe8] sm:$0xff]
    %v2537 = vld [vmem:[#allocation5 + $0xf0] sm:$0xff]
    %v2538 = vld [vmem:[#allocation5 + $0xf8] sm:$0xff]
    %v2539 = vld [vmem:[#allocation5 + $0x100] sm:$0xff]
    %v2540 = vld [vmem:[#allocation5 + $0x108] sm:$0xff]
    %v2541 = vld [vmem:[#allocation5 + $0x110] sm:$0xff]
    %v2542 = vld [vmem:[#allocation5 + $0x118] sm:$0xff]
    %v2543 = vld [vmem:[#allocation5 + $0x120] sm:$0xff]
    %v2544 = vld [vmem:[#allocation5 + $0x128] sm:$0xff]
    %v2545 = vld [vmem:[#allocation5 + $0x130] sm:$0xff]
    %v2546 = vld [vmem:[#allocation5 + $0x138] sm:$0xff]
    %v2547 = vld [vmem:[#allocation5 + $0x140] sm:$0xff]
    %v2548 = vld [vmem:[#allocation5 + $0x148] sm:$0xff]
    %v2549 = vld [vmem:[#allocation5 + $0x150] sm:$0xff]
    %v2550 = vld [vmem:[#allocation5 + $0x158] sm:$0xff]
    %v2551 = vld [vmem:[#allocation5 + $0x160] sm:$0xff]
    %v2552 = vld [vmem:[#allocation5 + $0x168] sm:$0xff]
    %v2553 = vld [vmem:[#allocation5 + $0x170] sm:$0xff]
    %v2554 = vld [vmem:[#allocation5 + $0x178] sm:$0xff]
    %v2555 = vld [vmem:[#allocation5 + $0x180] sm:$0xff]
    %v2556 = vld [vmem:[#allocation5 + $0x188] sm:$0xff]
    %v2557 = vld [vmem:[#allocation5 + $0x190] sm:$0xff]
    %v2558 = vld [vmem:[#allocation5 + $0x198] sm:$0xff]
    %v2559 = vld [vmem:[#allocation5 + $0x1a0] sm:$0xff]
    %v2560 = vld [vmem:[#allocation5 + $0x1a8] sm:$0xff]
    %v2561 = vld [vmem:[#allocation5 + $0x1b0] sm:$0xff]
    %v2562 = vld [vmem:[#allocation5 + $0x1b8] sm:$0xff]
    %v2563 = vld [vmem:[#allocation5 + $0x1c0] sm:$0xff]
    %v2564 = vld [vmem:[#allocation5 + $0x1c8] sm:$0xff]
    %v2565 = vld [vmem:[#allocation5 + $0x1d0] sm:$0xff]
    %v2566 = vld [vmem:[#allocation5 + $0x1d8] sm:$0xff]
    %v2567 = vld [vmem:[#allocation5 + $0x1e0] sm:$0xff]
    %v2568 = vld [vmem:[#allocation5 + $0x1e8] sm:$0xff]
    %v2569 = vld [vmem:[#allocation5 + $0x1f0] sm:$0xff]
    %v2570 = vld [vmem:[#allocation5 + $0x1f8] sm:$0xff]
    %v2571 = vld [vmem:[#allocation5 + $0x200] sm:$0xff]
    %v2572 = vld [vmem:[#allocation5 + $0x208] sm:$0xff]
    %v2573 = vld [vmem:[#allocation5 + $0x210] sm:$0xff]
    %v2574 = vld [vmem:[#allocation5 + $0x218] sm:$0xff]
    %v2575 = vld [vmem:[#allocation5 + $0x220] sm:$0xff]
    %v2576 = vld [vmem:[#allocation5 + $0x228] sm:$0xff]
    %v2577 = vld [vmem:[#allocation5 + $0x230] sm:$0xff]
    %v2578 = vld [vmem:[#allocation5 + $0x238] sm:$0xff]
    %v2579 = vld [vmem:[#allocation5 + $0x240] sm:$0xff]
    %v2580 = vld [vmem:[#allocation5 + $0x248] sm:$0xff]
    %v2581 = vld [vmem:[#allocation5 + $0x250] sm:$0xff]
    %v2582 = vld [vmem:[#allocation5 + $0x258] sm:$0xff]
    %v2583 = vld [vmem:[#allocation5 + $0x260] sm:$0xff]
    %v2584 = vld [vmem:[#allocation5 + $0x268] sm:$0xff]
    %v2585 = vld [vmem:[#allocation5 + $0x270] sm:$0xff]
    %v2586 = vld [vmem:[#allocation5 + $0x278] sm:$0xff]
    %v2587 = vld [vmem:[#allocation5 + $0x280] sm:$0xff]
    %v2588 = vld [vmem:[#allocation5 + $0x288] sm:$0xff]
    %v2589 = vld [vmem:[#allocation5 + $0x290] sm:$0xff]
    %v2590 = vld [vmem:[#allocation5 + $0x298] sm:$0xff]
    %v2591 = vld [vmem:[#allocation5 + $0x2a0] sm:$0xff]
    %v2592 = vld [vmem:[#allocation5 + $0x2a8] sm:$0xff]
    %v2593 = vld [vmem:[#allocation5 + $0x2b0] sm:$0xff]
    %v2594 = vld [vmem:[#allocation5 + $0x2b8] sm:$0xff]
    %v2595 = vld [vmem:[#allocation5 + $0x2c0] sm:$0xff]
    %v2596 = vld [vmem:[#allocation5 + $0x2c8] sm:$0xff]
    %v2597 = vld [vmem:[#allocation5 + $0x2d0] sm:$0xff]
    %v2598 = vld [vmem:[#allocation5 + $0x2d8] sm:$0xff]
    %v2599 = vld [vmem:[#allocation5 + $0x2e0] sm:$0xff]
    %v2600 = vld [vmem:[#allocation5 + $0x2e8] sm:$0xff]
    %v2601 = vld [vmem:[#allocation5 + $0x2f0] sm:$0xff]
    %v2602 = vld [vmem:[#allocation5 + $0x2f8] sm:$0xff]
    %v2603 = vld [vmem:[#allocation5 + $0x300] sm:$0xff]
    %v2604 = vld [vmem:[#allocation5 + $0x308] sm:$0xff]
    %v2605 = vld [vmem:[#allocation5 + $0x310] sm:$0xff]
    %v2606 = vld [vmem:[#allocation5 + $0x318] sm:$0xff]
    %v2607 = vld [vmem:[#allocation5 + $0x320] sm:$0xff]
    %v2608 = vld [vmem:[#allocation5 + $0x328] sm:$0xff]
    %v2609 = vld [vmem:[#allocation5 + $0x330] sm:$0xff]
    %v2610 = vld [vmem:[#allocation5 + $0x338] sm:$0xff]
    %v2611 = vld [vmem:[#allocation5 + $0x340] sm:$0xff]
    %v2612 = vld [vmem:[#allocation5 + $0x348] sm:$0xff]
    %v2613 = vld [vmem:[#allocation5 + $0x350] sm:$0xff]
    %v2614 = vld [vmem:[#allocation5 + $0x358] sm:$0xff]
    %v2615 = vld [vmem:[#allocation5 + $0x360] sm:$0xff]
    %v2616 = vld [vmem:[#allocation5 + $0x368] sm:$0xff]
    %v2617 = vld [vmem:[#allocation5 + $0x370] sm:$0xff]
    %v2618 = vld [vmem:[#allocation5 + $0x378] sm:$0xff]
    %v2619 = vld [vmem:[#allocation5 + $0x380] sm:$0xff]
    %v2620 = vld [vmem:[#allocation5 + $0x388] sm:$0xff]
    %v2621 = vld [vmem:[#allocation5 + $0x390] sm:$0xff]
    %v2622 = vld [vmem:[#allocation5 + $0x398] sm:$0xff]
    %v2623 = vld [vmem:[#allocation5 + $0x3a0] sm:$0xff]
    %v2624 = vld [vmem:[#allocation5 + $0x3a8] sm:$0xff]
    %v2625 = vld [vmem:[#allocation5 + $0x3b0] sm:$0xff]
    %v2626 = vld [vmem:[#allocation5 + $0x3b8] sm:$0xff]
    %v2627 = vld [vmem:[#allocation5 + $0x3c0] sm:$0xff]
    %v2628 = vld [vmem:[#allocation5 + $0x3c8] sm:$0xff]
    %v2629 = vld [vmem:[#allocation5 + $0x3d0] sm:$0xff]
    %v2630 = vld [vmem:[#allocation5 + $0x3d8] sm:$0xff]
    %v2631 = vld [vmem:[#allocation5 + $0x3e0] sm:$0xff]
    %v2632 = vld [vmem:[#allocation5 + $0x3e8] sm:$0xff]
    %v2633 = vld [vmem:[#allocation5 + $0x3f0] sm:$0xff]
    %v2634 = vld [vmem:[#allocation5 + $0x3f8] sm:$0xff]
    %v2635 = vunpack.c.l.bf16 %v2507
    %v2636 = vunpack.c.h.bf16 %v2507
    %v2637 = vunpack.c.l.bf16 %v2508
    %v2638 = vunpack.c.h.bf16 %v2508
    %v2639 = vunpack.c.l.bf16 %v2509
    %v2640 = vunpack.c.h.bf16 %v2509
    %v2641 = vunpack.c.l.bf16 %v2510
    %v2642 = vunpack.c.h.bf16 %v2510
    %v2643 = vunpack.c.l.bf16 %v2511
    %v2644 = vunpack.c.h.bf16 %v2511
    %v2645 = vunpack.c.l.bf16 %v2512
    %v2646 = vunpack.c.h.bf16 %v2512
    %v2647 = vunpack.c.l.bf16 %v2513
    %v2648 = vunpack.c.h.bf16 %v2513
    %v2649 = vunpack.c.l.bf16 %v2514
    %v2650 = vunpack.c.h.bf16 %v2514
    %v2651 = vunpack.c.l.bf16 %v2515
    %v2652 = vunpack.c.h.bf16 %v2515
    %v2653 = vunpack.c.l.bf16 %v2516
    %v2654 = vunpack.c.h.bf16 %v2516
    %v2655 = vunpack.c.l.bf16 %v2517
    %v2656 = vunpack.c.h.bf16 %v2517
    %v2657 = vunpack.c.l.bf16 %v2518
    %v2658 = vunpack.c.h.bf16 %v2518
    %v2659 = vunpack.c.l.bf16 %v2519
    %v2660 = vunpack.c.h.bf16 %v2519
    %v2661 = vunpack.c.l.bf16 %v2520
    %v2662 = vunpack.c.h.bf16 %v2520
    %v2663 = vunpack.c.l.bf16 %v2521
    %v2664 = vunpack.c.h.bf16 %v2521
    %v2665 = vunpack.c.l.bf16 %v2522
    %v2666 = vunpack.c.h.bf16 %v2522
    %v2667 = vunpack.c.l.bf16 %v2523
    %v2668 = vunpack.c.h.bf16 %v2523
    %v2669 = vunpack.c.l.bf16 %v2524
    %v2670 = vunpack.c.h.bf16 %v2524
    %v2671 = vunpack.c.l.bf16 %v2525
    %v2672 = vunpack.c.h.bf16 %v2525
    %v2673 = vunpack.c.l.bf16 %v2526
    %v2674 = vunpack.c.h.bf16 %v2526
    %v2675 = vunpack.c.l.bf16 %v2527
    %v2676 = vunpack.c.h.bf16 %v2527
    %v2677 = vunpack.c.l.bf16 %v2528
    %v2678 = vunpack.c.h.bf16 %v2528
    %v2679 = vunpack.c.l.bf16 %v2529
    %v2680 = vunpack.c.h.bf16 %v2529
    %v2681 = vunpack.c.l.bf16 %v2530
    %v2682 = vunpack.c.h.bf16 %v2530
    %v2683 = vunpack.c.l.bf16 %v2531
    %v2684 = vunpack.c.h.bf16 %v2531
    %v2685 = vunpack.c.l.bf16 %v2532
    %v2686 = vunpack.c.h.bf16 %v2532
    %v2687 = vunpack.c.l.bf16 %v2533
    %v2688 = vunpack.c.h.bf16 %v2533
    %v2689 = vunpack.c.l.bf16 %v2534
    %v2690 = vunpack.c.h.bf16 %v2534
    %v2691 = vunpack.c.l.bf16 %v2535
    %v2692 = vunpack.c.h.bf16 %v2535
    %v2693 = vunpack.c.l.bf16 %v2536
    %v2694 = vunpack.c.h.bf16 %v2536
    %v2695 = vunpack.c.l.bf16 %v2537
    %v2696 = vunpack.c.h.bf16 %v2537
    %v2697 = vunpack.c.l.bf16 %v2538
    %v2698 = vunpack.c.h.bf16 %v2538
    %v2699 = vunpack.c.l.bf16 %v2539
    %v2700 = vunpack.c.h.bf16 %v2539
    %v2701 = vunpack.c.l.bf16 %v2540
    %v2702 = vunpack.c.h.bf16 %v2540
    %v2703 = vunpack.c.l.bf16 %v2541
    %v2704 = vunpack.c.h.bf16 %v2541
    %v2705 = vunpack.c.l.bf16 %v2542
    %v2706 = vunpack.c.h.bf16 %v2542
    %v2707 = vunpack.c.l.bf16 %v2543
    %v2708 = vunpack.c.h.bf16 %v2543
    %v2709 = vunpack.c.l.bf16 %v2544
    %v2710 = vunpack.c.h.bf16 %v2544
    %v2711 = vunpack.c.l.bf16 %v2545
    %v2712 = vunpack.c.h.bf16 %v2545
    %v2713 = vunpack.c.l.bf16 %v2546
    %v2714 = vunpack.c.h.bf16 %v2546
    %v2715 = vunpack.c.l.bf16 %v2547
    %v2716 = vunpack.c.h.bf16 %v2547
    %v2717 = vunpack.c.l.bf16 %v2548
    %v2718 = vunpack.c.h.bf16 %v2548
    %v2719 = vunpack.c.l.bf16 %v2549
    %v2720 = vunpack.c.h.bf16 %v2549
    %v2721 = vunpack.c.l.bf16 %v2550
    %v2722 = vunpack.c.h.bf16 %v2550
    %v2723 = vunpack.c.l.bf16 %v2551
    %v2724 = vunpack.c.h.bf16 %v2551
    %v2725 = vunpack.c.l.bf16 %v2552
    %v2726 = vunpack.c.h.bf16 %v2552
    %v2727 = vunpack.c.l.bf16 %v2553
    %v2728 = vunpack.c.h.bf16 %v2553
    %v2729 = vunpack.c.l.bf16 %v2554
    %v2730 = vunpack.c.h.bf16 %v2554
    %v2731 = vunpack.c.l.bf16 %v2555
    %v2732 = vunpack.c.h.bf16 %v2555
    %v2733 = vunpack.c.l.bf16 %v2556
    %v2734 = vunpack.c.h.bf16 %v2556
    %v2735 = vunpack.c.l.bf16 %v2557
    %v2736 = vunpack.c.h.bf16 %v2557
    %v2737 = vunpack.c.l.bf16 %v2558
    %v2738 = vunpack.c.h.bf16 %v2558
    %v2739 = vunpack.c.l.bf16 %v2559
    %v2740 = vunpack.c.h.bf16 %v2559
    %v2741 = vunpack.c.l.bf16 %v2560
    %v2742 = vunpack.c.h.bf16 %v2560
    %v2743 = vunpack.c.l.bf16 %v2561
    %v2744 = vunpack.c.h.bf16 %v2561
    %v2745 = vunpack.c.l.bf16 %v2562
    %v2746 = vunpack.c.h.bf16 %v2562
    %v2747 = vunpack.c.l.bf16 %v2563
    %v2748 = vunpack.c.h.bf16 %v2563
    %v2749 = vunpack.c.l.bf16 %v2564
    %v2750 = vunpack.c.h.bf16 %v2564
    %v2751 = vunpack.c.l.bf16 %v2565
    %v2752 = vunpack.c.h.bf16 %v2565
    %v2753 = vunpack.c.l.bf16 %v2566
    %v2754 = vunpack.c.h.bf16 %v2566
    %v2755 = vunpack.c.l.bf16 %v2567
    %v2756 = vunpack.c.h.bf16 %v2567
    %v2757 = vunpack.c.l.bf16 %v2568
    %v2758 = vunpack.c.h.bf16 %v2568
    %v2759 = vunpack.c.l.bf16 %v2569
    %v2760 = vunpack.c.h.bf16 %v2569
    %v2761 = vunpack.c.l.bf16 %v2570
    %v2762 = vunpack.c.h.bf16 %v2570
    %v2763 = vunpack.c.l.bf16 %v2571
    %v2764 = vunpack.c.h.bf16 %v2571
    %v2765 = vunpack.c.l.bf16 %v2572
    %v2766 = vunpack.c.h.bf16 %v2572
    %v2767 = vunpack.c.l.bf16 %v2573
    %v2768 = vunpack.c.h.bf16 %v2573
    %v2769 = vunpack.c.l.bf16 %v2574
    %v2770 = vunpack.c.h.bf16 %v2574
    %v2771 = vunpack.c.l.bf16 %v2575
    %v2772 = vunpack.c.h.bf16 %v2575
    %v2773 = vunpack.c.l.bf16 %v2576
    %v2774 = vunpack.c.h.bf16 %v2576
    %v2775 = vunpack.c.l.bf16 %v2577
    %v2776 = vunpack.c.h.bf16 %v2577
    %v2777 = vunpack.c.l.bf16 %v2578
    %v2778 = vunpack.c.h.bf16 %v2578
    %v2779 = vunpack.c.l.bf16 %v2579
    %v2780 = vunpack.c.h.bf16 %v2579
    %v2781 = vunpack.c.l.bf16 %v2580
    %v2782 = vunpack.c.h.bf16 %v2580
    %v2783 = vunpack.c.l.bf16 %v2581
    %v2784 = vunpack.c.h.bf16 %v2581
    %v2785 = vunpack.c.l.bf16 %v2582
    %v2786 = vunpack.c.h.bf16 %v2582
    %v2787 = vunpack.c.l.bf16 %v2583
    %v2788 = vunpack.c.h.bf16 %v2583
    %v2789 = vunpack.c.l.bf16 %v2584
    %v2790 = vunpack.c.h.bf16 %v2584
    %v2791 = vunpack.c.l.bf16 %v2585
    %v2792 = vunpack.c.h.bf16 %v2585
    %v2793 = vunpack.c.l.bf16 %v2586
    %v2794 = vunpack.c.h.bf16 %v2586
    %v2795 = vunpack.c.l.bf16 %v2587
    %v2796 = vunpack.c.h.bf16 %v2587
    %v2797 = vunpack.c.l.bf16 %v2588
    %v2798 = vunpack.c.h.bf16 %v2588
    %v2799 = vunpack.c.l.bf16 %v2589
    %v2800 = vunpack.c.h.bf16 %v2589
    %v2801 = vunpack.c.l.bf16 %v2590
    %v2802 = vunpack.c.h.bf16 %v2590
    %v2803 = vunpack.c.l.bf16 %v2591
    %v2804 = vunpack.c.h.bf16 %v2591
    %v2805 = vunpack.c.l.bf16 %v2592
    %v2806 = vunpack.c.h.bf16 %v2592
    %v2807 = vunpack.c.l.bf16 %v2593
    %v2808 = vunpack.c.h.bf16 %v2593
    %v2809 = vunpack.c.l.bf16 %v2594
    %v2810 = vunpack.c.h.bf16 %v2594
    %v2811 = vunpack.c.l.bf16 %v2595
    %v2812 = vunpack.c.h.bf16 %v2595
    %v2813 = vunpack.c.l.bf16 %v2596
    %v2814 = vunpack.c.h.bf16 %v2596
    %v2815 = vunpack.c.l.bf16 %v2597
    %v2816 = vunpack.c.h.bf16 %v2597
    %v2817 = vunpack.c.l.bf16 %v2598
    %v2818 = vunpack.c.h.bf16 %v2598
    %v2819 = vunpack.c.l.bf16 %v2599
    %v2820 = vunpack.c.h.bf16 %v2599
    %v2821 = vunpack.c.l.bf16 %v2600
    %v2822 = vunpack.c.h.bf16 %v2600
    %v2823 = vunpack.c.l.bf16 %v2601
    %v2824 = vunpack.c.h.bf16 %v2601
    %v2825 = vunpack.c.l.bf16 %v2602
    %v2826 = vunpack.c.h.bf16 %v2602
    %v2827 = vunpack.c.l.bf16 %v2603
    %v2828 = vunpack.c.h.bf16 %v2603
    %v2829 = vunpack.c.l.bf16 %v2604
    %v2830 = vunpack.c.h.bf16 %v2604
    %v2831 = vunpack.c.l.bf16 %v2605
    %v2832 = vunpack.c.h.bf16 %v2605
    %v2833 = vunpack.c.l.bf16 %v2606
    %v2834 = vunpack.c.h.bf16 %v2606
    %v2835 = vunpack.c.l.bf16 %v2607
    %v2836 = vunpack.c.h.bf16 %v2607
    %v2837 = vunpack.c.l.bf16 %v2608
    %v2838 = vunpack.c.h.bf16 %v2608
    %v2839 = vunpack.c.l.bf16 %v2609
    %v2840 = vunpack.c.h.bf16 %v2609
    %v2841 = vunpack.c.l.bf16 %v2610
    %v2842 = vunpack.c.h.bf16 %v2610
    %v2843 = vunpack.c.l.bf16 %v2611
    %v2844 = vunpack.c.h.bf16 %v2611
    %v2845 = vunpack.c.l.bf16 %v2612
    %v2846 = vunpack.c.h.bf16 %v2612
    %v2847 = vunpack.c.l.bf16 %v2613
    %v2848 = vunpack.c.h.bf16 %v2613
    %v2849 = vunpack.c.l.bf16 %v2614
    %v2850 = vunpack.c.h.bf16 %v2614
    %v2851 = vunpack.c.l.bf16 %v2615
    %v2852 = vunpack.c.h.bf16 %v2615
    %v2853 = vunpack.c.l.bf16 %v2616
    %v2854 = vunpack.c.h.bf16 %v2616
    %v2855 = vunpack.c.l.bf16 %v2617
    %v2856 = vunpack.c.h.bf16 %v2617
    %v2857 = vunpack.c.l.bf16 %v2618
    %v2858 = vunpack.c.h.bf16 %v2618
    %v2859 = vunpack.c.l.bf16 %v2619
    %v2860 = vunpack.c.h.bf16 %v2619
    %v2861 = vunpack.c.l.bf16 %v2620
    %v2862 = vunpack.c.h.bf16 %v2620
    %v2863 = vunpack.c.l.bf16 %v2621
    %v2864 = vunpack.c.h.bf16 %v2621
    %v2865 = vunpack.c.l.bf16 %v2622
    %v2866 = vunpack.c.h.bf16 %v2622
    %v2867 = vunpack.c.l.bf16 %v2623
    %v2868 = vunpack.c.h.bf16 %v2623
    %v2869 = vunpack.c.l.bf16 %v2624
    %v2870 = vunpack.c.h.bf16 %v2624
    %v2871 = vunpack.c.l.bf16 %v2625
    %v2872 = vunpack.c.h.bf16 %v2625
    %v2873 = vunpack.c.l.bf16 %v2626
    %v2874 = vunpack.c.h.bf16 %v2626
    %v2875 = vunpack.c.l.bf16 %v2627
    %v2876 = vunpack.c.h.bf16 %v2627
    %v2877 = vunpack.c.l.bf16 %v2628
    %v2878 = vunpack.c.h.bf16 %v2628
    %v2879 = vunpack.c.l.bf16 %v2629
    %v2880 = vunpack.c.h.bf16 %v2629
    %v2881 = vunpack.c.l.bf16 %v2630
    %v2882 = vunpack.c.h.bf16 %v2630
    %v2883 = vunpack.c.l.bf16 %v2631
    %v2884 = vunpack.c.h.bf16 %v2631
    %v2885 = vunpack.c.l.bf16 %v2632
    %v2886 = vunpack.c.h.bf16 %v2632
    %v2887 = vunpack.c.l.bf16 %v2633
    %v2888 = vunpack.c.h.bf16 %v2633
    %v2889 = vunpack.c.l.bf16 %v2634
    %v2890 = vunpack.c.h.bf16 %v2634
    %v2891 = vld [vmem:[#allocation11 + $0x10] sm:$0xf]
    %v2893 = vperm.slane %v2891, 0
    %v2894 = vperm.slane %v2891, 1
    %v2895 = vperm.slane %v2891, 2
    %v2896 = vperm.slane %v2891, 3
    %2901 = vmatpush.msra.mxu0 %v2695
    %2902 = vmatpush.msra.mxu0 %v2691
    %2903 = vmatpush.msra.mxu0 %v2687
    %2904 = vmatpush.msra.mxu0 %v2683
    %2905 = vmatpush.msra.mxu0 %v2679
    %2906 = vmatpush.msra.mxu0 %v2675
    %2907 = vmatpush.msra.mxu0 %v2671
    %2908 = vmatpush.msra.mxu0 %v2667
    %2909 = vmatpush.msra.mxu0 %v2663
    %2910 = vmatpush.msra.mxu0 %v2659
    %2911 = vmatpush.msra.mxu0 %v2655
    %2912 = vmatpush.msra.mxu0 %v2651
    %2913 = vmatpush.msra.mxu0 %v2647
    %2914 = vmatpush.msra.mxu0 %v2643
    %2915 = vmatpush.msra.mxu0 %v2639
    %2916 = vmatpush.msra.mxu0 %v2635
    %2917 = vmatmul.f32.gmra.mxu0 %v2501
    %v2918 = vpop.f32.mrf.mxu0
    %v2919 = vadd.f32 %v2893, %v2918
    %2920 = vdwg.mxu0
    %2921 = vmatpush.msra.mxu0 %v2759
    %2922 = vmatpush.msra.mxu0 %v2755
    %2923 = vmatpush.msra.mxu0 %v2751
    %2924 = vmatpush.msra.mxu0 %v2747
    %2925 = vmatpush.msra.mxu0 %v2743
    %2926 = vmatpush.msra.mxu0 %v2739
    %2927 = vmatpush.msra.mxu0 %v2735
    %2928 = vmatpush.msra.mxu0 %v2731
    %2929 = vmatpush.msra.mxu0 %v2727
    %2930 = vmatpush.msra.mxu0 %v2723
    %2931 = vmatpush.msra.mxu0 %v2719
    %2932 = vmatpush.msra.mxu0 %v2715
    %2933 = vmatpush.msra.mxu0 %v2711
    %2934 = vmatpush.msra.mxu0 %v2707
    %2935 = vmatpush.msra.mxu0 %v2703
    %2936 = vmatpush.msra.mxu0 %v2699
    %2937 = vmatmul.f32.gmra.mxu0 %v2502
    %v2938 = vpop.f32.mrf.mxu0
    %v2939 = vadd.f32 %v2919, %v2938
    %2940 = vdwg.mxu0
    %2941 = vmatpush.msra.mxu0 %v2823
    %2942 = vmatpush.msra.mxu0 %v2819
    %2943 = vmatpush.msra.mxu0 %v2815
    %2944 = vmatpush.msra.mxu0 %v2811
    %2945 = vmatpush.msra.mxu0 %v2807
    %2946 = vmatpush.msra.mxu0 %v2803
    %2947 = vmatpush.msra.mxu0 %v2799
    %2948 = vmatpush.msra.mxu0 %v2795
    %2949 = vmatpush.msra.mxu0 %v2791
    %2950 = vmatpush.msra.mxu0 %v2787
    %2951 = vmatpush.msra.mxu0 %v2783
    %2952 = vmatpush.msra.mxu0 %v2779
    %2953 = vmatpush.msra.mxu0 %v2775
    %2954 = vmatpush.msra.mxu0 %v2771
    %2955 = vmatpush.msra.mxu0 %v2767
    %2956 = vmatpush.msra.mxu0 %v2763
    %2957 = vmatmul.f32.gmra.mxu0 %v2503
    %v2958 = vpop.f32.mrf.mxu0
    %v2959 = vadd.f32 %v2939, %v2958
    %2960 = vdwg.mxu0
    %2961 = vmatpush.msra.mxu0 %v2887
    %2962 = vmatpush.msra.mxu0 %v2883
    %2963 = vmatpush.msra.mxu0 %v2879
    %2964 = vmatpush.msra.mxu0 %v2875
    %2965 = vmatpush.msra.mxu0 %v2871
    %2966 = vmatpush.msra.mxu0 %v2867
    %2967 = vmatpush.msra.mxu0 %v2863
    %2968 = vmatpush.msra.mxu0 %v2859
    %2969 = vmatpush.msra.mxu0 %v2855
    %2970 = vmatpush.msra.mxu0 %v2851
    %2971 = vmatpush.msra.mxu0 %v2847
    %2972 = vmatpush.msra.mxu0 %v2843
    %2973 = vmatpush.msra.mxu0 %v2839
    %2974 = vmatpush.msra.mxu0 %v2835
    %2975 = vmatpush.msra.mxu0 %v2831
    %2976 = vmatpush.msra.mxu0 %v2827
    %2977 = vmatmul.f32.gmra.mxu0 %v2504
    %v2978 = vpop.f32.mrf.mxu0
    %v2979 = vadd.f32 %v2959, %v2978
    %2980 = vdwg.mxu0
    %2981 = vmatpush.msra.mxu0 %v2696
    %2982 = vmatpush.msra.mxu0 %v2692
    %2983 = vmatpush.msra.mxu0 %v2688
    %2984 = vmatpush.msra.mxu0 %v2684
    %2985 = vmatpush.msra.mxu0 %v2680
    %2986 = vmatpush.msra.mxu0 %v2676
    %2987 = vmatpush.msra.mxu0 %v2672
    %2988 = vmatpush.msra.mxu0 %v2668
    %2989 = vmatpush.msra.mxu0 %v2664
    %2990 = vmatpush.msra.mxu0 %v2660
    %2991 = vmatpush.msra.mxu0 %v2656
    %2992 = vmatpush.msra.mxu0 %v2652
    %2993 = vmatpush.msra.mxu0 %v2648
    %2994 = vmatpush.msra.mxu0 %v2644
    %2995 = vmatpush.msra.mxu0 %v2640
    %2996 = vmatpush.msra.mxu0 %v2636
    %2997 = vmatmul.f32.gmra.mxu0 %v2501
    %v2998 = vpop.f32.mrf.mxu0
    %v2999 = vadd.f32 %v2894, %v2998
    %3000 = vdwg.mxu0
    %3001 = vmatpush.msra.mxu0 %v2760
    %3002 = vmatpush.msra.mxu0 %v2756
    %3003 = vmatpush.msra.mxu0 %v2752
    %3004 = vmatpush.msra.mxu0 %v2748
    %3005 = vmatpush.msra.mxu0 %v2744
    %3006 = vmatpush.msra.mxu0 %v2740
    %3007 = vmatpush.msra.mxu0 %v2736
    %3008 = vmatpush.msra.mxu0 %v2732
    %3009 = vmatpush.msra.mxu0 %v2728
    %3010 = vmatpush.msra.mxu0 %v2724
    %3011 = vmatpush.msra.mxu0 %v2720
    %3012 = vmatpush.msra.mxu0 %v2716
    %3013 = vmatpush.msra.mxu0 %v2712
    %3014 = vmatpush.msra.mxu0 %v2708
    %3015 = vmatpush.msra.mxu0 %v2704
    %3016 = vmatpush.msra.mxu0 %v2700
    %3017 = vmatmul.f32.gmra.mxu0 %v2502
    %v3018 = vpop.f32.mrf.mxu0
    %v3019 = vadd.f32 %v2999, %v3018
    %3020 = vdwg.mxu0
    %3021 = vmatpush.msra.mxu0 %v2824
    %3022 = vmatpush.msra.mxu0 %v2820
    %3023 = vmatpush.msra.mxu0 %v2816
    %3024 = vmatpush.msra.mxu0 %v2812
    %3025 = vmatpush.msra.mxu0 %v2808
    %3026 = vmatpush.msra.mxu0 %v2804
    %3027 = vmatpush.msra.mxu0 %v2800
    %3028 = vmatpush.msra.mxu0 %v2796
    %3029 = vmatpush.msra.mxu0 %v2792
    %3030 = vmatpush.msra.mxu0 %v2788
    %3031 = vmatpush.msra.mxu0 %v2784
    %3032 = vmatpush.msra.mxu0 %v2780
    %3033 = vmatpush.msra.mxu0 %v2776
    %3034 = vmatpush.msra.mxu0 %v2772
    %3035 = vmatpush.msra.mxu0 %v2768
    %3036 = vmatpush.msra.mxu0 %v2764
    %3037 = vmatmul.f32.gmra.mxu0 %v2503
    %v3038 = vpop.f32.mrf.mxu0
    %v3039 = vadd.f32 %v3019, %v3038
    %3040 = vdwg.mxu0
    %3041 = vmatpush.msra.mxu0 %v2888
    %3042 = vmatpush.msra.mxu0 %v2884
    %3043 = vmatpush.msra.mxu0 %v2880
    %3044 = vmatpush.msra.mxu0 %v2876
    %3045 = vmatpush.msra.mxu0 %v2872
    %3046 = vmatpush.msra.mxu0 %v2868
    %3047 = vmatpush.msra.mxu0 %v2864
    %3048 = vmatpush.msra.mxu0 %v2860
    %3049 = vmatpush.msra.mxu0 %v2856
    %3050 = vmatpush.msra.mxu0 %v2852
    %3051 = vmatpush.msra.mxu0 %v2848
    %3052 = vmatpush.msra.mxu0 %v2844
    %3053 = vmatpush.msra.mxu0 %v2840
    %3054 = vmatpush.msra.mxu0 %v2836
    %3055 = vmatpush.msra.mxu0 %v2832
    %3056 = vmatpush.msra.mxu0 %v2828
    %3057 = vmatmul.f32.gmra.mxu0 %v2504
    %v3058 = vpop.f32.mrf.mxu0
    %v3059 = vadd.f32 %v3039, %v3058
    %3060 = vdwg.mxu0
    %3061 = vmatpush.msra.mxu0 %v2697
    %3062 = vmatpush.msra.mxu0 %v2693
    %3063 = vmatpush.msra.mxu0 %v2689
    %3064 = vmatpush.msra.mxu0 %v2685
    %3065 = vmatpush.msra.mxu0 %v2681
    %3066 = vmatpush.msra.mxu0 %v2677
    %3067 = vmatpush.msra.mxu0 %v2673
    %3068 = vmatpush.msra.mxu0 %v2669
    %3069 = vmatpush.msra.mxu0 %v2665
    %3070 = vmatpush.msra.mxu0 %v2661
    %3071 = vmatpush.msra.mxu0 %v2657
    %3072 = vmatpush.msra.mxu0 %v2653
    %3073 = vmatpush.msra.mxu0 %v2649
    %3074 = vmatpush.msra.mxu0 %v2645
    %3075 = vmatpush.msra.mxu0 %v2641
    %3076 = vmatpush.msra.mxu0 %v2637
    %3077 = vmatmul.f32.gmra.mxu0 %v2501
    %v3078 = vpop.f32.mrf.mxu0
    %v3079 = vadd.f32 %v2895, %v3078
    %3080 = vdwg.mxu0
    %3081 = vmatpush.msra.mxu0 %v2761
    %3082 = vmatpush.msra.mxu0 %v2757
    %3083 = vmatpush.msra.mxu0 %v2753
    %3084 = vmatpush.msra.mxu0 %v2749
    %3085 = vmatpush.msra.mxu0 %v2745
    %3086 = vmatpush.msra.mxu0 %v2741
    %3087 = vmatpush.msra.mxu0 %v2737
    %3088 = vmatpush.msra.mxu0 %v2733
    %3089 = vmatpush.msra.mxu0 %v2729
    %3090 = vmatpush.msra.mxu0 %v2725
    %3091 = vmatpush.msra.mxu0 %v2721
    %3092 = vmatpush.msra.mxu0 %v2717
    %3093 = vmatpush.msra.mxu0 %v2713
    %3094 = vmatpush.msra.mxu0 %v2709
    %3095 = vmatpush.msra.mxu0 %v2705
    %3096 = vmatpush.msra.mxu0 %v2701
    %3097 = vmatmul.f32.gmra.mxu0 %v2502
    %v3098 = vpop.f32.mrf.mxu0
    %v3099 = vadd.f32 %v3079, %v3098
    %3100 = vdwg.mxu0
    %3101 = vmatpush.msra.mxu0 %v2825
    %3102 = vmatpush.msra.mxu0 %v2821
    %3103 = vmatpush.msra.mxu0 %v2817
    %3104 = vmatpush.msra.mxu0 %v2813
    %3105 = vmatpush.msra.mxu0 %v2809
    %3106 = vmatpush.msra.mxu0 %v2805
    %3107 = vmatpush.msra.mxu0 %v2801
    %3108 = vmatpush.msra.mxu0 %v2797
    %3109 = vmatpush.msra.mxu0 %v2793
    %3110 = vmatpush.msra.mxu0 %v2789
    %3111 = vmatpush.msra.mxu0 %v2785
    %3112 = vmatpush.msra.mxu0 %v2781
    %3113 = vmatpush.msra.mxu0 %v2777
    %3114 = vmatpush.msra.mxu0 %v2773
    %3115 = vmatpush.msra.mxu0 %v2769
    %3116 = vmatpush.msra.mxu0 %v2765
    %3117 = vmatmul.f32.gmra.mxu0 %v2503
    %v3118 = vpop.f32.mrf.mxu0
    %v3119 = vadd.f32 %v3099, %v3118
    %3120 = vdwg.mxu0
    %3121 = vmatpush.msra.mxu0 %v2889
    %3122 = vmatpush.msra.mxu0 %v2885
    %3123 = vmatpush.msra.mxu0 %v2881
    %3124 = vmatpush.msra.mxu0 %v2877
    %3125 = vmatpush.msra.mxu0 %v2873
    %3126 = vmatpush.msra.mxu0 %v2869
    %3127 = vmatpush.msra.mxu0 %v2865
    %3128 = vmatpush.msra.mxu0 %v2861
    %3129 = vmatpush.msra.mxu0 %v2857
    %3130 = vmatpush.msra.mxu0 %v2853
    %3131 = vmatpush.msra.mxu0 %v2849
    %3132 = vmatpush.msra.mxu0 %v2845
    %3133 = vmatpush.msra.mxu0 %v2841
    %3134 = vmatpush.msra.mxu0 %v2837
    %3135 = vmatpush.msra.mxu0 %v2833
    %3136 = vmatpush.msra.mxu0 %v2829
    %3137 = vmatmul.f32.gmra.mxu0 %v2504
    %v3138 = vpop.f32.mrf.mxu0
    %v3139 = vadd.f32 %v3119, %v3138
    %3140 = vdwg.mxu0
    %3141 = vmatpush.msra.mxu0 %v2698
    %3142 = vmatpush.msra.mxu0 %v2694
    %3143 = vmatpush.msra.mxu0 %v2690
    %3144 = vmatpush.msra.mxu0 %v2686
    %3145 = vmatpush.msra.mxu0 %v2682
    %3146 = vmatpush.msra.mxu0 %v2678
    %3147 = vmatpush.msra.mxu0 %v2674
    %3148 = vmatpush.msra.mxu0 %v2670
    %3149 = vmatpush.msra.mxu0 %v2666
    %3150 = vmatpush.msra.mxu0 %v2662
    %3151 = vmatpush.msra.mxu0 %v2658
    %3152 = vmatpush.msra.mxu0 %v2654
    %3153 = vmatpush.msra.mxu0 %v2650
    %3154 = vmatpush.msra.mxu0 %v2646
    %3155 = vmatpush.msra.mxu0 %v2642
    %3156 = vmatpush.msra.mxu0 %v2638
    %3157 = vmatmul.f32.gmra.mxu0 %v2501
    %v3158 = vpop.f32.mrf.mxu0
    %v3159 = vadd.f32 %v2896, %v3158
    %3160 = vdwg.mxu0
    %3161 = vmatpush.msra.mxu0 %v2762
    %3162 = vmatpush.msra.mxu0 %v2758
    %3163 = vmatpush.msra.mxu0 %v2754
    %3164 = vmatpush.msra.mxu0 %v2750
    %3165 = vmatpush.msra.mxu0 %v2746
    %3166 = vmatpush.msra.mxu0 %v2742
    %3167 = vmatpush.msra.mxu0 %v2738
    %3168 = vmatpush.msra.mxu0 %v2734
    %3169 = vmatpush.msra.mxu0 %v2730
    %3170 = vmatpush.msra.mxu0 %v2726
    %3171 = vmatpush.msra.mxu0 %v2722
    %3172 = vmatpush.msra.mxu0 %v2718
    %3173 = vmatpush.msra.mxu0 %v2714
    %3174 = vmatpush.msra.mxu0 %v2710
    %3175 = vmatpush.msra.mxu0 %v2706
    %3176 = vmatpush.msra.mxu0 %v2702
    %3177 = vmatmul.f32.gmra.mxu0 %v2502
    %v3178 = vpop.f32.mrf.mxu0
    %v3179 = vadd.f32 %v3159, %v3178
    %3180 = vdwg.mxu0
    %3181 = vmatpush.msra.mxu0 %v2826
    %3182 = vmatpush.msra.mxu0 %v2822
    %3183 = vmatpush.msra.mxu0 %v2818
    %3184 = vmatpush.msra.mxu0 %v2814
    %3185 = vmatpush.msra.mxu0 %v2810
    %3186 = vmatpush.msra.mxu0 %v2806
    %3187 = vmatpush.msra.mxu0 %v2802
    %3188 = vmatpush.msra.mxu0 %v2798
    %3189 = vmatpush.msra.mxu0 %v2794
    %3190 = vmatpush.msra.mxu0 %v2790
    %3191 = vmatpush.msra.mxu0 %v2786
    %3192 = vmatpush.msra.mxu0 %v2782
    %3193 = vmatpush.msra.mxu0 %v2778
    %3194 = vmatpush.msra.mxu0 %v2774
    %3195 = vmatpush.msra.mxu0 %v2770
    %3196 = vmatpush.msra.mxu0 %v2766
    %3197 = vmatmul.f32.gmra.mxu0 %v2503
    %v3198 = vpop.f32.mrf.mxu0
    %v3199 = vadd.f32 %v3179, %v3198
    %3200 = vdwg.mxu0
    %3201 = vmatpush.msra.mxu0 %v2890
    %3202 = vmatpush.msra.mxu0 %v2886
    %3203 = vmatpush.msra.mxu0 %v2882
    %3204 = vmatpush.msra.mxu0 %v2878
    %3205 = vmatpush.msra.mxu0 %v2874
    %3206 = vmatpush.msra.mxu0 %v2870
    %3207 = vmatpush.msra.mxu0 %v2866
    %3208 = vmatpush.msra.mxu0 %v2862
    %3209 = vmatpush.msra.mxu0 %v2858
    %3210 = vmatpush.msra.mxu0 %v2854
    %3211 = vmatpush.msra.mxu0 %v2850
    %3212 = vmatpush.msra.mxu0 %v2846
    %3213 = vmatpush.msra.mxu0 %v2842
    %3214 = vmatpush.msra.mxu0 %v2838
    %3215 = vmatpush.msra.mxu0 %v2834
    %3216 = vmatpush.msra.mxu0 %v2830
    %3217 = vmatmul.f32.gmra.mxu0 %v2504
    %v3218 = vpop.f32.mrf.mxu0
    %v3219 = vadd.f32 %v3199, %v3218
    %3220 = vdwg.mxu0
    %v3221 = vtanh.pop %v2979
    %v3222 = vtanh.pop %v3059
    %v3223 = vtanh.pop %v3139
    %v3224 = vtanh.pop %v3219
    %s3225 = smul.u32 %s1783, 1
    %s3226 = sshll.u32 %s3225, 4
    %3227 = dma.done %s100, %s3226
    %v3228 = vld [vmem:[#allocation6] sm:$0xf]
    %v3229 = vld [vmem:[#allocation6 + $0x4] sm:$0xf]
    %v3230 = vld [vmem:[#allocation6 + $0x8] sm:$0xf]
    %v3231 = vld [vmem:[#allocation6 + $0xc] sm:$0xf]
    %v3232 = vld [vmem:[#allocation6 + $0x10] sm:$0xf]
    %v3233 = vld [vmem:[#allocation6 + $0x14] sm:$0xf]
    %v3234 = vld [vmem:[#allocation6 + $0x18] sm:$0xf]
    %v3235 = vld [vmem:[#allocation6 + $0x1c] sm:$0xf]
    %v3236 = vld [vmem:[#allocation6 + $0x20] sm:$0xf]
    %v3237 = vld [vmem:[#allocation6 + $0x24] sm:$0xf]
    %v3238 = vld [vmem:[#allocation6 + $0x28] sm:$0xf]
    %v3239 = vld [vmem:[#allocation6 + $0x2c] sm:$0xf]
    %v3240 = vld [vmem:[#allocation6 + $0x30] sm:$0xf]
    %v3241 = vld [vmem:[#allocation6 + $0x34] sm:$0xf]
    %v3242 = vld [vmem:[#allocation6 + $0x38] sm:$0xf]
    %v3243 = vld [vmem:[#allocation6 + $0x3c] sm:$0xf]
    %v3244 = vld [vmem:[#allocation6 + $0x40] sm:$0xf]
    %v3245 = vld [vmem:[#allocation6 + $0x44] sm:$0xf]
    %v3246 = vld [vmem:[#allocation6 + $0x48] sm:$0xf]
    %v3247 = vld [vmem:[#allocation6 + $0x4c] sm:$0xf]
    %v3248 = vld [vmem:[#allocation6 + $0x50] sm:$0xf]
    %v3249 = vld [vmem:[#allocation6 + $0x54] sm:$0xf]
    %v3250 = vld [vmem:[#allocation6 + $0x58] sm:$0xf]
    %v3251 = vld [vmem:[#allocation6 + $0x5c] sm:$0xf]
    %v3252 = vld [vmem:[#allocation6 + $0x60] sm:$0xf]
    %v3253 = vld [vmem:[#allocation6 + $0x64] sm:$0xf]
    %v3254 = vld [vmem:[#allocation6 + $0x68] sm:$0xf]
    %v3255 = vld [vmem:[#allocation6 + $0x6c] sm:$0xf]
    %v3256 = vld [vmem:[#allocation6 + $0x70] sm:$0xf]
    %v3257 = vld [vmem:[#allocation6 + $0x74] sm:$0xf]
    %v3258 = vld [vmem:[#allocation6 + $0x78] sm:$0xf]
    %v3259 = vld [vmem:[#allocation6 + $0x7c] sm:$0xf]
    %v3260 = vld [vmem:[#allocation6 + $0x80] sm:$0xf]
    %v3261 = vld [vmem:[#allocation6 + $0x84] sm:$0xf]
    %v3262 = vld [vmem:[#allocation6 + $0x88] sm:$0xf]
    %v3263 = vld [vmem:[#allocation6 + $0x8c] sm:$0xf]
    %v3264 = vld [vmem:[#allocation6 + $0x90] sm:$0xf]
    %v3265 = vld [vmem:[#allocation6 + $0x94] sm:$0xf]
    %v3266 = vld [vmem:[#allocation6 + $0x98] sm:$0xf]
    %v3267 = vld [vmem:[#allocation6 + $0x9c] sm:$0xf]
    %v3268 = vld [vmem:[#allocation6 + $0xa0] sm:$0xf]
    %v3269 = vld [vmem:[#allocation6 + $0xa4] sm:$0xf]
    %v3270 = vld [vmem:[#allocation6 + $0xa8] sm:$0xf]
    %v3271 = vld [vmem:[#allocation6 + $0xac] sm:$0xf]
    %v3272 = vld [vmem:[#allocation6 + $0xb0] sm:$0xf]
    %v3273 = vld [vmem:[#allocation6 + $0xb4] sm:$0xf]
    %v3274 = vld [vmem:[#allocation6 + $0xb8] sm:$0xf]
    %v3275 = vld [vmem:[#allocation6 + $0xbc] sm:$0xf]
    %v3276 = vld [vmem:[#allocation6 + $0xc0] sm:$0xf]
    %v3277 = vld [vmem:[#allocation6 + $0xc4] sm:$0xf]
    %v3278 = vld [vmem:[#allocation6 + $0xc8] sm:$0xf]
    %v3279 = vld [vmem:[#allocation6 + $0xcc] sm:$0xf]
    %v3280 = vld [vmem:[#allocation6 + $0xd0] sm:$0xf]
    %v3281 = vld [vmem:[#allocation6 + $0xd4] sm:$0xf]
    %v3282 = vld [vmem:[#allocation6 + $0xd8] sm:$0xf]
    %v3283 = vld [vmem:[#allocation6 + $0xdc] sm:$0xf]
    %v3284 = vld [vmem:[#allocation6 + $0xe0] sm:$0xf]
    %v3285 = vld [vmem:[#allocation6 + $0xe4] sm:$0xf]
    %v3286 = vld [vmem:[#allocation6 + $0xe8] sm:$0xf]
    %v3287 = vld [vmem:[#allocation6 + $0xec] sm:$0xf]
    %v3288 = vld [vmem:[#allocation6 + $0xf0] sm:$0xf]
    %v3289 = vld [vmem:[#allocation6 + $0xf4] sm:$0xf]
    %v3290 = vld [vmem:[#allocation6 + $0xf8] sm:$0xf]
    %v3291 = vld [vmem:[#allocation6 + $0xfc] sm:$0xf]
    %v3292 = vunpack.c.l.bf16 %v3228
    %v3293 = vunpack.c.l.bf16 %v3229
    %v3294 = vunpack.c.l.bf16 %v3230
    %v3295 = vunpack.c.l.bf16 %v3231
    %v3296 = vunpack.c.l.bf16 %v3232
    %v3297 = vunpack.c.l.bf16 %v3233
    %v3298 = vunpack.c.l.bf16 %v3234
    %v3299 = vunpack.c.l.bf16 %v3235
    %v3300 = vunpack.c.l.bf16 %v3236
    %v3301 = vunpack.c.l.bf16 %v3237
    %v3302 = vunpack.c.l.bf16 %v3238
    %v3303 = vunpack.c.l.bf16 %v3239
    %v3304 = vunpack.c.l.bf16 %v3240
    %v3305 = vunpack.c.l.bf16 %v3241
    %v3306 = vunpack.c.l.bf16 %v3242
    %v3307 = vunpack.c.l.bf16 %v3243
    %v3308 = vunpack.c.l.bf16 %v3244
    %v3309 = vunpack.c.l.bf16 %v3245
    %v3310 = vunpack.c.l.bf16 %v3246
    %v3311 = vunpack.c.l.bf16 %v3247
    %v3312 = vunpack.c.l.bf16 %v3248
    %v3313 = vunpack.c.l.bf16 %v3249
    %v3314 = vunpack.c.l.bf16 %v3250
    %v3315 = vunpack.c.l.bf16 %v3251
    %v3316 = vunpack.c.l.bf16 %v3252
    %v3317 = vunpack.c.l.bf16 %v3253
    %v3318 = vunpack.c.l.bf16 %v3254
    %v3319 = vunpack.c.l.bf16 %v3255
    %v3320 = vunpack.c.l.bf16 %v3256
    %v3321 = vunpack.c.l.bf16 %v3257
    %v3322 = vunpack.c.l.bf16 %v3258
    %v3323 = vunpack.c.l.bf16 %v3259
    %v3324 = vunpack.c.l.bf16 %v3260
    %v3325 = vunpack.c.l.bf16 %v3261
    %v3326 = vunpack.c.l.bf16 %v3262
    %v3327 = vunpack.c.l.bf16 %v3263
    %v3328 = vunpack.c.l.bf16 %v3264
    %v3329 = vunpack.c.l.bf16 %v3265
    %v3330 = vunpack.c.l.bf16 %v3266
    %v3331 = vunpack.c.l.bf16 %v3267
    %v3332 = vunpack.c.l.bf16 %v3268
    %v3333 = vunpack.c.l.bf16 %v3269
    %v3334 = vunpack.c.l.bf16 %v3270
    %v3335 = vunpack.c.l.bf16 %v3271
    %v3336 = vunpack.c.l.bf16 %v3272
    %v3337 = vunpack.c.l.bf16 %v3273
    %v3338 = vunpack.c.l.bf16 %v3274
    %v3339 = vunpack.c.l.bf16 %v3275
    %v3340 = vunpack.c.l.bf16 %v3276
    %v3341 = vunpack.c.l.bf16 %v3277
    %v3342 = vunpack.c.l.bf16 %v3278
    %v3343 = vunpack.c.l.bf16 %v3279
    %v3344 = vunpack.c.l.bf16 %v3280
    %v3345 = vunpack.c.l.bf16 %v3281
    %v3346 = vunpack.c.l.bf16 %v3282
    %v3347 = vunpack.c.l.bf16 %v3283
    %v3348 = vunpack.c.l.bf16 %v3284
    %v3349 = vunpack.c.l.bf16 %v3285
    %v3350 = vunpack.c.l.bf16 %v3286
    %v3351 = vunpack.c.l.bf16 %v3287
    %v3352 = vunpack.c.l.bf16 %v3288
    %v3353 = vunpack.c.l.bf16 %v3289
    %v3354 = vunpack.c.l.bf16 %v3290
    %v3355 = vunpack.c.l.bf16 %v3291
    %v3356 = vld [vmem:[#allocation11 + $0x14] sm:$0x1]
    %v3358 = vperm.slane %v3356, 0
    %3360 = vmatpush.msra.mxu0 %v3307
    %3361 = vmatpush.msra.mxu0 %v3306
    %3362 = vmatpush.msra.mxu0 %v3305
    %3363 = vmatpush.msra.mxu0 %v3304
    %3364 = vmatpush.msra.mxu0 %v3303
    %3365 = vmatpush.msra.mxu0 %v3302
    %3366 = vmatpush.msra.mxu0 %v3301
    %3367 = vmatpush.msra.mxu0 %v3300
    %3368 = vmatpush.msra.mxu0 %v3299
    %3369 = vmatpush.msra.mxu0 %v3298
    %3370 = vmatpush.msra.mxu0 %v3297
    %3371 = vmatpush.msra.mxu0 %v3296
    %3372 = vmatpush.msra.mxu0 %v3295
    %3373 = vmatpush.msra.mxu0 %v3294
    %3374 = vmatpush.msra.mxu0 %v3293
    %3375 = vmatpush.msra.mxu0 %v3292
    %3376 = vmatmul.f32.gmra.mxu0 %v3221
    %v3377 = vpop.f32.mrf.mxu0
    %v3378 = vadd.f32 %v3358, %v3377
    %3379 = vdwg.mxu0
    %3380 = vmatpush.msra.mxu0 %v3323
    %3381 = vmatpush.msra.mxu0 %v3322
    %3382 = vmatpush.msra.mxu0 %v3321
    %3383 = vmatpush.msra.mxu0 %v3320
    %3384 = vmatpush.msra.mxu0 %v3319
    %3385 = vmatpush.msra.mxu0 %v3318
    %3386 = vmatpush.msra.mxu0 %v3317
    %3387 = vmatpush.msra.mxu0 %v3316
    %3388 = vmatpush.msra.mxu0 %v3315
    %3389 = vmatpush.msra.mxu0 %v3314
    %3390 = vmatpush.msra.mxu0 %v3313
    %3391 = vmatpush.msra.mxu0 %v3312
    %3392 = vmatpush.msra.mxu0 %v3311
    %3393 = vmatpush.msra.mxu0 %v3310
    %3394 = vmatpush.msra.mxu0 %v3309
    %3395 = vmatpush.msra.mxu0 %v3308
    %3396 = vmatmul.f32.gmra.mxu0 %v3222
    %v3397 = vpop.f32.mrf.mxu0
    %v3398 = vadd.f32 %v3378, %v3397
    %3399 = vdwg.mxu0
    %3400 = vmatpush.msra.mxu0 %v3339
    %3401 = vmatpush.msra.mxu0 %v3338
    %3402 = vmatpush.msra.mxu0 %v3337
    %3403 = vmatpush.msra.mxu0 %v3336
    %3404 = vmatpush.msra.mxu0 %v3335
    %3405 = vmatpush.msra.mxu0 %v3334
    %3406 = vmatpush.msra.mxu0 %v3333
    %3407 = vmatpush.msra.mxu0 %v3332
    %3408 = vmatpush.msra.mxu0 %v3331
    %3409 = vmatpush.msra.mxu0 %v3330
    %3410 = vmatpush.msra.mxu0 %v3329
    %3411 = vmatpush.msra.mxu0 %v3328
    %3412 = vmatpush.msra.mxu0 %v3327
    %3413 = vmatpush.msra.mxu0 %v3326
    %3414 = vmatpush.msra.mxu0 %v3325
    %3415 = vmatpush.msra.mxu0 %v3324
    %3416 = vmatmul.f32.gmra.mxu0 %v3223
    %v3417 = vpop.f32.mrf.mxu0
    %v3418 = vadd.f32 %v3398, %v3417
    %3419 = vdwg.mxu0
    %3420 = vmatpush.msra.mxu0 %v3355
    %3421 = vmatpush.msra.mxu0 %v3354
    %3422 = vmatpush.msra.mxu0 %v3353
    %3423 = vmatpush.msra.mxu0 %v3352
    %3424 = vmatpush.msra.mxu0 %v3351
    %3425 = vmatpush.msra.mxu0 %v3350
    %3426 = vmatpush.msra.mxu0 %v3349
    %3427 = vmatpush.msra.mxu0 %v3348
    %3428 = vmatpush.msra.mxu0 %v3347
    %3429 = vmatpush.msra.mxu0 %v3346
    %3430 = vmatpush.msra.mxu0 %v3345
    %3431 = vmatpush.msra.mxu0 %v3344
    %3432 = vmatpush.msra.mxu0 %v3343
    %3433 = vmatpush.msra.mxu0 %v3342
    %3434 = vmatpush.msra.mxu0 %v3341
    %3435 = vmatpush.msra.mxu0 %v3340
    %3436 = vmatmul.f32.gmra.mxu0 %v3224
    %v3437 = vpop.f32.mrf.mxu0
    %v3438 = vadd.f32 %v3418, %v3437
    %3439 = vdwg.mxu0
    %v3440 = vtanh.pop %v3438
    %3441 = vst [vmem:[#allocation13] sm:$0xff] %v3440
    // Predicated region
    $region38: #{tpu_custom_call.1} parent=1 // pred_check
      _
    $region39: #{tpu_custom_call.1} parent=1 // pred_check_branch
      %3443 = sbr.rel (0) target = $region41
    $region40: #{tpu_custom_call.1} parent=1 // pred_region
      %3445 = vsyncadd [#allocation10], 0
      %s3447 = sshll.u32 [#allocation13], 4
      %s3448 = int_to_ptr.vmem [resolvable:$true] %s3447
      %s3449 = sshll.u32 %s7, 4
      %s3450 = int_to_ptr.hbm [resolvable:$true] %s3449
      %3452 = dma.vmem_to_hbm [thread:$0]  %s3448, 128, %s3450, [#allocation10]
    $region41: #{tpu_custom_call.1} parent=1 // pred_fallthru
      _
    // Predicated region
    $region42: #{tpu_custom_call.1} parent=1 // pred_check
      _
    $region43: #{tpu_custom_call.1} parent=1 // pred_check_branch
      %3454 = sbr.rel (0) target = $region45
    $region44: #{tpu_custom_call.1} parent=1 // pred_region
      %3456 = dma.done [#allocation10], 128
    $region45: #{tpu_custom_call.1} parent=1 // pred_fallthru
      _
    %3457 = vsyncpa [#allocation9], 1
    %3458 = vsyncpa [#allocation12], 1
    %3459 = vsyncpa [#allocation10], 1
  %3460 = vsyncmov [#allocation7]
  %s3461 = vpop.sfrf %3460
  %p3462 = scmp.eq.s32.totalorder %s3461, 0
  %p3463 = pneg %p3462
  %3465 = shalt.err (%p3463)
  %s3466 = scalar_lea.sflag [#allocation7], 1
  %3467 = vsyncmov %s3466
  %s3468 = vpop.sfrf %3467
  %p3469 = scmp.eq.s32.totalorder %s3468, 0
  %p3470 = pneg %p3469
  %3472 = shalt.err (%p3470)
  %s3473 = scalar_lea.sflag [#allocation7], 2
  %3474 = vsyncmov %s3473
  %s3475 = vpop.sfrf %3474
  %p3476 = scmp.eq.s32.totalorder %s3475, 0
  %p3477 = pneg %p3476
  %3479 = shalt.err (%p3477)
  %s3480 = scalar_lea.sflag [#allocation7], 3
  %3481 = vsyncmov %s3480
  %s3482 = vpop.sfrf %3481
  %p3483 = scmp.eq.s32.totalorder %s3482, 0
  %p3484 = pneg %p3483
  %3486 = shalt.err (%p3484)
  %s3487 = scalar_lea.sflag [#allocation7], 4
  %3488 = vsyncmov %s3487
  %s3489 = vpop.sfrf %3488
  %p3490 = scmp.eq.s32.totalorder %s3489, 0
  %p3491 = pneg %p3490
  %3493 = shalt.err (%p3491)

</llo_original>
